<compile_context>
chip_gen: v6e
topology: v6e:2x2x1
jax: 0.10.0
libtpu: 0.0.40
codegen_flags: <defaults>
</compile_context>

<pallas_src>
import jax
import jax.numpy as jnp
from jax.experimental import pallas as pl
from jax.experimental.pallas import tpu as pltpu

# --- module "hyper-parameters" (small shapes, consistent with __init__) -------
IN_CHANNELS = 32          # stored by the module; not used on the base-class hot path
OUT_CHANNELS = 16         # self.C
IMAGE_SIZE = (32, 64)     # (iH, iW)
FEATURE_SIZE = (8, 16)    # (fH, fW)
XBOUND = (-4.0, 4.0, 1.0)
YBOUND = (-4.0, 4.0, 1.0)
ZBOUND = (-2.0, 2.0, 4.0)
DBOUND = (1.0, 5.0, 1.0)
B, N = 2, 2               # batch, number of cameras

LANES = 128               # TPU lane width; points are laid out (P // 128, 128)
POINT_CHUNK = 256         # K-chunk inside the bev_pool kernel (multiple of 128)
FEAT_DTYPE = jnp.bfloat16 # MXU-native operand dtype (jnp.float32 -> strict fp32 parity)

# python-float voxelization constants (identical formula to the torch module)
DXV = [row[2] for row in (XBOUND, YBOUND, ZBOUND)]                                    # self.dx
LOWER = [(row[0] + row[2] / 2.0) - row[2] / 2.0 for row in (XBOUND, YBOUND, ZBOUND)]  # bx - dx/2
NXV = [int((row[1] - row[0]) / row[2]) for row in (XBOUND, YBOUND, ZBOUND)]           # self.nx


def gen_dx_bx(xbound, ybound, zbound):
    dx = jnp.array([row[2] for row in (xbound, ybound, zbound)], jnp.float32)
    cx = jnp.array([row[0] for row in (xbound, ybound, zbound)], jnp.float32)
    bx = jnp.array([row[0] + row[2] / 2.0 for row in (xbound, ybound, zbound)], jnp.float32)
    nx = jnp.array([int((row[1] - row[0]) / row[2]) for row in (xbound, ybound, zbound)], jnp.int32)
    return dx, cx, bx, nx


def create_frustum(image_size, feature_size, dbound):
    iH, iW = image_size
    fH, fW = feature_size
    ds = jnp.arange(dbound[0], dbound[1], dbound[2], dtype=jnp.float32)
    D = ds.shape[0]
    xs = jnp.linspace(0.0, iW - 1, fW, dtype=jnp.float32)
    ys = jnp.linspace(0.0, iH - 1, fH, dtype=jnp.float32)
    xs_b = jnp.broadcast_to(xs[None, None, :], (D, fH, fW))
    ys_b = jnp.broadcast_to(ys[None, :, None], (D, fH, fW))
    ds_b = jnp.broadcast_to(ds[:, None, None], (D, fH, fW))
    return jnp.stack([xs_b, ys_b, ds_b], axis=-1)  # (D, fH, fW, 3)


# -------------------------- Pallas kernel 1: geometry -------------------------
def make_geom_kernel(num_cams, cams_per_batch, nx, dxv, lower, write_geom):
    nx0, nx1, nx2 = nx
    dx0, dx1, dx2 = dxv
    lo0, lo1, lo2 = lower

    def geom_kernel(params_ref, fr_ref, tgt_ref, *rest):
        # params_ref: SMEM (B*N, 36)
        #   [0:9]   inv(post_rots)   [9:12]  post_trans
        #   [12:21] camera2lidar_rots @ inv(intrins)   [21:24] camera2lidar_trans
        #   [24:33] extra_rots (BDA) [33:36] extra_trans (BDA)
        geom_ref = rest[0] if write_geom else None
        # Frustum coordinates, sublane-dense (R, 128); shared by all cameras, loaded once.
        fx = fr_ref[0]
        fy = fr_ref[1]
        fz = fr_ref[2]
        for c in range(num_cams):              # static unroll over the few cameras
            b = c // cams_per_batch

            def p(i, _c=c):
                return params_ref[_c, i]       # SMEM scalar read

            # points = frustum - post_trans
            ax = fx - p(9); ay = fy - p(10); az = fz - p(11)
            # points = inv(post_rots) @ points
            ux = p(0) * ax + p(1) * ay + p(2) * az
            uy = p(3) * ax + p(4) * ay + p(5) * az
            uz = p(6) * ax + p(7) * ay + p(8) * az
            # un-project: (x*z, y*z, z)
            vx = ux * uz
            vy = uy * uz
            vz = uz
            # points = (camera2lidar_rots @ inv(intrins)) @ points + camera2lidar_trans
            wx = p(12) * vx + p(13) * vy + p(14) * vz + p(21)
            wy = p(15) * vx + p(16) * vy + p(17) * vz + p(22)
            wz = p(18) * vx + p(19) * vy + p(20) * vz + p(23)
            # points = extra_rots @ points + extra_trans  (BDA)
            gx = p(24) * wx + p(25) * wy + p(26) * wz + p(33)
            gy = p(27) * wx + p(28) * wy + p(29) * wz + p(34)
            gz = p(30) * wx + p(31) * wy + p(32) * wz + p(35)

            if write_geom:                     # debug/validation path only
                geom_ref[c, 0, :, :] = gx
                geom_ref[c, 1, :, :] = gy
                geom_ref[c, 2, :, :] = gz

            # voxelize: ((geom - (bx - dx/2)) / dx).long()
            # NOTE: int32 cast truncates toward zero, matching torch .long() bug-for-bug
            #       (fractional indices in (-1, 0) land in bin 0 and are kept).
            ix = ((gx - lo0) / dx0).astype(jnp.int32)
            iy = ((gy - lo1) / dx1).astype(jnp.int32)
            iz = ((gz - lo2) / dx2).astype(jnp.int32)
            kept = ((ix >= 0) & (ix < nx0) & (iy >= 0) & (iy < nx1)
                    & (iz >= 0) & (iz < nx2))
            # TODO(synk): forward() calls bev_pool(geom, x) without depth_kept; treated as all-True.
            flat = ((b * nx2 + iz) * nx0 + ix) * nx1 + iy  # (B, Z, X, Y) flat voxel index
            tgt_ref[c, :, :] = jnp.where(kept, flat, -1)

    return geom_kernel


def geometry_voxelize_pallas(frustum3, params, *, return_geom=False):
    # frustum3: (3, R, 128) f32, params: (BN, 36) f32
    _, R, L = frustum3.shape
    BN = params.shape[0]
    out_shape = [jax.ShapeDtypeStruct((BN, R, L), jnp.int32)]
    out_specs = [pl.BlockSpec((BN, R, L), lambda i: (0, 0, 0))]
    if return_geom:
        out_shape.append(jax.ShapeDtypeStruct((BN, 3, R, L), jnp.float32))
        out_specs.append(pl.BlockSpec((BN, 3, R, L), lambda i: (0, 0, 0, 0)))
    kern = make_geom_kernel(BN, N, NXV, DXV, LOWER, return_geom)
    outs = pl.pallas_call(
        kern,
        out_shape=tuple(out_shape),
        grid=(1,),                                   # single step: all cameras per invocation
        in_specs=[pl.BlockSpec(memory_space=pltpu.MemorySpace.SMEM),
                  pl.BlockSpec((3, R, L), lambda i: (0, 0, 0))],
        out_specs=tuple(out_specs),
        compiler_params=pltpu.CompilerParams(dimension_semantics=("arbitrary",)),
    )(params, frustum3)
    return outs


def build_geom_params(post_rots, post_trans, intrins, c2l_rots, c2l_trans,
                      extra_rots, extra_trans):
    BN = B * N
    inv_post = jnp.linalg.inv(post_rots)                 # (B, N, 3, 3)
    combine = c2l_rots @ jnp.linalg.inv(intrins)         # (B, N, 3, 3)
    er = jnp.broadcast_to(extra_rots[:, None], (B, N, 3, 3))
    et = jnp.broadcast_to(extra_trans[:, None], (B, N, 3))
    return jnp.concatenate(
        [inv_post.reshape(BN, 9), post_trans.reshape(BN, 3),
         combine.reshape(BN, 9), c2l_trans.reshape(BN, 3),
         er.reshape(BN, 9), et.reshape(BN, 3)], axis=1).astype(jnp.float32)   # (BN, 36)


# ------------------------ Pallas kernel 2: bev_pool ---------------------------
# TODO(synk): the one-hot-matmul formulation is only sensible at toy BEV grids; at
#             production BEVFusion shapes a sort-by-voxel + segment-offset scatter
#             (PrefetchScalarGridSpec) should replace it.
def bevpool_kernel(tgt_ref, feat_ref, out_ref):
    # tgt_ref : (NC, CHUNK, 1) int32   flat voxel index per point (-1 = dropped)
    # feat_ref: (NC, C, CHUNK) FEAT_DTYPE
    # out_ref : (C, tv) f32            lane-dense output tile (tv voxels on lanes)
    tv = out_ref.shape[1]
    v0 = pl.program_id(0) * tv
    vox = v0 + jax.lax.broadcasted_iota(jnp.int32, (1, tv), 1)   # (1, tv), built once

    def body(k, acc):
        onehot = (tgt_ref[k] == vox).astype(feat_ref.dtype)       # (CHUNK, tv), exact 0/1
        return acc + jnp.dot(feat_ref[k], onehot,
                             preferred_element_type=jnp.float32)  # (C, tv) on the MXU

    acc = jax.lax.fori_loop(0, feat_ref.shape[0], body,
                            jnp.zeros(out_ref.shape, jnp.float32), unroll=True)
    out_ref[...] = acc


def bev_pool_pallas(tgt_chunks, feat_chunks, V, C, tv=LANES):
    NC, CHUNK, _ = tgt_chunks.shape
    assert V % tv == 0
    return pl.pallas_call(
        bevpool_kernel,
        out_shape=jax.ShapeDtypeStruct((C, V), jnp.float32),
        grid=(V // tv,),
        in_specs=[pl.BlockSpec((NC, CHUNK, 1), lambda v: (0, 0, 0)),
                  pl.BlockSpec((NC, C, CHUNK), lambda v: (0, 0, 0))],
        out_specs=pl.BlockSpec((C, tv), lambda v: (0, v)),
        compiler_params=pltpu.CompilerParams(dimension_semantics=("parallel",)),
    )(tgt_chunks, feat_chunks)


# ------------------------------ forward wrapper -------------------------------
def base_transform_forward(cam_feats, camera_intrinsics, camera2lidar,
                           img_aug_matrix, lidar_aug_matrix, frustum):
    intrins = camera_intrinsics[..., :3, :3]
    post_rots = img_aug_matrix[..., :3, :3]
    post_trans = img_aug_matrix[..., :3, 3]
    c2l_rots = camera2lidar[..., :3, :3]
    c2l_trans = camera2lidar[..., :3, 3]
    extra_rots = lidar_aug_matrix[..., :3, :3]
    extra_trans = lidar_aug_matrix[..., :3, 3]

    params = build_geom_params(post_rots, post_trans, intrins,
                               c2l_rots, c2l_trans, extra_rots, extra_trans)

    D, fH, fW, _ = frustum.shape
    P = D * fH * fW
    assert P % LANES == 0
    frustum3 = frustum.reshape(P, 3).T.reshape(3, P // LANES, LANES).astype(jnp.float32)

    # production path: only the flat voxel target index is produced (no geom writeback)
    (tgt,) = geometry_voxelize_pallas(frustum3, params, return_geom=False)   # (BN, R, 128) i32

    # TODO(synk): get_cam_feats is abstract (NotImplementedError) in BaseTransform;
    #             `cam_feats` (B, N, D, fH, fW, C) is a deterministic synthetic stand-in.
    Bq, Nq, Dq, Hq, Wq, Cq = cam_feats.shape
    Nprime = Bq * Nq * Dq * Hq * Wq
    assert Nprime % POINT_CHUNK == 0
    NC = Nprime // POINT_CHUNK
    # C-major (lane-dense) layout, chunked along the point axis for the in-kernel K loop.
    feats_cn = cam_feats.reshape(Nprime, Cq).T.astype(FEAT_DTYPE)                # (C, Nprime)
    feat_chunks = feats_cn.reshape(Cq, NC, POINT_CHUNK).transpose(1, 0, 2)       # (NC, C, CHUNK)
    tgt_chunks = tgt.reshape(NC, POINT_CHUNK, 1)                                 # (NC, CHUNK, 1)

    nz, nx0, nx1 = NXV[2], NXV[0], NXV[1]
    V = Bq * nz * nx0 * nx1
    bev_cv = bev_pool_pallas(tgt_chunks, feat_chunks, V, Cq)                     # (C, V) f32

    # (C, B*nz*nx0*nx1) -> (B, C, nz, nx0, nx1) -> cat(unbind(dim=2), 1)
    bev5 = bev_cv.reshape(Cq, Bq, nz, nx0, nx1).transpose(1, 0, 2, 3, 4)
    final = jnp.concatenate([bev5[:, :, z] for z in range(nz)], axis=1)          # (B, C*nz, nx0, nx1)
    return final, tgt, bev_cv, params, frustum3


# --------------------------------- references ---------------------------------
def geom_reference(frustum3, params):
    P = frustum3.shape[1] * frustum3.shape[2]
    fr = frustum3.reshape(3, P)
    f0, f1, f2 = fr[0], fr[1], fr[2]
    geoms = []
    for c in range(params.shape[0]):
        p = params[c]
        ax, ay, az = f0 - p[9], f1 - p[10], f2 - p[11]
        ux = p[0] * ax + p[1] * ay + p[2] * az
        uy = p[3] * ax + p[4] * ay + p[5] * az
        uz = p[6] * ax + p[7] * ay + p[8] * az
        vx, vy, vz = ux * uz, uy * uz, uz
        wx = p[12] * vx + p[13] * vy + p[14] * vz + p[21]
        wy = p[15] * vx + p[16] * vy + p[17] * vz + p[22]
        wz = p[18] * vx + p[19] * vy + p[20] * vz + p[23]
        gx = p[24] * wx + p[25] * wy + p[26] * wz + p[33]
        gy = p[27] * wx + p[28] * wy + p[29] * wz + p[34]
        gz = p[30] * wx + p[31] * wy + p[32] * wz + p[35]
        geoms.append(jnp.stack([gx, gy, gz], axis=0))
    return jnp.stack(geoms, axis=0)   # (BN, 3, P)


def bev_reference(tgt_flat, feats_nc_f32, V):
    safe = jnp.where(tgt_flat >= 0, tgt_flat, V)
    acc = jnp.zeros((V + 1, feats_nc_f32.shape[1]), jnp.float32)
    acc = acc.at[safe].add(feats_nc_f32)
    return acc[:V]    # (V, C)


# ------------------------------------ main -------------------------------------
if __name__ == "__main__":
    key = jax.random.PRNGKey(0)
    ks = jax.random.split(key, 8)
    iH, iW = IMAGE_SIZE
    fH, fW = FEATURE_SIZE
    C = OUT_CHANNELS

    dx, cxp, bxp, nxp = gen_dx_bx(XBOUND, YBOUND, ZBOUND)   # module buffers
    frustum = create_frustum(IMAGE_SIZE, FEATURE_SIZE, DBOUND)
    D = frustum.shape[0]

    def make44(rot, trans):
        m = jnp.zeros(rot.shape[:-2] + (4, 4), jnp.float32)
        m = m.at[..., :3, :3].set(rot)
        m = m.at[..., :3, 3].set(trans)
        m = m.at[..., 3, 3].set(1.0)
        return m

    # camera intrinsics
    K = jnp.array([[20.0, 0.0, iW / 2.0],
                   [0.0, 20.0, iH / 2.0],
                   [0.0, 0.0, 1.0]], jnp.float32)
    camera_intrinsics = make44(jnp.broadcast_to(K, (B, N, 3, 3)), jnp.zeros((B, N, 3)))

    # image aug (near identity, well conditioned)
    post_rots = (jnp.broadcast_to(jnp.eye(3, dtype=jnp.float32), (B, N, 3, 3))
                 + 0.02 * jax.random.normal(ks[0], (B, N, 3, 3), jnp.float32))
    post_trans = 0.5 * jax.random.normal(ks[1], (B, N, 3), jnp.float32)
    img_aug_matrix = make44(post_rots, post_trans)

    # camera -> lidar (standard axis permutation + jitter)
    R0 = jnp.array([[0.0, 0.0, 1.0], [-1.0, 0.0, 0.0], [0.0, -1.0, 0.0]], jnp.float32)
    c2l_rots = (jnp.broadcast_to(R0, (B, N, 3, 3))
                + 0.01 * jax.random.normal(ks[2], (B, N, 3, 3), jnp.float32))
    c2l_trans = 0.3 * jax.random.normal(ks[3], (B, N, 3), jnp.float32)
    camera2lidar = make44(c2l_rots, c2l_trans)

    # lidar aug (BDA)
    extra_rots = (jnp.broadcast_to(jnp.eye(3, dtype=jnp.float32), (B, 3, 3))
                  + 0.01 * jax.random.normal(ks[4], (B, 3, 3), jnp.float32))
    extra_trans = 0.2 * jax.random.normal(ks[5], (B, 3), jnp.float32)
    lidar_aug_matrix = make44(extra_rots, extra_trans)

    # synthetic camera features (stand-in for the abstract get_cam_feats output)
    cam_feats = jax.random.normal(ks[6], (B, N, D, fH, fW, C), jnp.float32)

    fwd = jax.jit(base_transform_forward)
    final, tgt, bev_cv, params, frustum3 = fwd(
        cam_feats, camera_intrinsics, camera2lidar, img_aug_matrix,
        lidar_aug_matrix, frustum)
    final = jax.block_until_ready(final)

    # ----------------------------- correctness checks --------------------------
    nz, nx0, nx1 = NXV[2], NXV[0], NXV[1]
    V = B * nz * nx0 * nx1
    P = D * fH * fW

    # geometry: run the kernel once on the debug path (geom writeback enabled)
    _, geom = geometry_voxelize_pallas(frustum3, params, return_geom=True)
    geom_ref = geom_reference(frustum3, params)
    assert bool(jnp.allclose(geom.reshape(B * N, 3, P), geom_ref, rtol=2e-3, atol=2e-3)), \
        "geometry mismatch"

    # bev_pool: scatter-add reference with the same FEAT_DTYPE operands, f32 accumulation
    Nprime = B * N * D * fH * fW
    feats_nc = cam_feats.reshape(Nprime, C).astype(FEAT_DTYPE).astype(jnp.float32)
    bev_ref = bev_reference(tgt.reshape(-1), feats_nc, V)                     # (V, C)
    assert bool(jnp.allclose(bev_cv, bev_ref.T, rtol=1e-3, atol=1e-3)), "bev_pool mismatch"

    assert final.shape == (B, C * nz, nx0, nx1)
    print("KERNEL_OK")
</pallas_src>

<mosaic_0001>
module attributes {stable_mosaic.version = 11 : i64} {
  func.func @geom_kernel(%arg0: i32, %arg1: memref<4x36xf32, #tpu.memory_space<smem>>, %arg2: memref<3x4x128xf32, #tpu.memory_space<vmem>>, %arg3: memref<4x4x128xi32, #tpu.memory_space<vmem>>) attributes {dimension_semantics = [#tpu.dimension_semantics<arbitrary>], iteration_bounds = array<i64: 1>, scalar_prefetch = 0 : i64, scratch_operands = 0 : i64, tpu.core_type = #tpu.core_type<tc>, window_params = [{transform_indices = @transform_0, window_bounds = array<i64: 4, 36>}, {pipeline_mode = #tpu.pipeline_mode<synchronous>, transform_indices = @transform_1, window_bounds = array<i64: 3, 4, 128>}, {pipeline_mode = #tpu.pipeline_mode<synchronous>, transform_indices = @transform_2, window_bounds = array<i64: 4, 4, 128>}]} {
    %c0 = arith.constant 0 : index
    %c0_0 = arith.constant 0 : index
    %c0_1 = arith.constant 0 : index
    %0 = vector.load %arg2[%c0, %c0_0, %c0_1] : memref<3x4x128xf32, #tpu.memory_space<vmem>>, vector<1x4x128xf32>
    %1 = vector.shape_cast %0 : vector<1x4x128xf32> to vector<4x128xf32>
    %c1 = arith.constant 1 : index
    %c0_2 = arith.constant 0 : index
    %c0_3 = arith.constant 0 : index
    %2 = vector.load %arg2[%c1, %c0_2, %c0_3] : memref<3x4x128xf32, #tpu.memory_space<vmem>>, vector<1x4x128xf32>
    %3 = vector.shape_cast %2 : vector<1x4x128xf32> to vector<4x128xf32>
    %c2 = arith.constant 2 : index
    %c0_4 = arith.constant 0 : index
    %c0_5 = arith.constant 0 : index
    %4 = vector.load %arg2[%c2, %c0_4, %c0_5] : memref<3x4x128xf32, #tpu.memory_space<vmem>>, vector<1x4x128xf32>
    %5 = vector.shape_cast %4 : vector<1x4x128xf32> to vector<4x128xf32>
    %c0_6 = arith.constant 0 : index
    %c9 = arith.constant 9 : index
    %6 = memref.load %arg1[%c0_6, %c9] : memref<4x36xf32, #tpu.memory_space<smem>>
    %7 = vector.broadcast %6 : f32 to vector<4x128xf32>
    %8 = arith.subf %1, %7 : vector<4x128xf32>
    %c0_7 = arith.constant 0 : index
    %c10 = arith.constant 10 : index
    %9 = memref.load %arg1[%c0_7, %c10] : memref<4x36xf32, #tpu.memory_space<smem>>
    %10 = vector.broadcast %9 : f32 to vector<4x128xf32>
    %11 = arith.subf %3, %10 : vector<4x128xf32>
    %c0_8 = arith.constant 0 : index
    %c11 = arith.constant 11 : index
    %12 = memref.load %arg1[%c0_8, %c11] : memref<4x36xf32, #tpu.memory_space<smem>>
    %13 = vector.broadcast %12 : f32 to vector<4x128xf32>
    %14 = arith.subf %5, %13 : vector<4x128xf32>
    %c0_9 = arith.constant 0 : index
    %c0_10 = arith.constant 0 : index
    %15 = memref.load %arg1[%c0_9, %c0_10] : memref<4x36xf32, #tpu.memory_space<smem>>
    %16 = vector.broadcast %15 : f32 to vector<4x128xf32>
    %17 = arith.mulf %16, %8 : vector<4x128xf32>
    %c0_11 = arith.constant 0 : index
    %c1_12 = arith.constant 1 : index
    %18 = memref.load %arg1[%c0_11, %c1_12] : memref<4x36xf32, #tpu.memory_space<smem>>
    %19 = vector.broadcast %18 : f32 to vector<4x128xf32>
    %20 = arith.mulf %19, %11 : vector<4x128xf32>
    %21 = arith.addf %17, %20 : vector<4x128xf32>
    %c0_13 = arith.constant 0 : index
    %c2_14 = arith.constant 2 : index
    %22 = memref.load %arg1[%c0_13, %c2_14] : memref<4x36xf32, #tpu.memory_space<smem>>
    %23 = vector.broadcast %22 : f32 to vector<4x128xf32>
    %24 = arith.mulf %23, %14 : vector<4x128xf32>
    %25 = arith.addf %21, %24 : vector<4x128xf32>
    %c0_15 = arith.constant 0 : index
    %c3 = arith.constant 3 : index
    %26 = memref.load %arg1[%c0_15, %c3] : memref<4x36xf32, #tpu.memory_space<smem>>
    %27 = vector.broadcast %26 : f32 to vector<4x128xf32>
    %28 = arith.mulf %27, %8 : vector<4x128xf32>
    %c0_16 = arith.constant 0 : index
    %c4 = arith.constant 4 : index
    %29 = memref.load %arg1[%c0_16, %c4] : memref<4x36xf32, #tpu.memory_space<smem>>
    %30 = vector.broadcast %29 : f32 to vector<4x128xf32>
    %31 = arith.mulf %30, %11 : vector<4x128xf32>
    %32 = arith.addf %28, %31 : vector<4x128xf32>
    %c0_17 = arith.constant 0 : index
    %c5 = arith.constant 5 : index
    %33 = memref.load %arg1[%c0_17, %c5] : memref<4x36xf32, #tpu.memory_space<smem>>
    %34 = vector.broadcast %33 : f32 to vector<4x128xf32>
    %35 = arith.mulf %34, %14 : vector<4x128xf32>
    %36 = arith.addf %32, %35 : vector<4x128xf32>
    %c0_18 = arith.constant 0 : index
    %c6 = arith.constant 6 : index
    %37 = memref.load %arg1[%c0_18, %c6] : memref<4x36xf32, #tpu.memory_space<smem>>
    %38 = vector.broadcast %37 : f32 to vector<4x128xf32>
    %39 = arith.mulf %38, %8 : vector<4x128xf32>
    %c0_19 = arith.constant 0 : index
    %c7 = arith.constant 7 : index
    %40 = memref.load %arg1[%c0_19, %c7] : memref<4x36xf32, #tpu.memory_space<smem>>
    %41 = vector.broadcast %40 : f32 to vector<4x128xf32>
    %42 = arith.mulf %41, %11 : vector<4x128xf32>
    %43 = arith.addf %39, %42 : vector<4x128xf32>
    %c0_20 = arith.constant 0 : index
    %c8 = arith.constant 8 : index
    %44 = memref.load %arg1[%c0_20, %c8] : memref<4x36xf32, #tpu.memory_space<smem>>
    %45 = vector.broadcast %44 : f32 to vector<4x128xf32>
    %46 = arith.mulf %45, %14 : vector<4x128xf32>
    %47 = arith.addf %43, %46 : vector<4x128xf32>
    %48 = arith.mulf %25, %47 : vector<4x128xf32>
    %49 = arith.mulf %36, %47 : vector<4x128xf32>
    %c0_21 = arith.constant 0 : index
    %c12 = arith.constant 12 : index
    %50 = memref.load %arg1[%c0_21, %c12] : memref<4x36xf32, #tpu.memory_space<smem>>
    %51 = vector.broadcast %50 : f32 to vector<4x128xf32>
    %52 = arith.mulf %51, %48 : vector<4x128xf32>
    %c0_22 = arith.constant 0 : index
    %c13 = arith.constant 13 : index
    %53 = memref.load %arg1[%c0_22, %c13] : memref<4x36xf32, #tpu.memory_space<smem>>
    %54 = vector.broadcast %53 : f32 to vector<4x128xf32>
    %55 = arith.mulf %54, %49 : vector<4x128xf32>
    %56 = arith.addf %52, %55 : vector<4x128xf32>
    %c0_23 = arith.constant 0 : index
    %c14 = arith.constant 14 : index
    %57 = memref.load %arg1[%c0_23, %c14] : memref<4x36xf32, #tpu.memory_space<smem>>
    %58 = vector.broadcast %57 : f32 to vector<4x128xf32>
    %59 = arith.mulf %58, %47 : vector<4x128xf32>
    %60 = arith.addf %56, %59 : vector<4x128xf32>
    %c0_24 = arith.constant 0 : index
    %c21 = arith.constant 21 : index
    %61 = memref.load %arg1[%c0_24, %c21] : memref<4x36xf32, #tpu.memory_space<smem>>
    %62 = vector.broadcast %61 : f32 to vector<4x128xf32>
    %63 = arith.addf %60, %62 : vector<4x128xf32>
    %c0_25 = arith.constant 0 : index
    %c15 = arith.constant 15 : index
    %64 = memref.load %arg1[%c0_25, %c15] : memref<4x36xf32, #tpu.memory_space<smem>>
    %65 = vector.broadcast %64 : f32 to vector<4x128xf32>
    %66 = arith.mulf %65, %48 : vector<4x128xf32>
    %c0_26 = arith.constant 0 : index
    %c16 = arith.constant 16 : index
    %67 = memref.load %arg1[%c0_26, %c16] : memref<4x36xf32, #tpu.memory_space<smem>>
    %68 = vector.broadcast %67 : f32 to vector<4x128xf32>
    %69 = arith.mulf %68, %49 : vector<4x128xf32>
    %70 = arith.addf %66, %69 : vector<4x128xf32>
    %c0_27 = arith.constant 0 : index
    %c17 = arith.constant 17 : index
    %71 = memref.load %arg1[%c0_27, %c17] : memref<4x36xf32, #tpu.memory_space<smem>>
    %72 = vector.broadcast %71 : f32 to vector<4x128xf32>
    %73 = arith.mulf %72, %47 : vector<4x128xf32>
    %74 = arith.addf %70, %73 : vector<4x128xf32>
    %c0_28 = arith.constant 0 : index
    %c22 = arith.constant 22 : index
    %75 = memref.load %arg1[%c0_28, %c22] : memref<4x36xf32, #tpu.memory_space<smem>>
    %76 = vector.broadcast %75 : f32 to vector<4x128xf32>
    %77 = arith.addf %74, %76 : vector<4x128xf32>
    %c0_29 = arith.constant 0 : index
    %c18 = arith.constant 18 : index
    %78 = memref.load %arg1[%c0_29, %c18] : memref<4x36xf32, #tpu.memory_space<smem>>
    %79 = vector.broadcast %78 : f32 to vector<4x128xf32>
    %80 = arith.mulf %79, %48 : vector<4x128xf32>
    %c0_30 = arith.constant 0 : index
    %c19 = arith.constant 19 : index
    %81 = memref.load %arg1[%c0_30, %c19] : memref<4x36xf32, #tpu.memory_space<smem>>
    %82 = vector.broadcast %81 : f32 to vector<4x128xf32>
    %83 = arith.mulf %82, %49 : vector<4x128xf32>
    %84 = arith.addf %80, %83 : vector<4x128xf32>
    %c0_31 = arith.constant 0 : index
    %c20 = arith.constant 20 : index
    %85 = memref.load %arg1[%c0_31, %c20] : memref<4x36xf32, #tpu.memory_space<smem>>
    %86 = vector.broadcast %85 : f32 to vector<4x128xf32>
    %87 = arith.mulf %86, %47 : vector<4x128xf32>
    %88 = arith.addf %84, %87 : vector<4x128xf32>
    %c0_32 = arith.constant 0 : index
    %c23 = arith.constant 23 : index
    %89 = memref.load %arg1[%c0_32, %c23] : memref<4x36xf32, #tpu.memory_space<smem>>
    %90 = vector.broadcast %89 : f32 to vector<4x128xf32>
    %91 = arith.addf %88, %90 : vector<4x128xf32>
    %c0_33 = arith.constant 0 : index
    %c24 = arith.constant 24 : index
    %92 = memref.load %arg1[%c0_33, %c24] : memref<4x36xf32, #tpu.memory_space<smem>>
    %93 = vector.broadcast %92 : f32 to vector<4x128xf32>
    %94 = arith.mulf %93, %63 : vector<4x128xf32>
    %c0_34 = arith.constant 0 : index
    %c25 = arith.constant 25 : index
    %95 = memref.load %arg1[%c0_34, %c25] : memref<4x36xf32, #tpu.memory_space<smem>>
    %96 = vector.broadcast %95 : f32 to vector<4x128xf32>
    %97 = arith.mulf %96, %77 : vector<4x128xf32>
    %98 = arith.addf %94, %97 : vector<4x128xf32>
    %c0_35 = arith.constant 0 : index
    %c26 = arith.constant 26 : index
    %99 = memref.load %arg1[%c0_35, %c26] : memref<4x36xf32, #tpu.memory_space<smem>>
    %100 = vector.broadcast %99 : f32 to vector<4x128xf32>
    %101 = arith.mulf %100, %91 : vector<4x128xf32>
    %102 = arith.addf %98, %101 : vector<4x128xf32>
    %c0_36 = arith.constant 0 : index
    %c33 = arith.constant 33 : index
    %103 = memref.load %arg1[%c0_36, %c33] : memref<4x36xf32, #tpu.memory_space<smem>>
    %104 = vector.broadcast %103 : f32 to vector<4x128xf32>
    %105 = arith.addf %102, %104 : vector<4x128xf32>
    %c0_37 = arith.constant 0 : index
    %c27 = arith.constant 27 : index
    %106 = memref.load %arg1[%c0_37, %c27] : memref<4x36xf32, #tpu.memory_space<smem>>
    %107 = vector.broadcast %106 : f32 to vector<4x128xf32>
    %108 = arith.mulf %107, %63 : vector<4x128xf32>
    %c0_38 = arith.constant 0 : index
    %c28 = arith.constant 28 : index
    %109 = memref.load %arg1[%c0_38, %c28] : memref<4x36xf32, #tpu.memory_space<smem>>
    %110 = vector.broadcast %109 : f32 to vector<4x128xf32>
    %111 = arith.mulf %110, %77 : vector<4x128xf32>
    %112 = arith.addf %108, %111 : vector<4x128xf32>
    %c0_39 = arith.constant 0 : index
    %c29 = arith.constant 29 : index
    %113 = memref.load %arg1[%c0_39, %c29] : memref<4x36xf32, #tpu.memory_space<smem>>
    %114 = vector.broadcast %113 : f32 to vector<4x128xf32>
    %115 = arith.mulf %114, %91 : vector<4x128xf32>
    %116 = arith.addf %112, %115 : vector<4x128xf32>
    %c0_40 = arith.constant 0 : index
    %c34 = arith.constant 34 : index
    %117 = memref.load %arg1[%c0_40, %c34] : memref<4x36xf32, #tpu.memory_space<smem>>
    %118 = vector.broadcast %117 : f32 to vector<4x128xf32>
    %119 = arith.addf %116, %118 : vector<4x128xf32>
    %c0_41 = arith.constant 0 : index
    %c30 = arith.constant 30 : index
    %120 = memref.load %arg1[%c0_41, %c30] : memref<4x36xf32, #tpu.memory_space<smem>>
    %121 = vector.broadcast %120 : f32 to vector<4x128xf32>
    %122 = arith.mulf %121, %63 : vector<4x128xf32>
    %c0_42 = arith.constant 0 : index
    %c31 = arith.constant 31 : index
    %123 = memref.load %arg1[%c0_42, %c31] : memref<4x36xf32, #tpu.memory_space<smem>>
    %124 = vector.broadcast %123 : f32 to vector<4x128xf32>
    %125 = arith.mulf %124, %77 : vector<4x128xf32>
    %126 = arith.addf %122, %125 : vector<4x128xf32>
    %c0_43 = arith.constant 0 : index
    %c32 = arith.constant 32 : index
    %127 = memref.load %arg1[%c0_43, %c32] : memref<4x36xf32, #tpu.memory_space<smem>>
    %128 = vector.broadcast %127 : f32 to vector<4x128xf32>
    %129 = arith.mulf %128, %91 : vector<4x128xf32>
    %130 = arith.addf %126, %129 : vector<4x128xf32>
    %c0_44 = arith.constant 0 : index
    %c35 = arith.constant 35 : index
    %131 = memref.load %arg1[%c0_44, %c35] : memref<4x36xf32, #tpu.memory_space<smem>>
    %132 = vector.broadcast %131 : f32 to vector<4x128xf32>
    %133 = arith.addf %130, %132 : vector<4x128xf32>
    %cst = arith.constant -4.000000e+00 : f32
    %134 = vector.broadcast %cst : f32 to vector<4x128xf32>
    %135 = arith.subf %105, %134 : vector<4x128xf32>
    %cst_45 = arith.constant 1.000000e+00 : f32
    %136 = vector.broadcast %cst_45 : f32 to vector<4x128xf32>
    %137 = arith.divf %135, %136 : vector<4x128xf32>
    %138 = arith.fptosi %137 : vector<4x128xf32> to vector<4x128xi32>
    %cst_46 = arith.constant -4.000000e+00 : f32
    %139 = vector.broadcast %cst_46 : f32 to vector<4x128xf32>
    %140 = arith.subf %119, %139 : vector<4x128xf32>
    %cst_47 = arith.constant 1.000000e+00 : f32
    %141 = vector.broadcast %cst_47 : f32 to vector<4x128xf32>
    %142 = arith.divf %140, %141 : vector<4x128xf32>
    %143 = arith.fptosi %142 : vector<4x128xf32> to vector<4x128xi32>
    %cst_48 = arith.constant -2.000000e+00 : f32
    %144 = vector.broadcast %cst_48 : f32 to vector<4x128xf32>
    %145 = arith.subf %133, %144 : vector<4x128xf32>
    %cst_49 = arith.constant 4.000000e+00 : f32
    %146 = vector.broadcast %cst_49 : f32 to vector<4x128xf32>
    %147 = arith.divf %145, %146 : vector<4x128xf32>
    %148 = arith.fptosi %147 : vector<4x128xf32> to vector<4x128xi32>
    %c0_i32 = arith.constant 0 : i32
    %149 = vector.broadcast %c0_i32 : i32 to vector<4x128xi32>
    %150 = arith.cmpi sge, %138, %149 : vector<4x128xi32>
    %c8_i32 = arith.constant 8 : i32
    %151 = vector.broadcast %c8_i32 : i32 to vector<4x128xi32>
    %152 = arith.cmpi slt, %138, %151 : vector<4x128xi32>
    %153 = arith.andi %150, %152 : vector<4x128xi1>
    %c0_i32_50 = arith.constant 0 : i32
    %154 = vector.broadcast %c0_i32_50 : i32 to vector<4x128xi32>
    %155 = arith.cmpi sge, %143, %154 : vector<4x128xi32>
    %156 = arith.andi %153, %155 : vector<4x128xi1>
    %c8_i32_51 = arith.constant 8 : i32
    %157 = vector.broadcast %c8_i32_51 : i32 to vector<4x128xi32>
    %158 = arith.cmpi slt, %143, %157 : vector<4x128xi32>
    %159 = arith.andi %156, %158 : vector<4x128xi1>
    %c0_i32_52 = arith.constant 0 : i32
    %160 = vector.broadcast %c0_i32_52 : i32 to vector<4x128xi32>
    %161 = arith.cmpi sge, %148, %160 : vector<4x128xi32>
    %162 = arith.andi %159, %161 : vector<4x128xi1>
    %c1_i32 = arith.constant 1 : i32
    %163 = vector.broadcast %c1_i32 : i32 to vector<4x128xi32>
    %164 = arith.cmpi slt, %148, %163 : vector<4x128xi32>
    %165 = arith.andi %162, %164 : vector<4x128xi1>
    %c0_i32_53 = arith.constant 0 : i32
    %166 = vector.broadcast %c0_i32_53 : i32 to vector<4x128xi32>
    %167 = arith.addi %166, %148 : vector<4x128xi32>
    %c8_i32_54 = arith.constant 8 : i32
    %168 = vector.broadcast %c8_i32_54 : i32 to vector<4x128xi32>
    %169 = arith.muli %167, %168 : vector<4x128xi32>
    %170 = arith.addi %169, %138 : vector<4x128xi32>
    %c8_i32_55 = arith.constant 8 : i32
    %171 = vector.broadcast %c8_i32_55 : i32 to vector<4x128xi32>
    %172 = arith.muli %170, %171 : vector<4x128xi32>
    %173 = arith.addi %172, %143 : vector<4x128xi32>
    %c-1_i32 = arith.constant -1 : i32
    %174 = vector.broadcast %c-1_i32 : i32 to vector<4x128xi32>
    %175 = arith.select %165, %173, %174 : vector<4x128xi1>, vector<4x128xi32>
    %c0_56 = arith.constant 0 : index
    %c0_57 = arith.constant 0 : index
    %c0_58 = arith.constant 0 : index
    %176 = vector.load %arg3[%c0_56, %c0_57, %c0_58] : memref<4x4x128xi32, #tpu.memory_space<vmem>>, vector<1x4x128xi32>
    %177 = vector.shape_cast %176 : vector<1x4x128xi32> to vector<4x128xi32>
    %178 = vector.shape_cast %175 : vector<4x128xi32> to vector<1x4x128xi32>
    tpu.vector_store %arg3[%c0_56, %c0_57, %c0_58], %178 {strides = array<i32>} : memref<4x4x128xi32, #tpu.memory_space<vmem>>, vector<1x4x128xi32>,
    %c1_59 = arith.constant 1 : index
    %c9_60 = arith.constant 9 : index
    %179 = memref.load %arg1[%c1_59, %c9_60] : memref<4x36xf32, #tpu.memory_space<smem>>
    %180 = vector.broadcast %179 : f32 to vector<4x128xf32>
    %181 = arith.subf %1, %180 : vector<4x128xf32>
    %c1_61 = arith.constant 1 : index
    %c10_62 = arith.constant 10 : index
    %182 = memref.load %arg1[%c1_61, %c10_62] : memref<4x36xf32, #tpu.memory_space<smem>>
    %183 = vector.broadcast %182 : f32 to vector<4x128xf32>
    %184 = arith.subf %3, %183 : vector<4x128xf32>
    %c1_63 = arith.constant 1 : index
    %c11_64 = arith.constant 11 : index
    %185 = memref.load %arg1[%c1_63, %c11_64] : memref<4x36xf32, #tpu.memory_space<smem>>
    %186 = vector.broadcast %185 : f32 to vector<4x128xf32>
    %187 = arith.subf %5, %186 : vector<4x128xf32>
    %c1_65 = arith.constant 1 : index
    %c0_66 = arith.constant 0 : index
    %188 = memref.load %arg1[%c1_65, %c0_66] : memref<4x36xf32, #tpu.memory_space<smem>>
    %189 = vector.broadcast %188 : f32 to vector<4x128xf32>
    %190 = arith.mulf %189, %181 : vector<4x128xf32>
    %c1_67 = arith.constant 1 : index
    %c1_68 = arith.constant 1 : index
    %191 = memref.load %arg1[%c1_67, %c1_68] : memref<4x36xf32, #tpu.memory_space<smem>>
    %192 = vector.broadcast %191 : f32 to vector<4x128xf32>
    %193 = arith.mulf %192, %184 : vector<4x128xf32>
    %194 = arith.addf %190, %193 : vector<4x128xf32>
    %c1_69 = arith.constant 1 : index
    %c2_70 = arith.constant 2 : index
    %195 = memref.load %arg1[%c1_69, %c2_70] : memref<4x36xf32, #tpu.memory_space<smem>>
    %196 = vector.broadcast %195 : f32 to vector<4x128xf32>
    %197 = arith.mulf %196, %187 : vector<4x128xf32>
    %198 = arith.addf %194, %197 : vector<4x128xf32>
    %c1_71 = arith.constant 1 : index
    %c3_72 = arith.constant 3 : index
    %199 = memref.load %arg1[%c1_71, %c3_72] : memref<4x36xf32, #tpu.memory_space<smem>>
    %200 = vector.broadcast %199 : f32 to vector<4x128xf32>
    %201 = arith.mulf %200, %181 : vector<4x128xf32>
    %c1_73 = arith.constant 1 : index
    %c4_74 = arith.constant 4 : index
    %202 = memref.load %arg1[%c1_73, %c4_74] : memref<4x36xf32, #tpu.memory_space<smem>>
    %203 = vector.broadcast %202 : f32 to vector<4x128xf32>
    %204 = arith.mulf %203, %184 : vector<4x128xf32>
    %205 = arith.addf %201, %204 : vector<4x128xf32>
    %c1_75 = arith.constant 1 : index
    %c5_76 = arith.constant 5 : index
    %206 = memref.load %arg1[%c1_75, %c5_76] : memref<4x36xf32, #tpu.memory_space<smem>>
    %207 = vector.broadcast %206 : f32 to vector<4x128xf32>
    %208 = arith.mulf %207, %187 : vector<4x128xf32>
    %209 = arith.addf %205, %208 : vector<4x128xf32>
    %c1_77 = arith.constant 1 : index
    %c6_78 = arith.constant 6 : index
    %210 = memref.load %arg1[%c1_77, %c6_78] : memref<4x36xf32, #tpu.memory_space<smem>>
    %211 = vector.broadcast %210 : f32 to vector<4x128xf32>
    %212 = arith.mulf %211, %181 : vector<4x128xf32>
    %c1_79 = arith.constant 1 : index
    %c7_80 = arith.constant 7 : index
    %213 = memref.load %arg1[%c1_79, %c7_80] : memref<4x36xf32, #tpu.memory_space<smem>>
    %214 = vector.broadcast %213 : f32 to vector<4x128xf32>
    %215 = arith.mulf %214, %184 : vector<4x128xf32>
    %216 = arith.addf %212, %215 : vector<4x128xf32>
    %c1_81 = arith.constant 1 : index
    %c8_82 = arith.constant 8 : index
    %217 = memref.load %arg1[%c1_81, %c8_82] : memref<4x36xf32, #tpu.memory_space<smem>>
    %218 = vector.broadcast %217 : f32 to vector<4x128xf32>
    %219 = arith.mulf %218, %187 : vector<4x128xf32>
    %220 = arith.addf %216, %219 : vector<4x128xf32>
    %221 = arith.mulf %198, %220 : vector<4x128xf32>
    %222 = arith.mulf %209, %220 : vector<4x128xf32>
    %c1_83 = arith.constant 1 : index
    %c12_84 = arith.constant 12 : index
    %223 = memref.load %arg1[%c1_83, %c12_84] : memref<4x36xf32, #tpu.memory_space<smem>>
    %224 = vector.broadcast %223 : f32 to vector<4x128xf32>
    %225 = arith.mulf %224, %221 : vector<4x128xf32>
    %c1_85 = arith.constant 1 : index
    %c13_86 = arith.constant 13 : index
    %226 = memref.load %arg1[%c1_85, %c13_86] : memref<4x36xf32, #tpu.memory_space<smem>>
    %227 = vector.broadcast %226 : f32 to vector<4x128xf32>
    %228 = arith.mulf %227, %222 : vector<4x128xf32>
    %229 = arith.addf %225, %228 : vector<4x128xf32>
    %c1_87 = arith.constant 1 : index
    %c14_88 = arith.constant 14 : index
    %230 = memref.load %arg1[%c1_87, %c14_88] : memref<4x36xf32, #tpu.memory_space<smem>>
    %231 = vector.broadcast %230 : f32 to vector<4x128xf32>
    %232 = arith.mulf %231, %220 : vector<4x128xf32>
    %233 = arith.addf %229, %232 : vector<4x128xf32>
    %c1_89 = arith.constant 1 : index
    %c21_90 = arith.constant 21 : index
    %234 = memref.load %arg1[%c1_89, %c21_90] : memref<4x36xf32, #tpu.memory_space<smem>>
    %235 = vector.broadcast %234 : f32 to vector<4x128xf32>
    %236 = arith.addf %233, %235 : vector<4x128xf32>
    %c1_91 = arith.constant 1 : index
    %c15_92 = arith.constant 15 : index
    %237 = memref.load %arg1[%c1_91, %c15_92] : memref<4x36xf32, #tpu.memory_space<smem>>
    %238 = vector.broadcast %237 : f32 to vector<4x128xf32>
    %239 = arith.mulf %238, %221 : vector<4x128xf32>
    %c1_93 = arith.constant 1 : index
    %c16_94 = arith.constant 16 : index
    %240 = memref.load %arg1[%c1_93, %c16_94] : memref<4x36xf32, #tpu.memory_space<smem>>
    %241 = vector.broadcast %240 : f32 to vector<4x128xf32>
    %242 = arith.mulf %241, %222 : vector<4x128xf32>
    %243 = arith.addf %239, %242 : vector<4x128xf32>
    %c1_95 = arith.constant 1 : index
    %c17_96 = arith.constant 17 : index
    %244 = memref.load %arg1[%c1_95, %c17_96] : memref<4x36xf32, #tpu.memory_space<smem>>
    %245 = vector.broadcast %244 : f32 to vector<4x128xf32>
    %246 = arith.mulf %245, %220 : vector<4x128xf32>
    %247 = arith.addf %243, %246 : vector<4x128xf32>
    %c1_97 = arith.constant 1 : index
    %c22_98 = arith.constant 22 : index
    %248 = memref.load %arg1[%c1_97, %c22_98] : memref<4x36xf32, #tpu.memory_space<smem>>
    %249 = vector.broadcast %248 : f32 to vector<4x128xf32>
    %250 = arith.addf %247, %249 : vector<4x128xf32>
    %c1_99 = arith.constant 1 : index
    %c18_100 = arith.constant 18 : index
    %251 = memref.load %arg1[%c1_99, %c18_100] : memref<4x36xf32, #tpu.memory_space<smem>>
    %252 = vector.broadcast %251 : f32 to vector<4x128xf32>
    %253 = arith.mulf %252, %221 : vector<4x128xf32>
    %c1_101 = arith.constant 1 : index
    %c19_102 = arith.constant 19 : index
    %254 = memref.load %arg1[%c1_101, %c19_102] : memref<4x36xf32, #tpu.memory_space<smem>>
    %255 = vector.broadcast %254 : f32 to vector<4x128xf32>
    %256 = arith.mulf %255, %222 : vector<4x128xf32>
    %257 = arith.addf %253, %256 : vector<4x128xf32>
    %c1_103 = arith.constant 1 : index
    %c20_104 = arith.constant 20 : index
    %258 = memref.load %arg1[%c1_103, %c20_104] : memref<4x36xf32, #tpu.memory_space<smem>>
    %259 = vector.broadcast %258 : f32 to vector<4x128xf32>
    %260 = arith.mulf %259, %220 : vector<4x128xf32>
    %261 = arith.addf %257, %260 : vector<4x128xf32>
    %c1_105 = arith.constant 1 : index
    %c23_106 = arith.constant 23 : index
    %262 = memref.load %arg1[%c1_105, %c23_106] : memref<4x36xf32, #tpu.memory_space<smem>>
    %263 = vector.broadcast %262 : f32 to vector<4x128xf32>
    %264 = arith.addf %261, %263 : vector<4x128xf32>
    %c1_107 = arith.constant 1 : index
    %c24_108 = arith.constant 24 : index
    %265 = memref.load %arg1[%c1_107, %c24_108] : memref<4x36xf32, #tpu.memory_space<smem>>
    %266 = vector.broadcast %265 : f32 to vector<4x128xf32>
    %267 = arith.mulf %266, %236 : vector<4x128xf32>
    %c1_109 = arith.constant 1 : index
    %c25_110 = arith.constant 25 : index
    %268 = memref.load %arg1[%c1_109, %c25_110] : memref<4x36xf32, #tpu.memory_space<smem>>
    %269 = vector.broadcast %268 : f32 to vector<4x128xf32>
    %270 = arith.mulf %269, %250 : vector<4x128xf32>
    %271 = arith.addf %267, %270 : vector<4x128xf32>
    %c1_111 = arith.constant 1 : index
    %c26_112 = arith.constant 26 : index
    %272 = memref.load %arg1[%c1_111, %c26_112] : memref<4x36xf32, #tpu.memory_space<smem>>
    %273 = vector.broadcast %272 : f32 to vector<4x128xf32>
    %274 = arith.mulf %273, %264 : vector<4x128xf32>
    %275 = arith.addf %271, %274 : vector<4x128xf32>
    %c1_113 = arith.constant 1 : index
    %c33_114 = arith.constant 33 : index
    %276 = memref.load %arg1[%c1_113, %c33_114] : memref<4x36xf32, #tpu.memory_space<smem>>
    %277 = vector.broadcast %276 : f32 to vector<4x128xf32>
    %278 = arith.addf %275, %277 : vector<4x128xf32>
    %c1_115 = arith.constant 1 : index
    %c27_116 = arith.constant 27 : index
    %279 = memref.load %arg1[%c1_115, %c27_116] : memref<4x36xf32, #tpu.memory_space<smem>>
    %280 = vector.broadcast %279 : f32 to vector<4x128xf32>
    %281 = arith.mulf %280, %236 : vector<4x128xf32>
    %c1_117 = arith.constant 1 : index
    %c28_118 = arith.constant 28 : index
    %282 = memref.load %arg1[%c1_117, %c28_118] : memref<4x36xf32, #tpu.memory_space<smem>>
    %283 = vector.broadcast %282 : f32 to vector<4x128xf32>
    %284 = arith.mulf %283, %250 : vector<4x128xf32>
    %285 = arith.addf %281, %284 : vector<4x128xf32>
    %c1_119 = arith.constant 1 : index
    %c29_120 = arith.constant 29 : index
    %286 = memref.load %arg1[%c1_119, %c29_120] : memref<4x36xf32, #tpu.memory_space<smem>>
    %287 = vector.broadcast %286 : f32 to vector<4x128xf32>
    %288 = arith.mulf %287, %264 : vector<4x128xf32>
    %289 = arith.addf %285, %288 : vector<4x128xf32>
    %c1_121 = arith.constant 1 : index
    %c34_122 = arith.constant 34 : index
    %290 = memref.load %arg1[%c1_121, %c34_122] : memref<4x36xf32, #tpu.memory_space<smem>>
    %291 = vector.broadcast %290 : f32 to vector<4x128xf32>
    %292 = arith.addf %289, %291 : vector<4x128xf32>
    %c1_123 = arith.constant 1 : index
    %c30_124 = arith.constant 30 : index
    %293 = memref.load %arg1[%c1_123, %c30_124] : memref<4x36xf32, #tpu.memory_space<smem>>
    %294 = vector.broadcast %293 : f32 to vector<4x128xf32>
    %295 = arith.mulf %294, %236 : vector<4x128xf32>
    %c1_125 = arith.constant 1 : index
    %c31_126 = arith.constant 31 : index
    %296 = memref.load %arg1[%c1_125, %c31_126] : memref<4x36xf32, #tpu.memory_space<smem>>
    %297 = vector.broadcast %296 : f32 to vector<4x128xf32>
    %298 = arith.mulf %297, %250 : vector<4x128xf32>
    %299 = arith.addf %295, %298 : vector<4x128xf32>
    %c1_127 = arith.constant 1 : index
    %c32_128 = arith.constant 32 : index
    %300 = memref.load %arg1[%c1_127, %c32_128] : memref<4x36xf32, #tpu.memory_space<smem>>
    %301 = vector.broadcast %300 : f32 to vector<4x128xf32>
    %302 = arith.mulf %301, %264 : vector<4x128xf32>
    %303 = arith.addf %299, %302 : vector<4x128xf32>
    %c1_129 = arith.constant 1 : index
    %c35_130 = arith.constant 35 : index
    %304 = memref.load %arg1[%c1_129, %c35_130] : memref<4x36xf32, #tpu.memory_space<smem>>
    %305 = vector.broadcast %304 : f32 to vector<4x128xf32>
    %306 = arith.addf %303, %305 : vector<4x128xf32>
    %cst_131 = arith.constant -4.000000e+00 : f32
    %307 = vector.broadcast %cst_131 : f32 to vector<4x128xf32>
    %308 = arith.subf %278, %307 : vector<4x128xf32>
    %cst_132 = arith.constant 1.000000e+00 : f32
    %309 = vector.broadcast %cst_132 : f32 to vector<4x128xf32>
    %310 = arith.divf %308, %309 : vector<4x128xf32>
    %311 = arith.fptosi %310 : vector<4x128xf32> to vector<4x128xi32>
    %cst_133 = arith.constant -4.000000e+00 : f32
    %312 = vector.broadcast %cst_133 : f32 to vector<4x128xf32>
    %313 = arith.subf %292, %312 : vector<4x128xf32>
    %cst_134 = arith.constant 1.000000e+00 : f32
    %314 = vector.broadcast %cst_134 : f32 to vector<4x128xf32>
    %315 = arith.divf %313, %314 : vector<4x128xf32>
    %316 = arith.fptosi %315 : vector<4x128xf32> to vector<4x128xi32>
    %cst_135 = arith.constant -2.000000e+00 : f32
    %317 = vector.broadcast %cst_135 : f32 to vector<4x128xf32>
    %318 = arith.subf %306, %317 : vector<4x128xf32>
    %cst_136 = arith.constant 4.000000e+00 : f32
    %319 = vector.broadcast %cst_136 : f32 to vector<4x128xf32>
    %320 = arith.divf %318, %319 : vector<4x128xf32>
    %321 = arith.fptosi %320 : vector<4x128xf32> to vector<4x128xi32>
    %c0_i32_137 = arith.constant 0 : i32
    %322 = vector.broadcast %c0_i32_137 : i32 to vector<4x128xi32>
    %323 = arith.cmpi sge, %311, %322 : vector<4x128xi32>
    %c8_i32_138 = arith.constant 8 : i32
    %324 = vector.broadcast %c8_i32_138 : i32 to vector<4x128xi32>
    %325 = arith.cmpi slt, %311, %324 : vector<4x128xi32>
    %326 = arith.andi %323, %325 : vector<4x128xi1>
    %c0_i32_139 = arith.constant 0 : i32
    %327 = vector.broadcast %c0_i32_139 : i32 to vector<4x128xi32>
    %328 = arith.cmpi sge, %316, %327 : vector<4x128xi32>
    %329 = arith.andi %326, %328 : vector<4x128xi1>
    %c8_i32_140 = arith.constant 8 : i32
    %330 = vector.broadcast %c8_i32_140 : i32 to vector<4x128xi32>
    %331 = arith.cmpi slt, %316, %330 : vector<4x128xi32>
    %332 = arith.andi %329, %331 : vector<4x128xi1>
    %c0_i32_141 = arith.constant 0 : i32
    %333 = vector.broadcast %c0_i32_141 : i32 to vector<4x128xi32>
    %334 = arith.cmpi sge, %321, %333 : vector<4x128xi32>
    %335 = arith.andi %332, %334 : vector<4x128xi1>
    %c1_i32_142 = arith.constant 1 : i32
    %336 = vector.broadcast %c1_i32_142 : i32 to vector<4x128xi32>
    %337 = arith.cmpi slt, %321, %336 : vector<4x128xi32>
    %338 = arith.andi %335, %337 : vector<4x128xi1>
    %c0_i32_143 = arith.constant 0 : i32
    %339 = vector.broadcast %c0_i32_143 : i32 to vector<4x128xi32>
    %340 = arith.addi %339, %321 : vector<4x128xi32>
    %c8_i32_144 = arith.constant 8 : i32
    %341 = vector.broadcast %c8_i32_144 : i32 to vector<4x128xi32>
    %342 = arith.muli %340, %341 : vector<4x128xi32>
    %343 = arith.addi %342, %311 : vector<4x128xi32>
    %c8_i32_145 = arith.constant 8 : i32
    %344 = vector.broadcast %c8_i32_145 : i32 to vector<4x128xi32>
    %345 = arith.muli %343, %344 : vector<4x128xi32>
    %346 = arith.addi %345, %316 : vector<4x128xi32>
    %c-1_i32_146 = arith.constant -1 : i32
    %347 = vector.broadcast %c-1_i32_146 : i32 to vector<4x128xi32>
    %348 = arith.select %338, %346, %347 : vector<4x128xi1>, vector<4x128xi32>
    %c1_147 = arith.constant 1 : index
    %c0_148 = arith.constant 0 : index
    %c0_149 = arith.constant 0 : index
    %349 = vector.load %arg3[%c1_147, %c0_148, %c0_149] : memref<4x4x128xi32, #tpu.memory_space<vmem>>, vector<1x4x128xi32>
    %350 = vector.shape_cast %349 : vector<1x4x128xi32> to vector<4x128xi32>
    %351 = vector.shape_cast %348 : vector<4x128xi32> to vector<1x4x128xi32>
    tpu.vector_store %arg3[%c1_147, %c0_148, %c0_149], %351 {strides = array<i32>} : memref<4x4x128xi32, #tpu.memory_space<vmem>>, vector<1x4x128xi32>,
    %c2_150 = arith.constant 2 : index
    %c9_151 = arith.constant 9 : index
    %352 = memref.load %arg1[%c2_150, %c9_151] : memref<4x36xf32, #tpu.memory_space<smem>>
    %353 = vector.broadcast %352 : f32 to vector<4x128xf32>
    %354 = arith.subf %1, %353 : vector<4x128xf32>
    %c2_152 = arith.constant 2 : index
    %c10_153 = arith.constant 10 : index
    %355 = memref.load %arg1[%c2_152, %c10_153] : memref<4x36xf32, #tpu.memory_space<smem>>
    %356 = vector.broadcast %355 : f32 to vector<4x128xf32>
    %357 = arith.subf %3, %356 : vector<4x128xf32>
    %c2_154 = arith.constant 2 : index
    %c11_155 = arith.constant 11 : index
    %358 = memref.load %arg1[%c2_154, %c11_155] : memref<4x36xf32, #tpu.memory_space<smem>>
    %359 = vector.broadcast %358 : f32 to vector<4x128xf32>
    %360 = arith.subf %5, %359 : vector<4x128xf32>
    %c2_156 = arith.constant 2 : index
    %c0_157 = arith.constant 0 : index
    %361 = memref.load %arg1[%c2_156, %c0_157] : memref<4x36xf32, #tpu.memory_space<smem>>
    %362 = vector.broadcast %361 : f32 to vector<4x128xf32>
    %363 = arith.mulf %362, %354 : vector<4x128xf32>
    %c2_158 = arith.constant 2 : index
    %c1_159 = arith.constant 1 : index
    %364 = memref.load %arg1[%c2_158, %c1_159] : memref<4x36xf32, #tpu.memory_space<smem>>
    %365 = vector.broadcast %364 : f32 to vector<4x128xf32>
    %366 = arith.mulf %365, %357 : vector<4x128xf32>
    %367 = arith.addf %363, %366 : vector<4x128xf32>
    %c2_160 = arith.constant 2 : index
    %c2_161 = arith.constant 2 : index
    %368 = memref.load %arg1[%c2_160, %c2_161] : memref<4x36xf32, #tpu.memory_space<smem>>
    %369 = vector.broadcast %368 : f32 to vector<4x128xf32>
    %370 = arith.mulf %369, %360 : vector<4x128xf32>
    %371 = arith.addf %367, %370 : vector<4x128xf32>
    %c2_162 = arith.constant 2 : index
    %c3_163 = arith.constant 3 : index
    %372 = memref.load %arg1[%c2_162, %c3_163] : memref<4x36xf32, #tpu.memory_space<smem>>
    %373 = vector.broadcast %372 : f32 to vector<4x128xf32>
    %374 = arith.mulf %373, %354 : vector<4x128xf32>
    %c2_164 = arith.constant 2 : index
    %c4_165 = arith.constant 4 : index
    %375 = memref.load %arg1[%c2_164, %c4_165] : memref<4x36xf32, #tpu.memory_space<smem>>
    %376 = vector.broadcast %375 : f32 to vector<4x128xf32>
    %377 = arith.mulf %376, %357 : vector<4x128xf32>
    %378 = arith.addf %374, %377 : vector<4x128xf32>
    %c2_166 = arith.constant 2 : index
    %c5_167 = arith.constant 5 : index
    %379 = memref.load %arg1[%c2_166, %c5_167] : memref<4x36xf32, #tpu.memory_space<smem>>
    %380 = vector.broadcast %379 : f32 to vector<4x128xf32>
    %381 = arith.mulf %380, %360 : vector<4x128xf32>
    %382 = arith.addf %378, %381 : vector<4x128xf32>
    %c2_168 = arith.constant 2 : index
    %c6_169 = arith.constant 6 : index
    %383 = memref.load %arg1[%c2_168, %c6_169] : memref<4x36xf32, #tpu.memory_space<smem>>
    %384 = vector.broadcast %383 : f32 to vector<4x128xf32>
    %385 = arith.mulf %384, %354 : vector<4x128xf32>
    %c2_170 = arith.constant 2 : index
    %c7_171 = arith.constant 7 : index
    %386 = memref.load %arg1[%c2_170, %c7_171] : memref<4x36xf32, #tpu.memory_space<smem>>
    %387 = vector.broadcast %386 : f32 to vector<4x128xf32>
    %388 = arith.mulf %387, %357 : vector<4x128xf32>
    %389 = arith.addf %385, %388 : vector<4x128xf32>
    %c2_172 = arith.constant 2 : index
    %c8_173 = arith.constant 8 : index
    %390 = memref.load %arg1[%c2_172, %c8_173] : memref<4x36xf32, #tpu.memory_space<smem>>
    %391 = vector.broadcast %390 : f32 to vector<4x128xf32>
    %392 = arith.mulf %391, %360 : vector<4x128xf32>
    %393 = arith.addf %389, %392 : vector<4x128xf32>
    %394 = arith.mulf %371, %393 : vector<4x128xf32>
    %395 = arith.mulf %382, %393 : vector<4x128xf32>
    %c2_174 = arith.constant 2 : index
    %c12_175 = arith.constant 12 : index
    %396 = memref.load %arg1[%c2_174, %c12_175] : memref<4x36xf32, #tpu.memory_space<smem>>
    %397 = vector.broadcast %396 : f32 to vector<4x128xf32>
    %398 = arith.mulf %397, %394 : vector<4x128xf32>
    %c2_176 = arith.constant 2 : index
    %c13_177 = arith.constant 13 : index
    %399 = memref.load %arg1[%c2_176, %c13_177] : memref<4x36xf32, #tpu.memory_space<smem>>
    %400 = vector.broadcast %399 : f32 to vector<4x128xf32>
    %401 = arith.mulf %400, %395 : vector<4x128xf32>
    %402 = arith.addf %398, %401 : vector<4x128xf32>
    %c2_178 = arith.constant 2 : index
    %c14_179 = arith.constant 14 : index
    %403 = memref.load %arg1[%c2_178, %c14_179] : memref<4x36xf32, #tpu.memory_space<smem>>
    %404 = vector.broadcast %403 : f32 to vector<4x128xf32>
    %405 = arith.mulf %404, %393 : vector<4x128xf32>
    %406 = arith.addf %402, %405 : vector<4x128xf32>
    %c2_180 = arith.constant 2 : index
    %c21_181 = arith.constant 21 : index
    %407 = memref.load %arg1[%c2_180, %c21_181] : memref<4x36xf32, #tpu.memory_space<smem>>
    %408 = vector.broadcast %407 : f32 to vector<4x128xf32>
    %409 = arith.addf %406, %408 : vector<4x128xf32>
    %c2_182 = arith.constant 2 : index
    %c15_183 = arith.constant 15 : index
    %410 = memref.load %arg1[%c2_182, %c15_183] : memref<4x36xf32, #tpu.memory_space<smem>>
    %411 = vector.broadcast %410 : f32 to vector<4x128xf32>
    %412 = arith.mulf %411, %394 : vector<4x128xf32>
    %c2_184 = arith.constant 2 : index
    %c16_185 = arith.constant 16 : index
    %413 = memref.load %arg1[%c2_184, %c16_185] : memref<4x36xf32, #tpu.memory_space<smem>>
    %414 = vector.broadcast %413 : f32 to vector<4x128xf32>
    %415 = arith.mulf %414, %395 : vector<4x128xf32>
    %416 = arith.addf %412, %415 : vector<4x128xf32>
    %c2_186 = arith.constant 2 : index
    %c17_187 = arith.constant 17 : index
    %417 = memref.load %arg1[%c2_186, %c17_187] : memref<4x36xf32, #tpu.memory_space<smem>>
    %418 = vector.broadcast %417 : f32 to vector<4x128xf32>
    %419 = arith.mulf %418, %393 : vector<4x128xf32>
    %420 = arith.addf %416, %419 : vector<4x128xf32>
    %c2_188 = arith.constant 2 : index
    %c22_189 = arith.constant 22 : index
    %421 = memref.load %arg1[%c2_188, %c22_189] : memref<4x36xf32, #tpu.memory_space<smem>>
    %422 = vector.broadcast %421 : f32 to vector<4x128xf32>
    %423 = arith.addf %420, %422 : vector<4x128xf32>
    %c2_190 = arith.constant 2 : index
    %c18_191 = arith.constant 18 : index
    %424 = memref.load %arg1[%c2_190, %c18_191] : memref<4x36xf32, #tpu.memory_space<smem>>
    %425 = vector.broadcast %424 : f32 to vector<4x128xf32>
    %426 = arith.mulf %425, %394 : vector<4x128xf32>
    %c2_192 = arith.constant 2 : index
    %c19_193 = arith.constant 19 : index
    %427 = memref.load %arg1[%c2_192, %c19_193] : memref<4x36xf32, #tpu.memory_space<smem>>
    %428 = vector.broadcast %427 : f32 to vector<4x128xf32>
    %429 = arith.mulf %428, %395 : vector<4x128xf32>
    %430 = arith.addf %426, %429 : vector<4x128xf32>
    %c2_194 = arith.constant 2 : index
    %c20_195 = arith.constant 20 : index
    %431 = memref.load %arg1[%c2_194, %c20_195] : memref<4x36xf32, #tpu.memory_space<smem>>
    %432 = vector.broadcast %431 : f32 to vector<4x128xf32>
    %433 = arith.mulf %432, %393 : vector<4x128xf32>
    %434 = arith.addf %430, %433 : vector<4x128xf32>
    %c2_196 = arith.constant 2 : index
    %c23_197 = arith.constant 23 : index
    %435 = memref.load %arg1[%c2_196, %c23_197] : memref<4x36xf32, #tpu.memory_space<smem>>
    %436 = vector.broadcast %435 : f32 to vector<4x128xf32>
    %437 = arith.addf %434, %436 : vector<4x128xf32>
    %c2_198 = arith.constant 2 : index
    %c24_199 = arith.constant 24 : index
    %438 = memref.load %arg1[%c2_198, %c24_199] : memref<4x36xf32, #tpu.memory_space<smem>>
    %439 = vector.broadcast %438 : f32 to vector<4x128xf32>
    %440 = arith.mulf %439, %409 : vector<4x128xf32>
    %c2_200 = arith.constant 2 : index
    %c25_201 = arith.constant 25 : index
    %441 = memref.load %arg1[%c2_200, %c25_201] : memref<4x36xf32, #tpu.memory_space<smem>>
    %442 = vector.broadcast %441 : f32 to vector<4x128xf32>
    %443 = arith.mulf %442, %423 : vector<4x128xf32>
    %444 = arith.addf %440, %443 : vector<4x128xf32>
    %c2_202 = arith.constant 2 : index
    %c26_203 = arith.constant 26 : index
    %445 = memref.load %arg1[%c2_202, %c26_203] : memref<4x36xf32, #tpu.memory_space<smem>>
    %446 = vector.broadcast %445 : f32 to vector<4x128xf32>
    %447 = arith.mulf %446, %437 : vector<4x128xf32>
    %448 = arith.addf %444, %447 : vector<4x128xf32>
    %c2_204 = arith.constant 2 : index
    %c33_205 = arith.constant 33 : index
    %449 = memref.load %arg1[%c2_204, %c33_205] : memref<4x36xf32, #tpu.memory_space<smem>>
    %450 = vector.broadcast %449 : f32 to vector<4x128xf32>
    %451 = arith.addf %448, %450 : vector<4x128xf32>
    %c2_206 = arith.constant 2 : index
    %c27_207 = arith.constant 27 : index
    %452 = memref.load %arg1[%c2_206, %c27_207] : memref<4x36xf32, #tpu.memory_space<smem>>
    %453 = vector.broadcast %452 : f32 to vector<4x128xf32>
    %454 = arith.mulf %453, %409 : vector<4x128xf32>
    %c2_208 = arith.constant 2 : index
    %c28_209 = arith.constant 28 : index
    %455 = memref.load %arg1[%c2_208, %c28_209] : memref<4x36xf32, #tpu.memory_space<smem>>
    %456 = vector.broadcast %455 : f32 to vector<4x128xf32>
    %457 = arith.mulf %456, %423 : vector<4x128xf32>
    %458 = arith.addf %454, %457 : vector<4x128xf32>
    %c2_210 = arith.constant 2 : index
    %c29_211 = arith.constant 29 : index
    %459 = memref.load %arg1[%c2_210, %c29_211] : memref<4x36xf32, #tpu.memory_space<smem>>
    %460 = vector.broadcast %459 : f32 to vector<4x128xf32>
    %461 = arith.mulf %460, %437 : vector<4x128xf32>
    %462 = arith.addf %458, %461 : vector<4x128xf32>
    %c2_212 = arith.constant 2 : index
    %c34_213 = arith.constant 34 : index
    %463 = memref.load %arg1[%c2_212, %c34_213] : memref<4x36xf32, #tpu.memory_space<smem>>
    %464 = vector.broadcast %463 : f32 to vector<4x128xf32>
    %465 = arith.addf %462, %464 : vector<4x128xf32>
    %c2_214 = arith.constant 2 : index
    %c30_215 = arith.constant 30 : index
    %466 = memref.load %arg1[%c2_214, %c30_215] : memref<4x36xf32, #tpu.memory_space<smem>>
    %467 = vector.broadcast %466 : f32 to vector<4x128xf32>
    %468 = arith.mulf %467, %409 : vector<4x128xf32>
    %c2_216 = arith.constant 2 : index
    %c31_217 = arith.constant 31 : index
    %469 = memref.load %arg1[%c2_216, %c31_217] : memref<4x36xf32, #tpu.memory_space<smem>>
    %470 = vector.broadcast %469 : f32 to vector<4x128xf32>
    %471 = arith.mulf %470, %423 : vector<4x128xf32>
    %472 = arith.addf %468, %471 : vector<4x128xf32>
    %c2_218 = arith.constant 2 : index
    %c32_219 = arith.constant 32 : index
    %473 = memref.load %arg1[%c2_218, %c32_219] : memref<4x36xf32, #tpu.memory_space<smem>>
    %474 = vector.broadcast %473 : f32 to vector<4x128xf32>
    %475 = arith.mulf %474, %437 : vector<4x128xf32>
    %476 = arith.addf %472, %475 : vector<4x128xf32>
    %c2_220 = arith.constant 2 : index
    %c35_221 = arith.constant 35 : index
    %477 = memref.load %arg1[%c2_220, %c35_221] : memref<4x36xf32, #tpu.memory_space<smem>>
    %478 = vector.broadcast %477 : f32 to vector<4x128xf32>
    %479 = arith.addf %476, %478 : vector<4x128xf32>
    %cst_222 = arith.constant -4.000000e+00 : f32
    %480 = vector.broadcast %cst_222 : f32 to vector<4x128xf32>
    %481 = arith.subf %451, %480 : vector<4x128xf32>
    %cst_223 = arith.constant 1.000000e+00 : f32
    %482 = vector.broadcast %cst_223 : f32 to vector<4x128xf32>
    %483 = arith.divf %481, %482 : vector<4x128xf32>
    %484 = arith.fptosi %483 : vector<4x128xf32> to vector<4x128xi32>
    %cst_224 = arith.constant -4.000000e+00 : f32
    %485 = vector.broadcast %cst_224 : f32 to vector<4x128xf32>
    %486 = arith.subf %465, %485 : vector<4x128xf32>
    %cst_225 = arith.constant 1.000000e+00 : f32
    %487 = vector.broadcast %cst_225 : f32 to vector<4x128xf32>
    %488 = arith.divf %486, %487 : vector<4x128xf32>
    %489 = arith.fptosi %488 : vector<4x128xf32> to vector<4x128xi32>
    %cst_226 = arith.constant -2.000000e+00 : f32
    %490 = vector.broadcast %cst_226 : f32 to vector<4x128xf32>
    %491 = arith.subf %479, %490 : vector<4x128xf32>
    %cst_227 = arith.constant 4.000000e+00 : f32
    %492 = vector.broadcast %cst_227 : f32 to vector<4x128xf32>
    %493 = arith.divf %491, %492 : vector<4x128xf32>
    %494 = arith.fptosi %493 : vector<4x128xf32> to vector<4x128xi32>
    %c0_i32_228 = arith.constant 0 : i32
    %495 = vector.broadcast %c0_i32_228 : i32 to vector<4x128xi32>
    %496 = arith.cmpi sge, %484, %495 : vector<4x128xi32>
    %c8_i32_229 = arith.constant 8 : i32
    %497 = vector.broadcast %c8_i32_229 : i32 to vector<4x128xi32>
    %498 = arith.cmpi slt, %484, %497 : vector<4x128xi32>
    %499 = arith.andi %496, %498 : vector<4x128xi1>
    %c0_i32_230 = arith.constant 0 : i32
    %500 = vector.broadcast %c0_i32_230 : i32 to vector<4x128xi32>
    %501 = arith.cmpi sge, %489, %500 : vector<4x128xi32>
    %502 = arith.andi %499, %501 : vector<4x128xi1>
    %c8_i32_231 = arith.constant 8 : i32
    %503 = vector.broadcast %c8_i32_231 : i32 to vector<4x128xi32>
    %504 = arith.cmpi slt, %489, %503 : vector<4x128xi32>
    %505 = arith.andi %502, %504 : vector<4x128xi1>
    %c0_i32_232 = arith.constant 0 : i32
    %506 = vector.broadcast %c0_i32_232 : i32 to vector<4x128xi32>
    %507 = arith.cmpi sge, %494, %506 : vector<4x128xi32>
    %508 = arith.andi %505, %507 : vector<4x128xi1>
    %c1_i32_233 = arith.constant 1 : i32
    %509 = vector.broadcast %c1_i32_233 : i32 to vector<4x128xi32>
    %510 = arith.cmpi slt, %494, %509 : vector<4x128xi32>
    %511 = arith.andi %508, %510 : vector<4x128xi1>
    %c1_i32_234 = arith.constant 1 : i32
    %512 = vector.broadcast %c1_i32_234 : i32 to vector<4x128xi32>
    %513 = arith.addi %512, %494 : vector<4x128xi32>
    %c8_i32_235 = arith.constant 8 : i32
    %514 = vector.broadcast %c8_i32_235 : i32 to vector<4x128xi32>
    %515 = arith.muli %513, %514 : vector<4x128xi32>
    %516 = arith.addi %515, %484 : vector<4x128xi32>
    %c8_i32_236 = arith.constant 8 : i32
    %517 = vector.broadcast %c8_i32_236 : i32 to vector<4x128xi32>
    %518 = arith.muli %516, %517 : vector<4x128xi32>
    %519 = arith.addi %518, %489 : vector<4x128xi32>
    %c-1_i32_237 = arith.constant -1 : i32
    %520 = vector.broadcast %c-1_i32_237 : i32 to vector<4x128xi32>
    %521 = arith.select %511, %519, %520 : vector<4x128xi1>, vector<4x128xi32>
    %c2_238 = arith.constant 2 : index
    %c0_239 = arith.constant 0 : index
    %c0_240 = arith.constant 0 : index
    %522 = vector.load %arg3[%c2_238, %c0_239, %c0_240] : memref<4x4x128xi32, #tpu.memory_space<vmem>>, vector<1x4x128xi32>
    %523 = vector.shape_cast %522 : vector<1x4x128xi32> to vector<4x128xi32>
    %524 = vector.shape_cast %521 : vector<4x128xi32> to vector<1x4x128xi32>
    tpu.vector_store %arg3[%c2_238, %c0_239, %c0_240], %524 {strides = array<i32>} : memref<4x4x128xi32, #tpu.memory_space<vmem>>, vector<1x4x128xi32>,
    %c3_241 = arith.constant 3 : index
    %c9_242 = arith.constant 9 : index
    %525 = memref.load %arg1[%c3_241, %c9_242] : memref<4x36xf32, #tpu.memory_space<smem>>
    %526 = vector.broadcast %525 : f32 to vector<4x128xf32>
    %527 = arith.subf %1, %526 : vector<4x128xf32>
    %c3_243 = arith.constant 3 : index
    %c10_244 = arith.constant 10 : index
    %528 = memref.load %arg1[%c3_243, %c10_244] : memref<4x36xf32, #tpu.memory_space<smem>>
    %529 = vector.broadcast %528 : f32 to vector<4x128xf32>
    %530 = arith.subf %3, %529 : vector<4x128xf32>
    %c3_245 = arith.constant 3 : index
    %c11_246 = arith.constant 11 : index
    %531 = memref.load %arg1[%c3_245, %c11_246] : memref<4x36xf32, #tpu.memory_space<smem>>
    %532 = vector.broadcast %531 : f32 to vector<4x128xf32>
    %533 = arith.subf %5, %532 : vector<4x128xf32>
    %c3_247 = arith.constant 3 : index
    %c0_248 = arith.constant 0 : index
    %534 = memref.load %arg1[%c3_247, %c0_248] : memref<4x36xf32, #tpu.memory_space<smem>>
    %535 = vector.broadcast %534 : f32 to vector<4x128xf32>
    %536 = arith.mulf %535, %527 : vector<4x128xf32>
    %c3_249 = arith.constant 3 : index
    %c1_250 = arith.constant 1 : index
    %537 = memref.load %arg1[%c3_249, %c1_250] : memref<4x36xf32, #tpu.memory_space<smem>>
    %538 = vector.broadcast %537 : f32 to vector<4x128xf32>
    %539 = arith.mulf %538, %530 : vector<4x128xf32>
    %540 = arith.addf %536, %539 : vector<4x128xf32>
    %c3_251 = arith.constant 3 : index
    %c2_252 = arith.constant 2 : index
    %541 = memref.load %arg1[%c3_251, %c2_252] : memref<4x36xf32, #tpu.memory_space<smem>>
    %542 = vector.broadcast %541 : f32 to vector<4x128xf32>
    %543 = arith.mulf %542, %533 : vector<4x128xf32>
    %544 = arith.addf %540, %543 : vector<4x128xf32>
    %c3_253 = arith.constant 3 : index
    %c3_254 = arith.constant 3 : index
    %545 = memref.load %arg1[%c3_253, %c3_254] : memref<4x36xf32, #tpu.memory_space<smem>>
    %546 = vector.broadcast %545 : f32 to vector<4x128xf32>
    %547 = arith.mulf %546, %527 : vector<4x128xf32>
    %c3_255 = arith.constant 3 : index
    %c4_256 = arith.constant 4 : index
    %548 = memref.load %arg1[%c3_255, %c4_256] : memref<4x36xf32, #tpu.memory_space<smem>>
    %549 = vector.broadcast %548 : f32 to vector<4x128xf32>
    %550 = arith.mulf %549, %530 : vector<4x128xf32>
    %551 = arith.addf %547, %550 : vector<4x128xf32>
    %c3_257 = arith.constant 3 : index
    %c5_258 = arith.constant 5 : index
    %552 = memref.load %arg1[%c3_257, %c5_258] : memref<4x36xf32, #tpu.memory_space<smem>>
    %553 = vector.broadcast %552 : f32 to vector<4x128xf32>
    %554 = arith.mulf %553, %533 : vector<4x128xf32>
    %555 = arith.addf %551, %554 : vector<4x128xf32>
    %c3_259 = arith.constant 3 : index
    %c6_260 = arith.constant 6 : index
    %556 = memref.load %arg1[%c3_259, %c6_260] : memref<4x36xf32, #tpu.memory_space<smem>>
    %557 = vector.broadcast %556 : f32 to vector<4x128xf32>
    %558 = arith.mulf %557, %527 : vector<4x128xf32>
    %c3_261 = arith.constant 3 : index
    %c7_262 = arith.constant 7 : index
    %559 = memref.load %arg1[%c3_261, %c7_262] : memref<4x36xf32, #tpu.memory_space<smem>>
    %560 = vector.broadcast %559 : f32 to vector<4x128xf32>
    %561 = arith.mulf %560, %530 : vector<4x128xf32>
    %562 = arith.addf %558, %561 : vector<4x128xf32>
    %c3_263 = arith.constant 3 : index
    %c8_264 = arith.constant 8 : index
    %563 = memref.load %arg1[%c3_263, %c8_264] : memref<4x36xf32, #tpu.memory_space<smem>>
    %564 = vector.broadcast %563 : f32 to vector<4x128xf32>
    %565 = arith.mulf %564, %533 : vector<4x128xf32>
    %566 = arith.addf %562, %565 : vector<4x128xf32>
    %567 = arith.mulf %544, %566 : vector<4x128xf32>
    %568 = arith.mulf %555, %566 : vector<4x128xf32>
    %c3_265 = arith.constant 3 : index
    %c12_266 = arith.constant 12 : index
    %569 = memref.load %arg1[%c3_265, %c12_266] : memref<4x36xf32, #tpu.memory_space<smem>>
    %570 = vector.broadcast %569 : f32 to vector<4x128xf32>
    %571 = arith.mulf %570, %567 : vector<4x128xf32>
    %c3_267 = arith.constant 3 : index
    %c13_268 = arith.constant 13 : index
    %572 = memref.load %arg1[%c3_267, %c13_268] : memref<4x36xf32, #tpu.memory_space<smem>>
    %573 = vector.broadcast %572 : f32 to vector<4x128xf32>
    %574 = arith.mulf %573, %568 : vector<4x128xf32>
    %575 = arith.addf %571, %574 : vector<4x128xf32>
    %c3_269 = arith.constant 3 : index
    %c14_270 = arith.constant 14 : index
    %576 = memref.load %arg1[%c3_269, %c14_270] : memref<4x36xf32, #tpu.memory_space<smem>>
    %577 = vector.broadcast %576 : f32 to vector<4x128xf32>
    %578 = arith.mulf %577, %566 : vector<4x128xf32>
    %579 = arith.addf %575, %578 : vector<4x128xf32>
    %c3_271 = arith.constant 3 : index
    %c21_272 = arith.constant 21 : index
    %580 = memref.load %arg1[%c3_271, %c21_272] : memref<4x36xf32, #tpu.memory_space<smem>>
    %581 = vector.broadcast %580 : f32 to vector<4x128xf32>
    %582 = arith.addf %579, %581 : vector<4x128xf32>
    %c3_273 = arith.constant 3 : index
    %c15_274 = arith.constant 15 : index
    %583 = memref.load %arg1[%c3_273, %c15_274] : memref<4x36xf32, #tpu.memory_space<smem>>
    %584 = vector.broadcast %583 : f32 to vector<4x128xf32>
    %585 = arith.mulf %584, %567 : vector<4x128xf32>
    %c3_275 = arith.constant 3 : index
    %c16_276 = arith.constant 16 : index
    %586 = memref.load %arg1[%c3_275, %c16_276] : memref<4x36xf32, #tpu.memory_space<smem>>
    %587 = vector.broadcast %586 : f32 to vector<4x128xf32>
    %588 = arith.mulf %587, %568 : vector<4x128xf32>
    %589 = arith.addf %585, %588 : vector<4x128xf32>
    %c3_277 = arith.constant 3 : index
    %c17_278 = arith.constant 17 : index
    %590 = memref.load %arg1[%c3_277, %c17_278] : memref<4x36xf32, #tpu.memory_space<smem>>
    %591 = vector.broadcast %590 : f32 to vector<4x128xf32>
    %592 = arith.mulf %591, %566 : vector<4x128xf32>
    %593 = arith.addf %589, %592 : vector<4x128xf32>
    %c3_279 = arith.constant 3 : index
    %c22_280 = arith.constant 22 : index
    %594 = memref.load %arg1[%c3_279, %c22_280] : memref<4x36xf32, #tpu.memory_space<smem>>
    %595 = vector.broadcast %594 : f32 to vector<4x128xf32>
    %596 = arith.addf %593, %595 : vector<4x128xf32>
    %c3_281 = arith.constant 3 : index
    %c18_282 = arith.constant 18 : index
    %597 = memref.load %arg1[%c3_281, %c18_282] : memref<4x36xf32, #tpu.memory_space<smem>>
    %598 = vector.broadcast %597 : f32 to vector<4x128xf32>
    %599 = arith.mulf %598, %567 : vector<4x128xf32>
    %c3_283 = arith.constant 3 : index
    %c19_284 = arith.constant 19 : index
    %600 = memref.load %arg1[%c3_283, %c19_284] : memref<4x36xf32, #tpu.memory_space<smem>>
    %601 = vector.broadcast %600 : f32 to vector<4x128xf32>
    %602 = arith.mulf %601, %568 : vector<4x128xf32>
    %603 = arith.addf %599, %602 : vector<4x128xf32>
    %c3_285 = arith.constant 3 : index
    %c20_286 = arith.constant 20 : index
    %604 = memref.load %arg1[%c3_285, %c20_286] : memref<4x36xf32, #tpu.memory_space<smem>>
    %605 = vector.broadcast %604 : f32 to vector<4x128xf32>
    %606 = arith.mulf %605, %566 : vector<4x128xf32>
    %607 = arith.addf %603, %606 : vector<4x128xf32>
    %c3_287 = arith.constant 3 : index
    %c23_288 = arith.constant 23 : index
    %608 = memref.load %arg1[%c3_287, %c23_288] : memref<4x36xf32, #tpu.memory_space<smem>>
    %609 = vector.broadcast %608 : f32 to vector<4x128xf32>
    %610 = arith.addf %607, %609 : vector<4x128xf32>
    %c3_289 = arith.constant 3 : index
    %c24_290 = arith.constant 24 : index
    %611 = memref.load %arg1[%c3_289, %c24_290] : memref<4x36xf32, #tpu.memory_space<smem>>
    %612 = vector.broadcast %611 : f32 to vector<4x128xf32>
    %613 = arith.mulf %612, %582 : vector<4x128xf32>
    %c3_291 = arith.constant 3 : index
    %c25_292 = arith.constant 25 : index
    %614 = memref.load %arg1[%c3_291, %c25_292] : memref<4x36xf32, #tpu.memory_space<smem>>
    %615 = vector.broadcast %614 : f32 to vector<4x128xf32>
    %616 = arith.mulf %615, %596 : vector<4x128xf32>
    %617 = arith.addf %613, %616 : vector<4x128xf32>
    %c3_293 = arith.constant 3 : index
    %c26_294 = arith.constant 26 : index
    %618 = memref.load %arg1[%c3_293, %c26_294] : memref<4x36xf32, #tpu.memory_space<smem>>
    %619 = vector.broadcast %618 : f32 to vector<4x128xf32>
    %620 = arith.mulf %619, %610 : vector<4x128xf32>
    %621 = arith.addf %617, %620 : vector<4x128xf32>
    %c3_295 = arith.constant 3 : index
    %c33_296 = arith.constant 33 : index
    %622 = memref.load %arg1[%c3_295, %c33_296] : memref<4x36xf32, #tpu.memory_space<smem>>
    %623 = vector.broadcast %622 : f32 to vector<4x128xf32>
    %624 = arith.addf %621, %623 : vector<4x128xf32>
    %c3_297 = arith.constant 3 : index
    %c27_298 = arith.constant 27 : index
    %625 = memref.load %arg1[%c3_297, %c27_298] : memref<4x36xf32, #tpu.memory_space<smem>>
    %626 = vector.broadcast %625 : f32 to vector<4x128xf32>
    %627 = arith.mulf %626, %582 : vector<4x128xf32>
    %c3_299 = arith.constant 3 : index
    %c28_300 = arith.constant 28 : index
    %628 = memref.load %arg1[%c3_299, %c28_300] : memref<4x36xf32, #tpu.memory_space<smem>>
    %629 = vector.broadcast %628 : f32 to vector<4x128xf32>
    %630 = arith.mulf %629, %596 : vector<4x128xf32>
    %631 = arith.addf %627, %630 : vector<4x128xf32>
    %c3_301 = arith.constant 3 : index
    %c29_302 = arith.constant 29 : index
    %632 = memref.load %arg1[%c3_301, %c29_302] : memref<4x36xf32, #tpu.memory_space<smem>>
    %633 = vector.broadcast %632 : f32 to vector<4x128xf32>
    %634 = arith.mulf %633, %610 : vector<4x128xf32>
    %635 = arith.addf %631, %634 : vector<4x128xf32>
    %c3_303 = arith.constant 3 : index
    %c34_304 = arith.constant 34 : index
    %636 = memref.load %arg1[%c3_303, %c34_304] : memref<4x36xf32, #tpu.memory_space<smem>>
    %637 = vector.broadcast %636 : f32 to vector<4x128xf32>
    %638 = arith.addf %635, %637 : vector<4x128xf32>
    %c3_305 = arith.constant 3 : index
    %c30_306 = arith.constant 30 : index
    %639 = memref.load %arg1[%c3_305, %c30_306] : memref<4x36xf32, #tpu.memory_space<smem>>
    %640 = vector.broadcast %639 : f32 to vector<4x128xf32>
    %641 = arith.mulf %640, %582 : vector<4x128xf32>
    %c3_307 = arith.constant 3 : index
    %c31_308 = arith.constant 31 : index
    %642 = memref.load %arg1[%c3_307, %c31_308] : memref<4x36xf32, #tpu.memory_space<smem>>
    %643 = vector.broadcast %642 : f32 to vector<4x128xf32>
    %644 = arith.mulf %643, %596 : vector<4x128xf32>
    %645 = arith.addf %641, %644 : vector<4x128xf32>
    %c3_309 = arith.constant 3 : index
    %c32_310 = arith.constant 32 : index
    %646 = memref.load %arg1[%c3_309, %c32_310] : memref<4x36xf32, #tpu.memory_space<smem>>
    %647 = vector.broadcast %646 : f32 to vector<4x128xf32>
    %648 = arith.mulf %647, %610 : vector<4x128xf32>
    %649 = arith.addf %645, %648 : vector<4x128xf32>
    %c3_311 = arith.constant 3 : index
    %c35_312 = arith.constant 35 : index
    %650 = memref.load %arg1[%c3_311, %c35_312] : memref<4x36xf32, #tpu.memory_space<smem>>
    %651 = vector.broadcast %650 : f32 to vector<4x128xf32>
    %652 = arith.addf %649, %651 : vector<4x128xf32>
    %cst_313 = arith.constant -4.000000e+00 : f32
    %653 = vector.broadcast %cst_313 : f32 to vector<4x128xf32>
    %654 = arith.subf %624, %653 : vector<4x128xf32>
    %cst_314 = arith.constant 1.000000e+00 : f32
    %655 = vector.broadcast %cst_314 : f32 to vector<4x128xf32>
    %656 = arith.divf %654, %655 : vector<4x128xf32>
    %657 = arith.fptosi %656 : vector<4x128xf32> to vector<4x128xi32>
    %cst_315 = arith.constant -4.000000e+00 : f32
    %658 = vector.broadcast %cst_315 : f32 to vector<4x128xf32>
    %659 = arith.subf %638, %658 : vector<4x128xf32>
    %cst_316 = arith.constant 1.000000e+00 : f32
    %660 = vector.broadcast %cst_316 : f32 to vector<4x128xf32>
    %661 = arith.divf %659, %660 : vector<4x128xf32>
    %662 = arith.fptosi %661 : vector<4x128xf32> to vector<4x128xi32>
    %cst_317 = arith.constant -2.000000e+00 : f32
    %663 = vector.broadcast %cst_317 : f32 to vector<4x128xf32>
    %664 = arith.subf %652, %663 : vector<4x128xf32>
    %cst_318 = arith.constant 4.000000e+00 : f32
    %665 = vector.broadcast %cst_318 : f32 to vector<4x128xf32>
    %666 = arith.divf %664, %665 : vector<4x128xf32>
    %667 = arith.fptosi %666 : vector<4x128xf32> to vector<4x128xi32>
    %c0_i32_319 = arith.constant 0 : i32
    %668 = vector.broadcast %c0_i32_319 : i32 to vector<4x128xi32>
    %669 = arith.cmpi sge, %657, %668 : vector<4x128xi32>
    %c8_i32_320 = arith.constant 8 : i32
    %670 = vector.broadcast %c8_i32_320 : i32 to vector<4x128xi32>
    %671 = arith.cmpi slt, %657, %670 : vector<4x128xi32>
    %672 = arith.andi %669, %671 : vector<4x128xi1>
    %c0_i32_321 = arith.constant 0 : i32
    %673 = vector.broadcast %c0_i32_321 : i32 to vector<4x128xi32>
    %674 = arith.cmpi sge, %662, %673 : vector<4x128xi32>
    %675 = arith.andi %672, %674 : vector<4x128xi1>
    %c8_i32_322 = arith.constant 8 : i32
    %676 = vector.broadcast %c8_i32_322 : i32 to vector<4x128xi32>
    %677 = arith.cmpi slt, %662, %676 : vector<4x128xi32>
    %678 = arith.andi %675, %677 : vector<4x128xi1>
    %c0_i32_323 = arith.constant 0 : i32
    %679 = vector.broadcast %c0_i32_323 : i32 to vector<4x128xi32>
    %680 = arith.cmpi sge, %667, %679 : vector<4x128xi32>
    %681 = arith.andi %678, %680 : vector<4x128xi1>
    %c1_i32_324 = arith.constant 1 : i32
    %682 = vector.broadcast %c1_i32_324 : i32 to vector<4x128xi32>
    %683 = arith.cmpi slt, %667, %682 : vector<4x128xi32>
    %684 = arith.andi %681, %683 : vector<4x128xi1>
    %c1_i32_325 = arith.constant 1 : i32
    %685 = vector.broadcast %c1_i32_325 : i32 to vector<4x128xi32>
    %686 = arith.addi %685, %667 : vector<4x128xi32>
    %c8_i32_326 = arith.constant 8 : i32
    %687 = vector.broadcast %c8_i32_326 : i32 to vector<4x128xi32>
    %688 = arith.muli %686, %687 : vector<4x128xi32>
    %689 = arith.addi %688, %657 : vector<4x128xi32>
    %c8_i32_327 = arith.constant 8 : i32
    %690 = vector.broadcast %c8_i32_327 : i32 to vector<4x128xi32>
    %691 = arith.muli %689, %690 : vector<4x128xi32>
    %692 = arith.addi %691, %662 : vector<4x128xi32>
    %c-1_i32_328 = arith.constant -1 : i32
    %693 = vector.broadcast %c-1_i32_328 : i32 to vector<4x128xi32>
    %694 = arith.select %684, %692, %693 : vector<4x128xi1>, vector<4x128xi32>
    %c3_329 = arith.constant 3 : index
    %c0_330 = arith.constant 0 : index
    %c0_331 = arith.constant 0 : index
    %695 = vector.load %arg3[%c3_329, %c0_330, %c0_331] : memref<4x4x128xi32, #tpu.memory_space<vmem>>, vector<1x4x128xi32>
    %696 = vector.shape_cast %695 : vector<1x4x128xi32> to vector<4x128xi32>
    %697 = vector.shape_cast %694 : vector<4x128xi32> to vector<1x4x128xi32>
    tpu.vector_store %arg3[%c3_329, %c0_330, %c0_331], %697 {strides = array<i32>} : memref<4x4x128xi32, #tpu.memory_space<vmem>>, vector<1x4x128xi32>,
    return
  }
  func.func @transform_0(%arg0: i32) -> (i32, i32) {
    %c0_i32 = arith.constant 0 : i32
    %c0_i32_0 = arith.constant 0 : i32
    %c0_i32_1 = arith.constant 0 : i32
    return %c0_i32, %c0_i32_0 : i32, i32
  }
  func.func @transform_1(%arg0: i32) -> (i32, i32, i32) {
    %c0_i32 = arith.constant 0 : i32
    %c0_i32_0 = arith.constant 0 : i32
    %c0_i32_1 = arith.constant 0 : i32
    %c0_i32_2 = arith.constant 0 : i32
    return %c0_i32, %c0_i32_0, %c0_i32_1 : i32, i32, i32
  }
  func.func @transform_2(%arg0: i32) -> (i32, i32, i32) {
    %c0_i32 = arith.constant 0 : i32
    %c0_i32_0 = arith.constant 0 : i32
    %c0_i32_1 = arith.constant 0 : i32
    %c0_i32_2 = arith.constant 0 : i32
    return %c0_i32, %c0_i32_0, %c0_i32_1 : i32, i32, i32
  }
}

module attributes {stable_mosaic.version = 11 : i64} {
  func.func @bevpool_kernel(%arg0: i32, %arg1: memref<8x256x1xi32, #tpu.memory_space<vmem>>, %arg2: memref<8x16x256xbf16, #tpu.memory_space<vmem>>, %arg3: memref<16x128xf32, #tpu.memory_space<vmem>>) attributes {dimension_semantics = [#tpu.dimension_semantics<parallel>], iteration_bounds = array<i64: 1>, scalar_prefetch = 0 : i64, scratch_operands = 0 : i64, tpu.core_type = #tpu.core_type<tc>, window_params = [{pipeline_mode = #tpu.pipeline_mode<synchronous>, transform_indices = @transform_0, window_bounds = array<i64: 8, 256, 1>}, {pipeline_mode = #tpu.pipeline_mode<synchronous>, transform_indices = @transform_1, window_bounds = array<i64: 8, 16, 256>}, {transform_indices = @transform_2, window_bounds = array<i64: 16, 128>}]} {
    %c128_i32 = arith.constant 128 : i32
    %0 = arith.muli %arg0, %c128_i32 : i32
    %1 = tpu.iota {dimensions = array<i32: 1>} : vector<1x128xi32>
    %2 = vector.broadcast %0 : i32 to vector<1x128xi32>
    %3 = arith.addi %2, %1 : vector<1x128xi32>
    %cst = arith.constant 0.000000e+00 : f32
    %4 = vector.broadcast %cst : f32 to vector<16x128xf32>
    %c0_i32 = arith.constant 0 : i32
    %5 = arith.index_cast %c0_i32 : i32 to index
    %c0 = arith.constant 0 : index
    %c0_0 = arith.constant 0 : index
    %6 = vector.load %arg1[%5, %c0, %c0_0] : memref<8x256x1xi32, #tpu.memory_space<vmem>>, vector<1x256x1xi32>
    %7 = vector.shape_cast %6 : vector<1x256x1xi32> to vector<256x1xi32>
    %8 = vector.broadcast %7 : vector<256x1xi32> to vector<256x128xi32>
    %9 = vector.broadcast %3 : vector<1x128xi32> to vector<256x128xi32>
    %10 = arith.cmpi eq, %8, %9 : vector<256x128xi32>
    %11 = arith.extui %10 : vector<256x128xi1> to vector<256x128xi32>
    %12 = arith.sitofp %11 : vector<256x128xi32> to vector<256x128xf32>
    %13 = arith.truncf %12 : vector<256x128xf32> to vector<256x128xbf16>
    %14 = arith.index_cast %c0_i32 : i32 to index
    %c0_1 = arith.constant 0 : index
    %c0_2 = arith.constant 0 : index
    %15 = vector.load %arg2[%14, %c0_1, %c0_2] : memref<8x16x256xbf16, #tpu.memory_space<vmem>>, vector<1x16x256xbf16>
    %16 = vector.shape_cast %15 : vector<1x16x256xbf16> to vector<16x256xbf16>
    %cst_3 = arith.constant dense<0.000000e+00> : vector<16x128xf32>
    %17 = tpu.matmul %16, %13, %cst_3 {dimension_numbers = #tpu.dot_dimension_numbers<[1], [0], [0], [1], [0, 0, 1, 1], [], []>} : vector<16x256xbf16>, vector<256x128xbf16>, vector<16x128xf32> -> vector<16x128xf32>
    %18 = arith.addf %4, %17 : vector<16x128xf32>
    %c1_i32 = arith.constant 1 : i32
    %19 = arith.index_cast %c1_i32 : i32 to index
    %c0_4 = arith.constant 0 : index
    %c0_5 = arith.constant 0 : index
    %20 = vector.load %arg1[%19, %c0_4, %c0_5] : memref<8x256x1xi32, #tpu.memory_space<vmem>>, vector<1x256x1xi32>
    %21 = vector.shape_cast %20 : vector<1x256x1xi32> to vector<256x1xi32>
    %22 = vector.broadcast %21 : vector<256x1xi32> to vector<256x128xi32>
    %23 = vector.broadcast %3 : vector<1x128xi32> to vector<256x128xi32>
    %24 = arith.cmpi eq, %22, %23 : vector<256x128xi32>
    %25 = arith.extui %24 : vector<256x128xi1> to vector<256x128xi32>
    %26 = arith.sitofp %25 : vector<256x128xi32> to vector<256x128xf32>
    %27 = arith.truncf %26 : vector<256x128xf32> to vector<256x128xbf16>
    %28 = arith.index_cast %c1_i32 : i32 to index
    %c0_6 = arith.constant 0 : index
    %c0_7 = arith.constant 0 : index
    %29 = vector.load %arg2[%28, %c0_6, %c0_7] : memref<8x16x256xbf16, #tpu.memory_space<vmem>>, vector<1x16x256xbf16>
    %30 = vector.shape_cast %29 : vector<1x16x256xbf16> to vector<16x256xbf16>
    %cst_8 = arith.constant dense<0.000000e+00> : vector<16x128xf32>
    %31 = tpu.matmul %30, %27, %cst_8 {dimension_numbers = #tpu.dot_dimension_numbers<[1], [0], [0], [1], [0, 0, 1, 1], [], []>} : vector<16x256xbf16>, vector<256x128xbf16>, vector<16x128xf32> -> vector<16x128xf32>
    %32 = arith.addf %18, %31 : vector<16x128xf32>
    %c2_i32 = arith.constant 2 : i32
    %33 = arith.index_cast %c2_i32 : i32 to index
    %c0_9 = arith.constant 0 : index
    %c0_10 = arith.constant 0 : index
    %34 = vector.load %arg1[%33, %c0_9, %c0_10] : memref<8x256x1xi32, #tpu.memory_space<vmem>>, vector<1x256x1xi32>
    %35 = vector.shape_cast %34 : vector<1x256x1xi32> to vector<256x1xi32>
    %36 = vector.broadcast %35 : vector<256x1xi32> to vector<256x128xi32>
    %37 = vector.broadcast %3 : vector<1x128xi32> to vector<256x128xi32>
    %38 = arith.cmpi eq, %36, %37 : vector<256x128xi32>
    %39 = arith.extui %38 : vector<256x128xi1> to vector<256x128xi32>
    %40 = arith.sitofp %39 : vector<256x128xi32> to vector<256x128xf32>
    %41 = arith.truncf %40 : vector<256x128xf32> to vector<256x128xbf16>
    %42 = arith.index_cast %c2_i32 : i32 to index
    %c0_11 = arith.constant 0 : index
    %c0_12 = arith.constant 0 : index
    %43 = vector.load %arg2[%42, %c0_11, %c0_12] : memref<8x16x256xbf16, #tpu.memory_space<vmem>>, vector<1x16x256xbf16>
    %44 = vector.shape_cast %43 : vector<1x16x256xbf16> to vector<16x256xbf16>
    %cst_13 = arith.constant dense<0.000000e+00> : vector<16x128xf32>
    %45 = tpu.matmul %44, %41, %cst_13 {dimension_numbers = #tpu.dot_dimension_numbers<[1], [0], [0], [1], [0, 0, 1, 1], [], []>} : vector<16x256xbf16>, vector<256x128xbf16>, vector<16x128xf32> -> vector<16x128xf32>
    %46 = arith.addf %32, %45 : vector<16x128xf32>
    %c3_i32 = arith.constant 3 : i32
    %47 = arith.index_cast %c3_i32 : i32 to index
    %c0_14 = arith.constant 0 : index
    %c0_15 = arith.constant 0 : index
    %48 = vector.load %arg1[%47, %c0_14, %c0_15] : memref<8x256x1xi32, #tpu.memory_space<vmem>>, vector<1x256x1xi32>
    %49 = vector.shape_cast %48 : vector<1x256x1xi32> to vector<256x1xi32>
    %50 = vector.broadcast %49 : vector<256x1xi32> to vector<256x128xi32>
    %51 = vector.broadcast %3 : vector<1x128xi32> to vector<256x128xi32>
    %52 = arith.cmpi eq, %50, %51 : vector<256x128xi32>
    %53 = arith.extui %52 : vector<256x128xi1> to vector<256x128xi32>
    %54 = arith.sitofp %53 : vector<256x128xi32> to vector<256x128xf32>
    %55 = arith.truncf %54 : vector<256x128xf32> to vector<256x128xbf16>
    %56 = arith.index_cast %c3_i32 : i32 to index
    %c0_16 = arith.constant 0 : index
    %c0_17 = arith.constant 0 : index
    %57 = vector.load %arg2[%56, %c0_16, %c0_17] : memref<8x16x256xbf16, #tpu.memory_space<vmem>>, vector<1x16x256xbf16>
    %58 = vector.shape_cast %57 : vector<1x16x256xbf16> to vector<16x256xbf16>
    %cst_18 = arith.constant dense<0.000000e+00> : vector<16x128xf32>
    %59 = tpu.matmul %58, %55, %cst_18 {dimension_numbers = #tpu.dot_dimension_numbers<[1], [0], [0], [1], [0, 0, 1, 1], [], []>} : vector<16x256xbf16>, vector<256x128xbf16>, vector<16x128xf32> -> vector<16x128xf32>
    %60 = arith.addf %46, %59 : vector<16x128xf32>
    %c4_i32 = arith.constant 4 : i32
    %61 = arith.index_cast %c4_i32 : i32 to index
    %c0_19 = arith.constant 0 : index
    %c0_20 = arith.constant 0 : index
    %62 = vector.load %arg1[%61, %c0_19, %c0_20] : memref<8x256x1xi32, #tpu.memory_space<vmem>>, vector<1x256x1xi32>
    %63 = vector.shape_cast %62 : vector<1x256x1xi32> to vector<256x1xi32>
    %64 = vector.broadcast %63 : vector<256x1xi32> to vector<256x128xi32>
    %65 = vector.broadcast %3 : vector<1x128xi32> to vector<256x128xi32>
    %66 = arith.cmpi eq, %64, %65 : vector<256x128xi32>
    %67 = arith.extui %66 : vector<256x128xi1> to vector<256x128xi32>
    %68 = arith.sitofp %67 : vector<256x128xi32> to vector<256x128xf32>
    %69 = arith.truncf %68 : vector<256x128xf32> to vector<256x128xbf16>
    %70 = arith.index_cast %c4_i32 : i32 to index
    %c0_21 = arith.constant 0 : index
    %c0_22 = arith.constant 0 : index
    %71 = vector.load %arg2[%70, %c0_21, %c0_22] : memref<8x16x256xbf16, #tpu.memory_space<vmem>>, vector<1x16x256xbf16>
    %72 = vector.shape_cast %71 : vector<1x16x256xbf16> to vector<16x256xbf16>
    %cst_23 = arith.constant dense<0.000000e+00> : vector<16x128xf32>
    %73 = tpu.matmul %72, %69, %cst_23 {dimension_numbers = #tpu.dot_dimension_numbers<[1], [0], [0], [1], [0, 0, 1, 1], [], []>} : vector<16x256xbf16>, vector<256x128xbf16>, vector<16x128xf32> -> vector<16x128xf32>
    %74 = arith.addf %60, %73 : vector<16x128xf32>
    %c5_i32 = arith.constant 5 : i32
    %75 = arith.index_cast %c5_i32 : i32 to index
    %c0_24 = arith.constant 0 : index
    %c0_25 = arith.constant 0 : index
    %76 = vector.load %arg1[%75, %c0_24, %c0_25] : memref<8x256x1xi32, #tpu.memory_space<vmem>>, vector<1x256x1xi32>
    %77 = vector.shape_cast %76 : vector<1x256x1xi32> to vector<256x1xi32>
    %78 = vector.broadcast %77 : vector<256x1xi32> to vector<256x128xi32>
    %79 = vector.broadcast %3 : vector<1x128xi32> to vector<256x128xi32>
    %80 = arith.cmpi eq, %78, %79 : vector<256x128xi32>
    %81 = arith.extui %80 : vector<256x128xi1> to vector<256x128xi32>
    %82 = arith.sitofp %81 : vector<256x128xi32> to vector<256x128xf32>
    %83 = arith.truncf %82 : vector<256x128xf32> to vector<256x128xbf16>
    %84 = arith.index_cast %c5_i32 : i32 to index
    %c0_26 = arith.constant 0 : index
    %c0_27 = arith.constant 0 : index
    %85 = vector.load %arg2[%84, %c0_26, %c0_27] : memref<8x16x256xbf16, #tpu.memory_space<vmem>>, vector<1x16x256xbf16>
    %86 = vector.shape_cast %85 : vector<1x16x256xbf16> to vector<16x256xbf16>
    %cst_28 = arith.constant dense<0.000000e+00> : vector<16x128xf32>
    %87 = tpu.matmul %86, %83, %cst_28 {dimension_numbers = #tpu.dot_dimension_numbers<[1], [0], [0], [1], [0, 0, 1, 1], [], []>} : vector<16x256xbf16>, vector<256x128xbf16>, vector<16x128xf32> -> vector<16x128xf32>
    %88 = arith.addf %74, %87 : vector<16x128xf32>
    %c6_i32 = arith.constant 6 : i32
    %89 = arith.index_cast %c6_i32 : i32 to index
    %c0_29 = arith.constant 0 : index
    %c0_30 = arith.constant 0 : index
    %90 = vector.load %arg1[%89, %c0_29, %c0_30] : memref<8x256x1xi32, #tpu.memory_space<vmem>>, vector<1x256x1xi32>
    %91 = vector.shape_cast %90 : vector<1x256x1xi32> to vector<256x1xi32>
    %92 = vector.broadcast %91 : vector<256x1xi32> to vector<256x128xi32>
    %93 = vector.broadcast %3 : vector<1x128xi32> to vector<256x128xi32>
    %94 = arith.cmpi eq, %92, %93 : vector<256x128xi32>
    %95 = arith.extui %94 : vector<256x128xi1> to vector<256x128xi32>
    %96 = arith.sitofp %95 : vector<256x128xi32> to vector<256x128xf32>
    %97 = arith.truncf %96 : vector<256x128xf32> to vector<256x128xbf16>
    %98 = arith.index_cast %c6_i32 : i32 to index
    %c0_31 = arith.constant 0 : index
    %c0_32 = arith.constant 0 : index
    %99 = vector.load %arg2[%98, %c0_31, %c0_32] : memref<8x16x256xbf16, #tpu.memory_space<vmem>>, vector<1x16x256xbf16>
    %100 = vector.shape_cast %99 : vector<1x16x256xbf16> to vector<16x256xbf16>
    %cst_33 = arith.constant dense<0.000000e+00> : vector<16x128xf32>
    %101 = tpu.matmul %100, %97, %cst_33 {dimension_numbers = #tpu.dot_dimension_numbers<[1], [0], [0], [1], [0, 0, 1, 1], [], []>} : vector<16x256xbf16>, vector<256x128xbf16>, vector<16x128xf32> -> vector<16x128xf32>
    %102 = arith.addf %88, %101 : vector<16x128xf32>
    %c7_i32 = arith.constant 7 : i32
    %103 = arith.index_cast %c7_i32 : i32 to index
    %c0_34 = arith.constant 0 : index
    %c0_35 = arith.constant 0 : index
    %104 = vector.load %arg1[%103, %c0_34, %c0_35] : memref<8x256x1xi32, #tpu.memory_space<vmem>>, vector<1x256x1xi32>
    %105 = vector.shape_cast %104 : vector<1x256x1xi32> to vector<256x1xi32>
    %106 = vector.broadcast %105 : vector<256x1xi32> to vector<256x128xi32>
    %107 = vector.broadcast %3 : vector<1x128xi32> to vector<256x128xi32>
    %108 = arith.cmpi eq, %106, %107 : vector<256x128xi32>
    %109 = arith.extui %108 : vector<256x128xi1> to vector<256x128xi32>
    %110 = arith.sitofp %109 : vector<256x128xi32> to vector<256x128xf32>
    %111 = arith.truncf %110 : vector<256x128xf32> to vector<256x128xbf16>
    %112 = arith.index_cast %c7_i32 : i32 to index
    %c0_36 = arith.constant 0 : index
    %c0_37 = arith.constant 0 : index
    %113 = vector.load %arg2[%112, %c0_36, %c0_37] : memref<8x16x256xbf16, #tpu.memory_space<vmem>>, vector<1x16x256xbf16>
    %114 = vector.shape_cast %113 : vector<1x16x256xbf16> to vector<16x256xbf16>
    %cst_38 = arith.constant dense<0.000000e+00> : vector<16x128xf32>
    %115 = tpu.matmul %114, %111, %cst_38 {dimension_numbers = #tpu.dot_dimension_numbers<[1], [0], [0], [1], [0, 0, 1, 1], [], []>} : vector<16x256xbf16>, vector<256x128xbf16>, vector<16x128xf32> -> vector<16x128xf32>
    %116 = arith.addf %102, %115 : vector<16x128xf32>
    %c8_i32 = arith.constant 8 : i32
    %c0_39 = arith.constant 0 : index
    %c0_40 = arith.constant 0 : index
    %117 = vector.load %arg3[%c0_39, %c0_40] : memref<16x128xf32, #tpu.memory_space<vmem>>, vector<16x128xf32>
    tpu.vector_store %arg3[%c0_39, %c0_40], %116 {strides = array<i32>} : memref<16x128xf32, #tpu.memory_space<vmem>>, vector<16x128xf32>,
    return
  }
  func.func @transform_0(%arg0: i32) -> (i32, i32, i32) {
    %c0_i32 = arith.constant 0 : i32
    %c0_i32_0 = arith.constant 0 : i32
    %c0_i32_1 = arith.constant 0 : i32
    %c0_i32_2 = arith.constant 0 : i32
    return %c0_i32, %c0_i32_0, %c0_i32_1 : i32, i32, i32
  }
  func.func @transform_1(%arg0: i32) -> (i32, i32, i32) {
    %c0_i32 = arith.constant 0 : i32
    %c0_i32_0 = arith.constant 0 : i32
    %c0_i32_1 = arith.constant 0 : i32
    %c0_i32_2 = arith.constant 0 : i32
    return %c0_i32, %c0_i32_0, %c0_i32_1 : i32, i32, i32
  }
  func.func @transform_2(%arg0: i32) -> (i32, i32) {
    %c0_i32 = arith.constant 0 : i32
    %c0_i32_0 = arith.constant 0 : i32
    return %c0_i32, %arg0 : i32, i32
  }
}

</mosaic_0001>

<llo_original>
// kernel: custom-call.27
$region0: #{custom-call.27}
  %s0 = inlined_call_operand.hbm [shape: f32[2,2,3,3], index: 0, kind: input, shape index: {}]
  %s1 = inlined_call_operand.vmem [shape: f32[2,2,3,3], index: 1, kind: output, shape index: {0}]
  %s2 = inlined_call_operand.hbm [shape: s32[2,2,3], index: 2, kind: output, shape index: {1}]
  %s3 = inlined_call_operand.vmem [shape: s32[2,2,3], index: 3, kind: output, shape index: {2}]
  %4 = xla_tuple %s1, %s2, %s3
  $region1: #{custom-call.27} parent=0
    #allocation0 [shape = 'u8[4096]{0}', space=vmem, size = 0x1000, scoped, tag = 'operand span for operand 0']
    #allocation1 [shape = 'u8[4096]{0}', space=vmem, size = 0x1000, scoped, tag = 'packed  for operand 0']
    #allocation2 [shape = 's32[2]{0}', space=sflag, size = 0x8, scoped, tag = 'scoped memory for custom-call.27']
    #allocation3 [shape = 's32[2]{0}', space=sflag, size = 0x8, scoped, tag = 'scoped memory for custom-call.27']
    #allocation4 [shape = 'u8[4096]{0}', space=vmem, size = 0x1000, scoped, tag = 'operand span for operand 1']
    #allocation5 [shape = 'u8[4096]{0}', space=vmem, size = 0x1000, scoped, tag = 'packed  for operand 1']
    #allocation6 [shape = 'u8[4096]{0}', space=vmem, size = 0x1000, scoped, tag = 'operand span for operand 2']
    #allocation7 [shape = 'u8[2048]{0}', space=vmem, size = 0x800, scoped, tag = 'packed  for operand 2']
    #allocation8 [shape = 'u8[4096]{0}', space=vmem, size = 0x1000, scoped, tag = 'operand span for operand 3']
    #allocation9 [shape = 'u8[2048]{0}', space=vmem, size = 0x800, scoped, tag = 'packed  for operand 3']
    %5 = vsyncpa [#allocation2], 0
    %s6 = scalar_lea.sflag [#allocation2], 1
    %7 = vsyncpa %s6, 0
    %8 = vsyncpa [#allocation3], 0
    %s9 = scalar_lea.sflag [#allocation3], 1
    %10 = vsyncpa %s9, 0
    loop: start=0, step=1, limit=6
    $region2: #{custom-call.27} parent=1 // loop_pre_header
      _
    $region3: #{custom-call.27} parent=1 // loop_header
      %s12 = sphi 0, %s16
      %p13 = scmp.ge.s32.totalorder %s12, 6
      %s19 = sphi 0, %s31
      %s20 = sphi 0, %s27
      %s21 = sphi 0, %s19
      %s22 = sphi 0, %s20
      %s23 = sphi 0, %s21
      %s24 = sphi 0, %s22
      %s38 = sphi 0, %s40
      %s41 = sphi 0, %s38
      %s42 = sphi 0, %s41
      %s58 = sphi 0, %s42
      %s68 = sphi 0, %s70
      %s71 = sphi 0, %s68
      %s72 = sphi 0, %s71
      %s88 = sphi 0, %s72
    $region4: #{custom-call.27} parent=1 // loop_header_branch
      %15 = sbr.rel (%p13) target = $region8
    $region5: #{custom-call.27} parent=1 // loop_body
      %s17 = ssub.s32 %s12, 1
      %s18 = ssub.s32 %s12, 2
      %s25 = sadd.s32 1, %s20
      %p26 = scmp.ge.s32.totalorder %s25, 2
      %s27 = scalar_select %p26, 0, %s25
      %s28 = sadd.s32 1, %s19
      %s29 = scalar_select %p26, %s28, %s19
      %p30 = scmp.ge.s32.totalorder %s29, 2
      %s31 = scalar_select %p30, 0, %s29
      %s32 = sshrl.u32 %s20, 3
      %s33 = sshrl.u32 %s27, 3
      %s34 = ssub.s32 %s19, %s31
      %s35 = ssub.s32 %s32, %s33
      %s36 = sor.u32 %s34, %s35
      %p37 = scmp.eq.s32.totalorder %s36, 0
      %s39 = sadd.s32 %s38, 1
      %s40 = scalar_select %p37, %s38, %s39
      %p43 = pneg %p37
      %p44 = scmp.eq.s32.totalorder %s12, 3
      %p45 = por %p43, %p44
      %p46 = scmp.ne.s32.totalorder %s38, %s41
      %p47 = scmp.eq.s32.totalorder %s12, 0
      %p48 = por %p46, %p47
      %p49 = scmp.ne.s32.totalorder %s38, %s41
      %p50 = scmp.eq.s32.totalorder %s17, 3
      %p51 = por %p49, %p50
      %p52 = scmp.ne.s32.totalorder %s41, %s42
      %p53 = scmp.eq.s32.totalorder %s17, 0
      %p54 = por %p52, %p53
      %p55 = scmp.ne.s32.totalorder %s41, %s42
      %p56 = scmp.eq.s32.totalorder %s18, 3
      %p57 = por %p55, %p56
      %p59 = scmp.ne.s32.totalorder %s42, %s58
      %p60 = scmp.eq.s32.totalorder %s18, 0
      %p61 = por %p59, %p60
      %s62 = sshrl.u32 %s20, 3
      %s63 = sshrl.u32 %s27, 3
      %s64 = ssub.s32 %s19, %s31
      %s65 = ssub.s32 %s62, %s63
      %s66 = sor.u32 %s64, %s65
      %p67 = scmp.eq.s32.totalorder %s66, 0
      %s69 = sadd.s32 %s68, 1
      %s70 = scalar_select %p67, %s68, %s69
      %p73 = pneg %p67
      %p74 = scmp.eq.s32.totalorder %s12, 3
      %p75 = por %p73, %p74
      %p76 = scmp.ne.s32.totalorder %s68, %s71
      %p77 = scmp.eq.s32.totalorder %s12, 0
      %p78 = por %p76, %p77
      %p79 = scmp.ne.s32.totalorder %s68, %s71
      %p80 = scmp.eq.s32.totalorder %s17, 3
      %p81 = por %p79, %p80
      %p82 = scmp.ne.s32.totalorder %s71, %s72
      %p83 = scmp.eq.s32.totalorder %s17, 0
      %p84 = por %p82, %p83
      %p85 = scmp.ne.s32.totalorder %s71, %s72
      %p86 = scmp.eq.s32.totalorder %s18, 3
      %p87 = por %p85, %p86
      %p89 = scmp.ne.s32.totalorder %s72, %s88
      %p90 = scmp.eq.s32.totalorder %s18, 0
      %p91 = por %p89, %p90
      %p92 = scmp.le.s32.totalorder 1, %s12
      %p93 = scmp.lt.s32.totalorder %s12, 5
      %p94 = pnand %p92, %p93
      %p95 = pneg %p94
      // Predicated region
      $region9: #{custom-call.27} parent=5 // pred_check
        _
      $region10: #{custom-call.27} parent=5 // pred_check_branch
        %97 = sbr.rel (%p94) target = $region12
      $region11: #{custom-call.27} parent=5 // pred_region
        %s98 = ssub.s32 %s12, 1
      $region12: #{custom-call.27} parent=5 // pred_fallthru
        _
      %p99 = scmp.lt.s32.totalorder %s12, 4
      // Predicated region
      $region13: #{custom-call.27} parent=5 // pred_check
        %p100 = pneg %p99
      $region14: #{custom-call.27} parent=5 // pred_check_branch
        %102 = sbr.rel (%p100) target = $region16
      $region15: #{custom-call.27} parent=5 // pred_region
        %s103 = sand.u32 %s12, 1
        %s104 = scalar_lea.sflag [#allocation2], %s103
        %s105 = sand.u32 %s12, 1
        %s106 = smul.addr %s105, 4
        %s107 = scalar_lea.vmem [#allocation1], %s106
        %s109 = ssub.s32 64, 64
        %110 = vsyncadd %s104, %s109
        %s111 = smul.addr %s19, 2
        %s112 = sadd.s32 %s20, %s111
        %s113 = smul.addr %s112, 64
        %s114 = scalar_lea.hbm %s0, %s113
        %s116 = sshll.u32 %s107, 4
        %s117 = int_to_ptr.vmem [resolvable:$true] %s116
        %119 = dma.hbm_to_vmem [thread:$0]  %s114, 64, %s117, %s104
      $region16: #{custom-call.27} parent=5 // pred_fallthru
        _
      %p120 = scmp.le.s32.totalorder 1, %s12
      %p121 = scmp.lt.s32.totalorder %s12, 5
      %p122 = pnand %p120, %p121
      %p123 = pneg %p122
      // Predicated region
      $region17: #{custom-call.27} parent=5 // pred_check
        _
      $region18: #{custom-call.27} parent=5 // pred_check_branch
        %125 = sbr.rel (%p122) target = $region20
      $region19: #{custom-call.27} parent=5 // pred_region
        #allocation10 [shape = 's32[3,128]{1,0}', space=vmem, size = 0x1000, scoped, tag = 'scratch for permutations']
        %s126 = ssub.s32 %s12, 1
        %s127 = sand.u32 %s17, 1
        %s128 = scalar_lea.sflag [#allocation2], %s127
        %s129 = sand.u32 %s17, 1
        %s130 = smul.addr %s129, 4
        %s131 = scalar_lea.vmem [#allocation1], %s130
        %132 = dma.done %s128, 64
        %s133 = sand.u32 %s17, 1
        %s134 = scalar_lea.sflag [#allocation2], %s133
        %s135 = sand.u32 %s17, 1
        %s136 = smul.addr %s135, 4
        %s137 = scalar_lea.vmem [#allocation1], %s136
        %s138 = sand.u32 %s17, 1
        %s139 = sand.u32 %s17, 1
        %s140 = smul.addr %s139, 4
        %s141 = scalar_lea.vmem [#allocation5], %s140
        %p142 = pneg %p54
        %p143 = pneg %p51
        %s144 = sand.u32 %s41, 1
        %s145 = scalar_lea.sflag [#allocation3], %s144
        %s146 = sand.u32 %s41, 1
        %s147 = smul.addr %s146, 2
        %s148 = scalar_lea.vmem [#allocation7], %s147
        %p149 = pneg %p84
        %p150 = pneg %p81
        %s151 = sand.u32 %s71, 1
        %s152 = sand.u32 %s71, 1
        %s153 = smul.addr %s152, 2
        %s154 = scalar_lea.vmem [#allocation9], %s153
        %s156 = sshll.u32 1, 4
        %s157 = ssub.s32 %s156, 1
        %v158 = vld [vmem:[%s137] sm:%s157]
        %159 = vst [vmem:[#allocation0] sm:%s157] %v158
        %s160 = sshrl.u32 %s22, 3
        %s161 = sshrl.u32 %s22, 3
        %v162 = vld [vmem:[#allocation0] sm:$0xff]
        %163 = vst [vmem:[#allocation4] sm:$0xff] %v162
        %s164 = sand.u32 %s22, 7
        %s165 = scalar_lea.vmem [#allocation6], %s164
        %s166 = sand.u32 %s22, 7
        %s167 = scalar_lea.vmem [#allocation8], %s166
        %168 = vst [vmem:[%s165] sm:$0x1] 0
        %v169 = vlaneseq
        %v170 = vshrl.u32 %v169, 7
        %v171 = vmov %v170
        %173 = vst [vmem:[#allocation10] sm:$0xff] %v171
        loop: start=0, step=1, limit=3
        $region22: #{custom-call.27} parent=19 // loop_pre_header
          _
        $region23: #{custom-call.27} parent=19 // loop_header
          %s175 = sphi 0, %s179
          %p176 = scmp.ge.s32.totalorder %s175, 3
        $region24: #{custom-call.27} parent=19 // loop_header_branch
          %178 = sbr.rel (%p176) target = $region28
        $region25: #{custom-call.27} parent=19 // loop_body
          %v180 = vstv %s175
          %v181 = vlaneseq
          %v182 = vshrl.u32 %v181, 7
          %v183 = vmov %v182
          %v184 = vld [vmem:[#allocation4] sm:$0xff]
          %v185 = vand.u32 2147483647, %v184
          %v187 = vstv %s175
          %vm188 = vcmp.ge.s32.totalorder %v183, %v187
          %vm189 = vcmp.lt.s32.totalorder %v183, 3
          %vm190 = vmand %vm188, %vm189
          %vm191 = vcmp.lt.f32.partialorder -inf, %v185
          %vm192 = vmand %vm190, %vm191
          %v193 = vsel %vm192, %v183, %v180
          %v194 = vsel %vm192, %v185, -inf
          %v195 = vrot.slane %v194, 1
          %v196 = vrot.slane %v193, 1
          %vm197 = vcmp.ge.f32.partialorder %v195, %v194
          %v198 = vsel %vm197, %v195, %v194
          %v199 = vsel %vm197, %v196, %v193
          %v200 = vrot.slane %v195, 1
          %v201 = vrot.slane %v196, 1
          %vm202 = vcmp.ge.f32.partialorder %v200, %v198
          %v203 = vsel %vm202, %v200, %v198
          %v204 = vsel %vm202, %v201, %v199
          %v205 = vrot.slane %v200, 1
          %v206 = vrot.slane %v201, 1
          %vm207 = vcmp.ge.f32.partialorder %v205, %v203
          %v208 = vsel %vm207, %v205, %v203
          %v209 = vsel %vm207, %v206, %v204
          %v210 = vrot.slane %v205, 1
          %v211 = vrot.slane %v206, 1
          %vm212 = vcmp.ge.f32.partialorder %v210, %v208
          %v213 = vsel %vm212, %v210, %v208
          %v214 = vsel %vm212, %v211, %v209
          %v215 = vrot.slane %v210, 1
          %v216 = vrot.slane %v211, 1
          %vm217 = vcmp.ge.f32.partialorder %v215, %v213
          %v218 = vsel %vm217, %v215, %v213
          %v219 = vsel %vm217, %v216, %v214
          %v220 = vrot.slane %v215, 1
          %v221 = vrot.slane %v216, 1
          %vm222 = vcmp.ge.f32.partialorder %v220, %v218
          %v223 = vsel %vm222, %v220, %v218
          %v224 = vsel %vm222, %v221, %v219
          %v225 = vrot.slane %v220, 1
          %v226 = vrot.slane %v221, 1
          %vm227 = vcmp.ge.f32.partialorder %v225, %v223
          %v228 = vsel %vm227, %v225, %v223
          %v229 = vsel %vm227, %v226, %v224
          %s230 = ssub.s32 128, %s175
          %231 = vrot.lane.b32.xlu0 %v229, %s230
          %v232 = vpop.permute.xlu0 %231
          %s233 = vtos %v232
          %v234 = vstv %s175
          %v235 = vlaneseq
          %v236 = vand.u32 %v235, 127
          %vm237 = vcmp.eq.s32.totalorder %v236, %v234
          %v238 = vstv %s233
          %v239 = vld [vmem:[%s165] ss:$0 sm:$0xff]
          %v240 = vsel %vm237, %v238, %v239
          %241 = vst [vmem:[%s165] sm:$0x1] %v240
          %s242 = scalar_lea.vmem [#allocation4], %s175
          %s243 = scalar_lea.vmem [#allocation4], %s233
          %v244 = vld [vmem:[%s242] ss:$0 sm:$0xff]
          %v245 = vld [vmem:[%s243] ss:$0 sm:$0xff]
          %246 = vst [vmem:[%s243] sm:$0x1] %v244
          %247 = vst [vmem:[%s242] sm:$0x1] %v245
          %s248 = scalar_lea.vmem [#allocation10], %s175
          %s249 = scalar_lea.vmem [#allocation10], %s233
          %v250 = vld [vmem:[%s248] ss:$0 sm:$0xff]
          %v251 = vld [vmem:[%s249] ss:$0 sm:$0xff]
          %252 = vst [vmem:[%s249] sm:$0x1] %v250
          %253 = vst [vmem:[%s248] sm:$0x1] %v251
          %vm254 = vcmp.ne.f32.partialorder %v245, 0.0
          %vm255 = vmand %vm237, %vm254
          %v256 = vsel %vm255, %v245, 1.0
          %v257 = vlaneseq
          %v258 = vand.u32 %v257, 127
          %v259 = vstv %s175
          %vm260 = vcmp.gt.s32.totalorder %v258, %v259
          %v261 = vsel %vm260, %v245, 0.0
          %v262 = vlaneseq
          %v263 = vshrl.u32 %v262, 7
          %v264 = vmov %v263
          %v265 = vld [vmem:[#allocation4] sm:$0xff]
          %v267 = vstv %s175
          %vm268 = vcmp.gt.s32.totalorder %v264, %v267
          %v269 = vsel %vm268, %v256, 1.0
          %v270 = vrcp.pop %v269
          %v271 = vmul.f32 %v265, %v270
          %vm272 = vmand %vm268, %vm237
          %v273 = vsel %vm272, %v271, 0.0
          %274 = vadd.xlane.f32.xlu0 %v273
          %v275 = vpop.xlane.xlu0 %274
          %v276 = vmul.f32 %v275, %v261
          %v277 = vsub.f32 %v271, %v276
          %278 = vst [vmem:[#allocation4] sm:$0xff] %v277
        $region26: #{custom-call.27} parent=19 // loop_footer
          %s179 = sadd.s32 1, %s175
        $region27: #{custom-call.27} parent=19 // loop_footer_branch
          %174 = sbr.rel target = $region23
        $region28: #{custom-call.27} parent=19 // loop_exit
          _
        %v279 = vld [vmem:[#allocation10] sm:$0xff]
        %s280 = scalar_lea.vmem [#allocation10], 8
        %s281 = scalar_lea.vmem [#allocation10], 16
        %s282 = scalar_lea.vmem [#allocation10], 24
        %s283 = scalar_lea.vmem [#allocation10], 32
        %s284 = scalar_lea.vmem [#allocation10], 40
        %s285 = scalar_lea.vmem [#allocation10], 48
        %s286 = scalar_lea.vmem [#allocation10], 56
        %s287 = scalar_lea.vmem [#allocation10], 64
        %s288 = scalar_lea.vmem [#allocation10], 72
        %s289 = scalar_lea.vmem [#allocation10], 80
        %s290 = scalar_lea.vmem [#allocation10], 88
        %s291 = scalar_lea.vmem [#allocation10], 96
        %s292 = scalar_lea.vmem [#allocation10], 104
        %s293 = scalar_lea.vmem [#allocation10], 112
        %s294 = scalar_lea.vmem [#allocation10], 120
        %295 = vxpose.xlu0.b32.start [1/16] %v279, 128
        %296 = vxpose.xlu0.b32.cont [2/16] 0, 128
        %297 = vxpose.xlu0.b32.cont [3/16] 0, 128
        %298 = vxpose.xlu0.b32.cont [4/16] 0, 128
        %299 = vxpose.xlu0.b32.cont [5/16] 0, 128
        %300 = vxpose.xlu0.b32.cont [6/16] 0, 128
        %301 = vxpose.xlu0.b32.cont [7/16] 0, 128
        %302 = vxpose.xlu0.b32.cont [8/16] 0, 128
        %303 = vxpose.xlu0.b32.cont [9/16] 0, 128
        %304 = vxpose.xlu0.b32.cont [10/16] 0, 128
        %305 = vxpose.xlu0.b32.cont [11/16] 0, 128
        %306 = vxpose.xlu0.b32.cont [12/16] 0, 128
        %307 = vxpose.xlu0.b32.cont [13/16] 0, 128
        %308 = vxpose.xlu0.b32.cont [14/16] 0, 128
        %309 = vxpose.xlu0.b32.cont [15/16] 0, 128
        %310 = vxpose.xlu0.b32.end [16/16] 0, 128
        %v311 = vpop.trf.xlu0
        %v312 = vpop.trf.xlu0
        %v313 = vpop.trf.xlu0
        %v314 = vpop.trf.xlu0
        %v315 = vpop.trf.xlu0
        %v316 = vpop.trf.xlu0
        %v317 = vpop.trf.xlu0
        %v318 = vpop.trf.xlu0
        %v319 = vpop.trf.xlu0
        %v320 = vpop.trf.xlu0
        %v321 = vpop.trf.xlu0
        %v322 = vpop.trf.xlu0
        %v323 = vpop.trf.xlu0
        %v324 = vpop.trf.xlu0
        %v325 = vpop.trf.xlu0
        %v326 = vpop.trf.xlu0
        %327 = vst [vmem:[%s167] sm:$0x1] %v311
        %s329 = sshll.u32 1, 4
        %s330 = ssub.s32 %s329, 1
        %v332 = vld [vmem:[#allocation4] sm:%s330]
        %s333 = sshll.u32 1, 4
        %s334 = ssub.s32 %s333, 1
        %335 = vst [vmem:[%s141] sm:%s334] %v332
        %s337 = sshll.u32 1, 2
        %s338 = ssub.s32 %s337, 1
        %v340 = vld [vmem:[#allocation6] sm:%s338]
        %s341 = sshll.u32 1, 2
        %s342 = ssub.s32 %s341, 1
        %343 = vst [vmem:[%s148] sm:%s342] %v340
        %s345 = sshll.u32 1, 2
        %s346 = ssub.s32 %s345, 1
        %v348 = vld [vmem:[#allocation8] sm:%s346]
        %s349 = sshll.u32 1, 2
        %s350 = ssub.s32 %s349, 1
        %351 = vst [vmem:[%s154] sm:%s350] %v348
        %s352 = sand.u32 %s17, 1
        %s353 = sand.u32 %s17, 1
        %s354 = smul.addr %s353, 4
        %s355 = scalar_lea.vmem [#allocation5], %s354
        %s356 = sand.u32 %s41, 1
        %s357 = scalar_lea.sflag [#allocation3], %s356
        %s358 = sand.u32 %s41, 1
        %s359 = smul.addr %s358, 2
        %s360 = scalar_lea.vmem [#allocation7], %s359
        %s361 = sand.u32 %s71, 1
        %s362 = sand.u32 %s71, 1
        %s363 = smul.addr %s362, 2
        %s364 = scalar_lea.vmem [#allocation9], %s363
        %s365 = smul.addr %s21, 2
        %s366 = sadd.s32 %s22, %s365
        %s367 = smul.addr %s366, 4
        %s368 = scalar_lea.vmem %s1, %s367
        // Predicated region
        $region29: #{custom-call.27} parent=19 // pred_check
          _
        $region30: #{custom-call.27} parent=19 // pred_check_branch
          %370 = sbr.rel (0) target = $region32
        $region31: #{custom-call.27} parent=19 // pred_region
          // Predicated region
          $region33: #{custom-call.27} parent=31 // pred_check
            _
          $region34: #{custom-call.27} parent=31 // pred_check_branch
            %372 = sbr.rel target = $region36
          $region35: #{custom-call.27} parent=31 // pred_region
            // Predicated region
            $region48: #{custom-call.27} parent=35 // pred_check
              _
            $region49: #{custom-call.27} parent=35 // pred_check_branch
              %388 = sbr.rel (0) target = $region51
            $region50: #{custom-call.27} parent=35 // pred_region
              %s390 = ssub.s32 16, 1
              loop: start=0, step=1, limit=1
              $region52: #{custom-call.27} parent=50 // loop_pre_header
                _
              $region53: #{custom-call.27} parent=50 // loop_header
                %s392 = sphi 0, %s396
                %p393 = scmp.ge.s32.totalorder %s392, 1
                %s397 = sphi %s355, %s355
                %s398 = sphi %s368, %s368
              $region54: #{custom-call.27} parent=50 // loop_header_branch
                %395 = sbr.rel (%p393) target = $region58
              $region55: #{custom-call.27} parent=50 // loop_body
                %v399 = vld [vmem:[%s397] sm:%s390]
                %400 = vst [vmem:[%s398] sm:%s390] %v399
              $region56: #{custom-call.27} parent=50 // loop_footer
                %s396 = sadd.s32 1, %s392
              $region57: #{custom-call.27} parent=50 // loop_footer_branch
                %391 = sbr.rel target = $region53
              $region58: #{custom-call.27} parent=50 // loop_exit
                _
            $region51: #{custom-call.27} parent=35 // pred_fallthru
              _
          $region36: #{custom-call.27} parent=31 // pred_fallthru
            _
          // Predicated region
          $region37: #{custom-call.27} parent=31 // pred_check
            _
          $region38: #{custom-call.27} parent=31 // pred_check_branch
            %374 = sbr.rel (0) target = $region40
          $region39: #{custom-call.27} parent=31 // pred_region
            %s376 = ssub.s32 16, 1
            loop: start=0, step=1, limit=1
            $region41: #{custom-call.27} parent=39 // loop_pre_header
              _
            $region42: #{custom-call.27} parent=39 // loop_header
              %s378 = sphi 0, %s382
              %p379 = scmp.ge.s32.totalorder %s378, 1
              %s383 = sphi %s355, %s355
              %s384 = sphi %s368, %s368
            $region43: #{custom-call.27} parent=39 // loop_header_branch
              %381 = sbr.rel (%p379) target = $region47
            $region44: #{custom-call.27} parent=39 // loop_body
              %v385 = vld [vmem:[%s383] sm:%s376]
              %386 = vst [vmem:[%s384] sm:%s376] %v385
            $region45: #{custom-call.27} parent=39 // loop_footer
              %s382 = sadd.s32 1, %s378
            $region46: #{custom-call.27} parent=39 // loop_footer_branch
              %377 = sbr.rel target = $region42
            $region47: #{custom-call.27} parent=39 // loop_exit
              _
          $region40: #{custom-call.27} parent=31 // pred_fallthru
            _
        $region32: #{custom-call.27} parent=19 // pred_fallthru
          _
        %401 = vnop
        // Predicated region
        $region59: #{custom-call.27} parent=19 // pred_check
          %p402 = pneg %p51
        $region60: #{custom-call.27} parent=19 // pred_check_branch
          %404 = sbr.rel (%p402) target = $region62
        $region61: #{custom-call.27} parent=19 // pred_region
          %s405 = sshrl.u32 %s22, 3
          %s407 = ssub.s32 32, 32
          %408 = vsyncadd %s357, %s407
          %s409 = sadd.s32 %s405, %s21
          %s410 = smul.addr %s409, 32
          %s411 = scalar_lea.hbm %s2, %s410
          %s413 = sshll.u32 %s360, 4
          %s414 = int_to_ptr.vmem [resolvable:$true] %s413
          %416 = dma.vmem_to_hbm [thread:$0]  %s414, 32, %s411, %s357
        $region62: #{custom-call.27} parent=19 // pred_fallthru
          _
        // Predicated region
        $region63: #{custom-call.27} parent=19 // pred_check
          %p417 = pneg %p81
        $region64: #{custom-call.27} parent=19 // pred_check_branch
          %419 = sbr.rel (%p417) target = $region66
        $region65: #{custom-call.27} parent=19 // pred_region
          %s420 = sshrl.u32 %s22, 3
          %s421 = sadd.s32 %s420, %s21
          %s422 = smul.addr %s421, 2
          %s423 = scalar_lea.vmem %s3, %s422
          // Predicated region
          $region67: #{custom-call.27} parent=65 // pred_check
            _
          $region68: #{custom-call.27} parent=65 // pred_check_branch
            %425 = sbr.rel (0) target = $region70
          $region69: #{custom-call.27} parent=65 // pred_region
            // Predicated region
            $region71: #{custom-call.27} parent=69 // pred_check
              _
            $region72: #{custom-call.27} parent=69 // pred_check_branch
              %427 = sbr.rel target = $region74
            $region73: #{custom-call.27} parent=69 // pred_region
              // Predicated region
              $region86: #{custom-call.27} parent=73 // pred_check
                _
              $region87: #{custom-call.27} parent=73 // pred_check_branch
                %443 = sbr.rel (0) target = $region89
              $region88: #{custom-call.27} parent=73 // pred_region
                %s445 = ssub.s32 4, 1
                loop: start=0, step=1, limit=1
                $region90: #{custom-call.27} parent=88 // loop_pre_header
                  _
                $region91: #{custom-call.27} parent=88 // loop_header
                  %s447 = sphi 0, %s451
                  %p448 = scmp.ge.s32.totalorder %s447, 1
                  %s452 = sphi %s364, %s364
                  %s453 = sphi %s423, %s423
                $region92: #{custom-call.27} parent=88 // loop_header_branch
                  %450 = sbr.rel (%p448) target = $region96
                $region93: #{custom-call.27} parent=88 // loop_body
                  %v454 = vld [vmem:[%s452] sm:%s445]
                  %455 = vst [vmem:[%s453] sm:%s445] %v454
                $region94: #{custom-call.27} parent=88 // loop_footer
                  %s451 = sadd.s32 1, %s447
                $region95: #{custom-call.27} parent=88 // loop_footer_branch
                  %446 = sbr.rel target = $region91
                $region96: #{custom-call.27} parent=88 // loop_exit
                  _
              $region89: #{custom-call.27} parent=73 // pred_fallthru
                _
            $region74: #{custom-call.27} parent=69 // pred_fallthru
              _
            // Predicated region
            $region75: #{custom-call.27} parent=69 // pred_check
              _
            $region76: #{custom-call.27} parent=69 // pred_check_branch
              %429 = sbr.rel (0) target = $region78
            $region77: #{custom-call.27} parent=69 // pred_region
              %s431 = ssub.s32 4, 1
              loop: start=0, step=1, limit=1
              $region79: #{custom-call.27} parent=77 // loop_pre_header
                _
              $region80: #{custom-call.27} parent=77 // loop_header
                %s433 = sphi 0, %s437
                %p434 = scmp.ge.s32.totalorder %s433, 1
                %s438 = sphi %s364, %s364
                %s439 = sphi %s423, %s423
              $region81: #{custom-call.27} parent=77 // loop_header_branch
                %436 = sbr.rel (%p434) target = $region85
              $region82: #{custom-call.27} parent=77 // loop_body
                %v440 = vld [vmem:[%s438] sm:%s431]
                %441 = vst [vmem:[%s439] sm:%s431] %v440
              $region83: #{custom-call.27} parent=77 // loop_footer
                %s437 = sadd.s32 1, %s433
              $region84: #{custom-call.27} parent=77 // loop_footer_branch
                %432 = sbr.rel target = $region80
              $region85: #{custom-call.27} parent=77 // loop_exit
                _
            $region78: #{custom-call.27} parent=69 // pred_fallthru
              _
          $region70: #{custom-call.27} parent=65 // pred_fallthru
            _
          %456 = vnop
        $region66: #{custom-call.27} parent=19 // pred_fallthru
          _
      $region20: #{custom-call.27} parent=5 // pred_fallthru
        _
      %p457 = scmp.le.s32.totalorder 2, %s12
      // Predicated region
      $region97: #{custom-call.27} parent=5 // pred_check
        %p458 = pneg %p457
      $region98: #{custom-call.27} parent=5 // pred_check_branch
        %460 = sbr.rel (%p458) target = $region100
      $region99: #{custom-call.27} parent=5 // pred_region
        %s461 = ssub.s32 %s12, 2
        %s462 = sand.u32 %s18, 1
        %s463 = sand.u32 %s18, 1
        %s464 = smul.addr %s463, 4
        %s465 = scalar_lea.vmem [#allocation5], %s464
        // Predicated region
        $region101: #{custom-call.27} parent=99 // pred_check
          %p466 = pneg %p57
        $region102: #{custom-call.27} parent=99 // pred_check_branch
          %468 = sbr.rel (%p466) target = $region104
        $region103: #{custom-call.27} parent=99 // pred_region
          %s469 = sand.u32 %s42, 1
          %s470 = scalar_lea.sflag [#allocation3], %s469
          %s471 = sand.u32 %s42, 1
          %s472 = smul.addr %s471, 2
          %s473 = scalar_lea.vmem [#allocation7], %s472
          %474 = dma.done %s470, 32
        $region104: #{custom-call.27} parent=99 // pred_fallthru
          _
        // Predicated region
        $region105: #{custom-call.27} parent=99 // pred_check
          %p475 = pneg %p87
        $region106: #{custom-call.27} parent=99 // pred_check_branch
          %477 = sbr.rel (%p475) target = $region108
        $region107: #{custom-call.27} parent=99 // pred_region
          %s478 = sand.u32 %s72, 1
          %s479 = sand.u32 %s72, 1
          %s480 = smul.addr %s479, 2
          %s481 = scalar_lea.vmem [#allocation9], %s480
        $region108: #{custom-call.27} parent=99 // pred_fallthru
          _
      $region100: #{custom-call.27} parent=5 // pred_fallthru
        _
    $region6: #{custom-call.27} parent=1 // loop_footer
      %s16 = sadd.s32 1, %s12
    $region7: #{custom-call.27} parent=1 // loop_footer_branch
      %11 = sbr.rel target = $region3
    $region8: #{custom-call.27} parent=1 // loop_exit
      _
    %482 = vsyncpa [#allocation2], 1
    %s483 = scalar_lea.sflag [#allocation2], 1
    %484 = vsyncpa %s483, 1
    %485 = vsyncpa [#allocation3], 1
    %s486 = scalar_lea.sflag [#allocation3], 1
    %487 = vsyncpa %s486, 1

// kernel: custom-call.22
$region0: #{custom-call.22}
  %s0 = inlined_call_operand.vmem [shape: f32[2,2,3,3], index: 0, kind: input, shape index: {}]
  %s1 = inlined_call_operand.vmem [shape: f32[2,2,3,3], index: 1, kind: output, shape index: {0}]
  %s2 = inlined_call_operand.hbm [shape: s32[2,2,3], index: 2, kind: output, shape index: {1}]
  %s3 = inlined_call_operand.vmem [shape: s32[2,2,3], index: 3, kind: output, shape index: {2}]
  %4 = xla_tuple %s1, %s2, %s3
  $region1: #{custom-call.22} parent=0
    #allocation0 [shape = 'u8[4096]{0}', space=vmem, size = 0x1000, scoped, tag = 'operand span for operand 0']
    #allocation1 [shape = 'u8[4096]{0}', space=vmem, size = 0x1000, scoped, tag = 'packed  for operand 0']
    #allocation2 [shape = 'u8[4096]{0}', space=vmem, size = 0x1000, scoped, tag = 'operand span for operand 1']
    #allocation3 [shape = 'u8[4096]{0}', space=vmem, size = 0x1000, scoped, tag = 'packed  for operand 1']
    #allocation4 [shape = 'u8[4096]{0}', space=vmem, size = 0x1000, scoped, tag = 'operand span for operand 2']
    #allocation5 [shape = 'u8[2048]{0}', space=vmem, size = 0x800, scoped, tag = 'packed  for operand 2']
    #allocation6 [shape = 's32[2]{0}', space=sflag, size = 0x8, scoped, tag = 'scoped memory for custom-call.22']
    #allocation7 [shape = 'u8[4096]{0}', space=vmem, size = 0x1000, scoped, tag = 'operand span for operand 3']
    #allocation8 [shape = 'u8[2048]{0}', space=vmem, size = 0x800, scoped, tag = 'packed  for operand 3']
    %5 = vsyncpa [#allocation6], 0
    %s6 = scalar_lea.sflag [#allocation6], 1
    %7 = vsyncpa %s6, 0
    loop: start=0, step=1, limit=6
    $region2: #{custom-call.22} parent=1 // loop_pre_header
      _
    $region3: #{custom-call.22} parent=1 // loop_header
      %s9 = sphi 0, %s13
      %p10 = scmp.ge.s32.totalorder %s9, 6
      %s16 = sphi 0, %s28
      %s17 = sphi 0, %s24
      %s18 = sphi 0, %s16
      %s19 = sphi 0, %s17
      %s20 = sphi 0, %s18
      %s21 = sphi 0, %s19
      %s35 = sphi 0, %s37
      %s38 = sphi 0, %s35
      %s39 = sphi 0, %s38
      %s55 = sphi 0, %s39
      %s65 = sphi 0, %s67
      %s68 = sphi 0, %s65
      %s69 = sphi 0, %s68
      %s85 = sphi 0, %s69
    $region4: #{custom-call.22} parent=1 // loop_header_branch
      %12 = sbr.rel (%p10) target = $region8
    $region5: #{custom-call.22} parent=1 // loop_body
      %s14 = ssub.s32 %s9, 1
      %s15 = ssub.s32 %s9, 2
      %s22 = sadd.s32 1, %s17
      %p23 = scmp.ge.s32.totalorder %s22, 2
      %s24 = scalar_select %p23, 0, %s22
      %s25 = sadd.s32 1, %s16
      %s26 = scalar_select %p23, %s25, %s16
      %p27 = scmp.ge.s32.totalorder %s26, 2
      %s28 = scalar_select %p27, 0, %s26
      %s29 = sshrl.u32 %s17, 3
      %s30 = sshrl.u32 %s24, 3
      %s31 = ssub.s32 %s16, %s28
      %s32 = ssub.s32 %s29, %s30
      %s33 = sor.u32 %s31, %s32
      %p34 = scmp.eq.s32.totalorder %s33, 0
      %s36 = sadd.s32 %s35, 1
      %s37 = scalar_select %p34, %s35, %s36
      %p40 = pneg %p34
      %p41 = scmp.eq.s32.totalorder %s9, 3
      %p42 = por %p40, %p41
      %p43 = scmp.ne.s32.totalorder %s35, %s38
      %p44 = scmp.eq.s32.totalorder %s9, 0
      %p45 = por %p43, %p44
      %p46 = scmp.ne.s32.totalorder %s35, %s38
      %p47 = scmp.eq.s32.totalorder %s14, 3
      %p48 = por %p46, %p47
      %p49 = scmp.ne.s32.totalorder %s38, %s39
      %p50 = scmp.eq.s32.totalorder %s14, 0
      %p51 = por %p49, %p50
      %p52 = scmp.ne.s32.totalorder %s38, %s39
      %p53 = scmp.eq.s32.totalorder %s15, 3
      %p54 = por %p52, %p53
      %p56 = scmp.ne.s32.totalorder %s39, %s55
      %p57 = scmp.eq.s32.totalorder %s15, 0
      %p58 = por %p56, %p57
      %s59 = sshrl.u32 %s17, 3
      %s60 = sshrl.u32 %s24, 3
      %s61 = ssub.s32 %s16, %s28
      %s62 = ssub.s32 %s59, %s60
      %s63 = sor.u32 %s61, %s62
      %p64 = scmp.eq.s32.totalorder %s63, 0
      %s66 = sadd.s32 %s65, 1
      %s67 = scalar_select %p64, %s65, %s66
      %p70 = pneg %p64
      %p71 = scmp.eq.s32.totalorder %s9, 3
      %p72 = por %p70, %p71
      %p73 = scmp.ne.s32.totalorder %s65, %s68
      %p74 = scmp.eq.s32.totalorder %s9, 0
      %p75 = por %p73, %p74
      %p76 = scmp.ne.s32.totalorder %s65, %s68
      %p77 = scmp.eq.s32.totalorder %s14, 3
      %p78 = por %p76, %p77
      %p79 = scmp.ne.s32.totalorder %s68, %s69
      %p80 = scmp.eq.s32.totalorder %s14, 0
      %p81 = por %p79, %p80
      %p82 = scmp.ne.s32.totalorder %s68, %s69
      %p83 = scmp.eq.s32.totalorder %s15, 3
      %p84 = por %p82, %p83
      %p86 = scmp.ne.s32.totalorder %s69, %s85
      %p87 = scmp.eq.s32.totalorder %s15, 0
      %p88 = por %p86, %p87
      %p89 = scmp.le.s32.totalorder 1, %s9
      %p90 = scmp.lt.s32.totalorder %s9, 5
      %p91 = pnand %p89, %p90
      %p92 = pneg %p91
      // Predicated region
      $region9: #{custom-call.22} parent=5 // pred_check
        _
      $region10: #{custom-call.22} parent=5 // pred_check_branch
        %94 = sbr.rel (%p91) target = $region12
      $region11: #{custom-call.22} parent=5 // pred_region
        %s95 = ssub.s32 %s9, 1
      $region12: #{custom-call.22} parent=5 // pred_fallthru
        _
      %p96 = scmp.lt.s32.totalorder %s9, 4
      // Predicated region
      $region13: #{custom-call.22} parent=5 // pred_check
        %p97 = pneg %p96
      $region14: #{custom-call.22} parent=5 // pred_check_branch
        %99 = sbr.rel (%p97) target = $region16
      $region15: #{custom-call.22} parent=5 // pred_region
        %s100 = sand.u32 %s9, 1
        %s101 = sand.u32 %s9, 1
        %s102 = smul.addr %s101, 4
        %s103 = scalar_lea.vmem [#allocation1], %s102
        %s104 = smul.addr %s16, 2
        %s105 = sadd.s32 %s17, %s104
        %s106 = smul.addr %s105, 4
        %s107 = scalar_lea.vmem %s0, %s106
        // Predicated region
        $region17: #{custom-call.22} parent=15 // pred_check
          _
        $region18: #{custom-call.22} parent=15 // pred_check_branch
          %109 = sbr.rel (0) target = $region20
        $region19: #{custom-call.22} parent=15 // pred_region
          // Predicated region
          $region21: #{custom-call.22} parent=19 // pred_check
            _
          $region22: #{custom-call.22} parent=19 // pred_check_branch
            %111 = sbr.rel target = $region24
          $region23: #{custom-call.22} parent=19 // pred_region
            // Predicated region
            $region36: #{custom-call.22} parent=23 // pred_check
              _
            $region37: #{custom-call.22} parent=23 // pred_check_branch
              %127 = sbr.rel (0) target = $region39
            $region38: #{custom-call.22} parent=23 // pred_region
              %s129 = ssub.s32 16, 1
              loop: start=0, step=1, limit=1
              $region40: #{custom-call.22} parent=38 // loop_pre_header
                _
              $region41: #{custom-call.22} parent=38 // loop_header
                %s131 = sphi 0, %s135
                %p132 = scmp.ge.s32.totalorder %s131, 1
                %s136 = sphi %s107, %s107
                %s137 = sphi %s103, %s103
              $region42: #{custom-call.22} parent=38 // loop_header_branch
                %134 = sbr.rel (%p132) target = $region46
              $region43: #{custom-call.22} parent=38 // loop_body
                %v138 = vld [vmem:[%s136] sm:%s129]
                %139 = vst [vmem:[%s137] sm:%s129] %v138
              $region44: #{custom-call.22} parent=38 // loop_footer
                %s135 = sadd.s32 1, %s131
              $region45: #{custom-call.22} parent=38 // loop_footer_branch
                %130 = sbr.rel target = $region41
              $region46: #{custom-call.22} parent=38 // loop_exit
                _
            $region39: #{custom-call.22} parent=23 // pred_fallthru
              _
          $region24: #{custom-call.22} parent=19 // pred_fallthru
            _
          // Predicated region
          $region25: #{custom-call.22} parent=19 // pred_check
            _
          $region26: #{custom-call.22} parent=19 // pred_check_branch
            %113 = sbr.rel (0) target = $region28
          $region27: #{custom-call.22} parent=19 // pred_region
            %s115 = ssub.s32 16, 1
            loop: start=0, step=1, limit=1
            $region29: #{custom-call.22} parent=27 // loop_pre_header
              _
            $region30: #{custom-call.22} parent=27 // loop_header
              %s117 = sphi 0, %s121
              %p118 = scmp.ge.s32.totalorder %s117, 1
              %s122 = sphi %s107, %s107
              %s123 = sphi %s103, %s103
            $region31: #{custom-call.22} parent=27 // loop_header_branch
              %120 = sbr.rel (%p118) target = $region35
            $region32: #{custom-call.22} parent=27 // loop_body
              %v124 = vld [vmem:[%s122] sm:%s115]
              %125 = vst [vmem:[%s123] sm:%s115] %v124
            $region33: #{custom-call.22} parent=27 // loop_footer
              %s121 = sadd.s32 1, %s117
            $region34: #{custom-call.22} parent=27 // loop_footer_branch
              %116 = sbr.rel target = $region30
            $region35: #{custom-call.22} parent=27 // loop_exit
              _
          $region28: #{custom-call.22} parent=19 // pred_fallthru
            _
        $region20: #{custom-call.22} parent=15 // pred_fallthru
          _
        %140 = vnop
      $region16: #{custom-call.22} parent=5 // pred_fallthru
        _
      %p141 = scmp.le.s32.totalorder 1, %s9
      %p142 = scmp.lt.s32.totalorder %s9, 5
      %p143 = pnand %p141, %p142
      %p144 = pneg %p143
      // Predicated region
      $region47: #{custom-call.22} parent=5 // pred_check
        _
      $region48: #{custom-call.22} parent=5 // pred_check_branch
        %146 = sbr.rel (%p143) target = $region50
      $region49: #{custom-call.22} parent=5 // pred_region
        #allocation9 [shape = 's32[3,128]{1,0}', space=vmem, size = 0x1000, scoped, tag = 'scratch for permutations']
        %s147 = ssub.s32 %s9, 1
        %s148 = sand.u32 %s14, 1
        %s149 = sand.u32 %s14, 1
        %s150 = smul.addr %s149, 4
        %s151 = scalar_lea.vmem [#allocation1], %s150
        %s152 = sand.u32 %s14, 1
        %s153 = sand.u32 %s14, 1
        %s154 = smul.addr %s153, 4
        %s155 = scalar_lea.vmem [#allocation1], %s154
        %s156 = sand.u32 %s14, 1
        %s157 = sand.u32 %s14, 1
        %s158 = smul.addr %s157, 4
        %s159 = scalar_lea.vmem [#allocation3], %s158
        %p160 = pneg %p51
        %p161 = pneg %p48
        %s162 = sand.u32 %s38, 1
        %s163 = scalar_lea.sflag [#allocation6], %s162
        %s164 = sand.u32 %s38, 1
        %s165 = smul.addr %s164, 2
        %s166 = scalar_lea.vmem [#allocation5], %s165
        %p167 = pneg %p81
        %p168 = pneg %p78
        %s169 = sand.u32 %s68, 1
        %s170 = sand.u32 %s68, 1
        %s171 = smul.addr %s170, 2
        %s172 = scalar_lea.vmem [#allocation8], %s171
        %s174 = sshll.u32 1, 4
        %s175 = ssub.s32 %s174, 1
        %v176 = vld [vmem:[%s155] sm:%s175]
        %177 = vst [vmem:[#allocation0] sm:%s175] %v176
        %s178 = sshrl.u32 %s19, 3
        %s179 = sshrl.u32 %s19, 3
        %v180 = vld [vmem:[#allocation0] sm:$0xff]
        %181 = vst [vmem:[#allocation2] sm:$0xff] %v180
        %s182 = sand.u32 %s19, 7
        %s183 = scalar_lea.vmem [#allocation4], %s182
        %s184 = sand.u32 %s19, 7
        %s185 = scalar_lea.vmem [#allocation7], %s184
        %186 = vst [vmem:[%s183] sm:$0x1] 0
        %v187 = vlaneseq
        %v188 = vshrl.u32 %v187, 7
        %v189 = vmov %v188
        %191 = vst [vmem:[#allocation9] sm:$0xff] %v189
        loop: start=0, step=1, limit=3
        $region52: #{custom-call.22} parent=49 // loop_pre_header
          _
        $region53: #{custom-call.22} parent=49 // loop_header
          %s193 = sphi 0, %s197
          %p194 = scmp.ge.s32.totalorder %s193, 3
        $region54: #{custom-call.22} parent=49 // loop_header_branch
          %196 = sbr.rel (%p194) target = $region58
        $region55: #{custom-call.22} parent=49 // loop_body
          %v198 = vstv %s193
          %v199 = vlaneseq
          %v200 = vshrl.u32 %v199, 7
          %v201 = vmov %v200
          %v202 = vld [vmem:[#allocation2] sm:$0xff]
          %v203 = vand.u32 2147483647, %v202
          %v205 = vstv %s193
          %vm206 = vcmp.ge.s32.totalorder %v201, %v205
          %vm207 = vcmp.lt.s32.totalorder %v201, 3
          %vm208 = vmand %vm206, %vm207
          %vm209 = vcmp.lt.f32.partialorder -inf, %v203
          %vm210 = vmand %vm208, %vm209
          %v211 = vsel %vm210, %v201, %v198
          %v212 = vsel %vm210, %v203, -inf
          %v213 = vrot.slane %v212, 1
          %v214 = vrot.slane %v211, 1
          %vm215 = vcmp.ge.f32.partialorder %v213, %v212
          %v216 = vsel %vm215, %v213, %v212
          %v217 = vsel %vm215, %v214, %v211
          %v218 = vrot.slane %v213, 1
          %v219 = vrot.slane %v214, 1
          %vm220 = vcmp.ge.f32.partialorder %v218, %v216
          %v221 = vsel %vm220, %v218, %v216
          %v222 = vsel %vm220, %v219, %v217
          %v223 = vrot.slane %v218, 1
          %v224 = vrot.slane %v219, 1
          %vm225 = vcmp.ge.f32.partialorder %v223, %v221
          %v226 = vsel %vm225, %v223, %v221
          %v227 = vsel %vm225, %v224, %v222
          %v228 = vrot.slane %v223, 1
          %v229 = vrot.slane %v224, 1
          %vm230 = vcmp.ge.f32.partialorder %v228, %v226
          %v231 = vsel %vm230, %v228, %v226
          %v232 = vsel %vm230, %v229, %v227
          %v233 = vrot.slane %v228, 1
          %v234 = vrot.slane %v229, 1
          %vm235 = vcmp.ge.f32.partialorder %v233, %v231
          %v236 = vsel %vm235, %v233, %v231
          %v237 = vsel %vm235, %v234, %v232
          %v238 = vrot.slane %v233, 1
          %v239 = vrot.slane %v234, 1
          %vm240 = vcmp.ge.f32.partialorder %v238, %v236
          %v241 = vsel %vm240, %v238, %v236
          %v242 = vsel %vm240, %v239, %v237
          %v243 = vrot.slane %v238, 1
          %v244 = vrot.slane %v239, 1
          %vm245 = vcmp.ge.f32.partialorder %v243, %v241
          %v246 = vsel %vm245, %v243, %v241
          %v247 = vsel %vm245, %v244, %v242
          %s248 = ssub.s32 128, %s193
          %249 = vrot.lane.b32.xlu0 %v247, %s248
          %v250 = vpop.permute.xlu0 %249
          %s251 = vtos %v250
          %v252 = vstv %s193
          %v253 = vlaneseq
          %v254 = vand.u32 %v253, 127
          %vm255 = vcmp.eq.s32.totalorder %v254, %v252
          %v256 = vstv %s251
          %v257 = vld [vmem:[%s183] ss:$0 sm:$0xff]
          %v258 = vsel %vm255, %v256, %v257
          %259 = vst [vmem:[%s183] sm:$0x1] %v258
          %s260 = scalar_lea.vmem [#allocation2], %s193
          %s261 = scalar_lea.vmem [#allocation2], %s251
          %v262 = vld [vmem:[%s260] ss:$0 sm:$0xff]
          %v263 = vld [vmem:[%s261] ss:$0 sm:$0xff]
          %264 = vst [vmem:[%s261] sm:$0x1] %v262
          %265 = vst [vmem:[%s260] sm:$0x1] %v263
          %s266 = scalar_lea.vmem [#allocation9], %s193
          %s267 = scalar_lea.vmem [#allocation9], %s251
          %v268 = vld [vmem:[%s266] ss:$0 sm:$0xff]
          %v269 = vld [vmem:[%s267] ss:$0 sm:$0xff]
          %270 = vst [vmem:[%s267] sm:$0x1] %v268
          %271 = vst [vmem:[%s266] sm:$0x1] %v269
          %vm272 = vcmp.ne.f32.partialorder %v263, 0.0
          %vm273 = vmand %vm255, %vm272
          %v274 = vsel %vm273, %v263, 1.0
          %v275 = vlaneseq
          %v276 = vand.u32 %v275, 127
          %v277 = vstv %s193
          %vm278 = vcmp.gt.s32.totalorder %v276, %v277
          %v279 = vsel %vm278, %v263, 0.0
          %v280 = vlaneseq
          %v281 = vshrl.u32 %v280, 7
          %v282 = vmov %v281
          %v283 = vld [vmem:[#allocation2] sm:$0xff]
          %v285 = vstv %s193
          %vm286 = vcmp.gt.s32.totalorder %v282, %v285
          %v287 = vsel %vm286, %v274, 1.0
          %v288 = vrcp.pop %v287
          %v289 = vmul.f32 %v283, %v288
          %vm290 = vmand %vm286, %vm255
          %v291 = vsel %vm290, %v289, 0.0
          %292 = vadd.xlane.f32.xlu0 %v291
          %v293 = vpop.xlane.xlu0 %292
          %v294 = vmul.f32 %v293, %v279
          %v295 = vsub.f32 %v289, %v294
          %296 = vst [vmem:[#allocation2] sm:$0xff] %v295
        $region56: #{custom-call.22} parent=49 // loop_footer
          %s197 = sadd.s32 1, %s193
        $region57: #{custom-call.22} parent=49 // loop_footer_branch
          %192 = sbr.rel target = $region53
        $region58: #{custom-call.22} parent=49 // loop_exit
          _
        %v297 = vld [vmem:[#allocation9] sm:$0xff]
        %s298 = scalar_lea.vmem [#allocation9], 8
        %s299 = scalar_lea.vmem [#allocation9], 16
        %s300 = scalar_lea.vmem [#allocation9], 24
        %s301 = scalar_lea.vmem [#allocation9], 32
        %s302 = scalar_lea.vmem [#allocation9], 40
        %s303 = scalar_lea.vmem [#allocation9], 48
        %s304 = scalar_lea.vmem [#allocation9], 56
        %s305 = scalar_lea.vmem [#allocation9], 64
        %s306 = scalar_lea.vmem [#allocation9], 72
        %s307 = scalar_lea.vmem [#allocation9], 80
        %s308 = scalar_lea.vmem [#allocation9], 88
        %s309 = scalar_lea.vmem [#allocation9], 96
        %s310 = scalar_lea.vmem [#allocation9], 104
        %s311 = scalar_lea.vmem [#allocation9], 112
        %s312 = scalar_lea.vmem [#allocation9], 120
        %313 = vxpose.xlu0.b32.start [1/16] %v297, 128
        %314 = vxpose.xlu0.b32.cont [2/16] 0, 128
        %315 = vxpose.xlu0.b32.cont [3/16] 0, 128
        %316 = vxpose.xlu0.b32.cont [4/16] 0, 128
        %317 = vxpose.xlu0.b32.cont [5/16] 0, 128
        %318 = vxpose.xlu0.b32.cont [6/16] 0, 128
        %319 = vxpose.xlu0.b32.cont [7/16] 0, 128
        %320 = vxpose.xlu0.b32.cont [8/16] 0, 128
        %321 = vxpose.xlu0.b32.cont [9/16] 0, 128
        %322 = vxpose.xlu0.b32.cont [10/16] 0, 128
        %323 = vxpose.xlu0.b32.cont [11/16] 0, 128
        %324 = vxpose.xlu0.b32.cont [12/16] 0, 128
        %325 = vxpose.xlu0.b32.cont [13/16] 0, 128
        %326 = vxpose.xlu0.b32.cont [14/16] 0, 128
        %327 = vxpose.xlu0.b32.cont [15/16] 0, 128
        %328 = vxpose.xlu0.b32.end [16/16] 0, 128
        %v329 = vpop.trf.xlu0
        %v330 = vpop.trf.xlu0
        %v331 = vpop.trf.xlu0
        %v332 = vpop.trf.xlu0
        %v333 = vpop.trf.xlu0
        %v334 = vpop.trf.xlu0
        %v335 = vpop.trf.xlu0
        %v336 = vpop.trf.xlu0
        %v337 = vpop.trf.xlu0
        %v338 = vpop.trf.xlu0
        %v339 = vpop.trf.xlu0
        %v340 = vpop.trf.xlu0
        %v341 = vpop.trf.xlu0
        %v342 = vpop.trf.xlu0
        %v343 = vpop.trf.xlu0
        %v344 = vpop.trf.xlu0
        %345 = vst [vmem:[%s185] sm:$0x1] %v329
        %s347 = sshll.u32 1, 4
        %s348 = ssub.s32 %s347, 1
        %v350 = vld [vmem:[#allocation2] sm:%s348]
        %s351 = sshll.u32 1, 4
        %s352 = ssub.s32 %s351, 1
        %353 = vst [vmem:[%s159] sm:%s352] %v350
        %s355 = sshll.u32 1, 2
        %s356 = ssub.s32 %s355, 1
        %v358 = vld [vmem:[#allocation4] sm:%s356]
        %s359 = sshll.u32 1, 2
        %s360 = ssub.s32 %s359, 1
        %361 = vst [vmem:[%s166] sm:%s360] %v358
        %s363 = sshll.u32 1, 2
        %s364 = ssub.s32 %s363, 1
        %v366 = vld [vmem:[#allocation7] sm:%s364]
        %s367 = sshll.u32 1, 2
        %s368 = ssub.s32 %s367, 1
        %369 = vst [vmem:[%s172] sm:%s368] %v366
        %s370 = sand.u32 %s14, 1
        %s371 = sand.u32 %s14, 1
        %s372 = smul.addr %s371, 4
        %s373 = scalar_lea.vmem [#allocation3], %s372
        %s374 = sand.u32 %s38, 1
        %s375 = scalar_lea.sflag [#allocation6], %s374
        %s376 = sand.u32 %s38, 1
        %s377 = smul.addr %s376, 2
        %s378 = scalar_lea.vmem [#allocation5], %s377
        %s379 = sand.u32 %s68, 1
        %s380 = sand.u32 %s68, 1
        %s381 = smul.addr %s380, 2
        %s382 = scalar_lea.vmem [#allocation8], %s381
        %s383 = smul.addr %s18, 2
        %s384 = sadd.s32 %s19, %s383
        %s385 = smul.addr %s384, 4
        %s386 = scalar_lea.vmem %s1, %s385
        // Predicated region
        $region59: #{custom-call.22} parent=49 // pred_check
          _
        $region60: #{custom-call.22} parent=49 // pred_check_branch
          %388 = sbr.rel (0) target = $region62
        $region61: #{custom-call.22} parent=49 // pred_region
          // Predicated region
          $region63: #{custom-call.22} parent=61 // pred_check
            _
          $region64: #{custom-call.22} parent=61 // pred_check_branch
            %390 = sbr.rel target = $region66
          $region65: #{custom-call.22} parent=61 // pred_region
            // Predicated region
            $region78: #{custom-call.22} parent=65 // pred_check
              _
            $region79: #{custom-call.22} parent=65 // pred_check_branch
              %406 = sbr.rel (0) target = $region81
            $region80: #{custom-call.22} parent=65 // pred_region
              %s408 = ssub.s32 16, 1
              loop: start=0, step=1, limit=1
              $region82: #{custom-call.22} parent=80 // loop_pre_header
                _
              $region83: #{custom-call.22} parent=80 // loop_header
                %s410 = sphi 0, %s414
                %p411 = scmp.ge.s32.totalorder %s410, 1
                %s415 = sphi %s373, %s373
                %s416 = sphi %s386, %s386
              $region84: #{custom-call.22} parent=80 // loop_header_branch
                %413 = sbr.rel (%p411) target = $region88
              $region85: #{custom-call.22} parent=80 // loop_body
                %v417 = vld [vmem:[%s415] sm:%s408]
                %418 = vst [vmem:[%s416] sm:%s408] %v417
              $region86: #{custom-call.22} parent=80 // loop_footer
                %s414 = sadd.s32 1, %s410
              $region87: #{custom-call.22} parent=80 // loop_footer_branch
                %409 = sbr.rel target = $region83
              $region88: #{custom-call.22} parent=80 // loop_exit
                _
            $region81: #{custom-call.22} parent=65 // pred_fallthru
              _
          $region66: #{custom-call.22} parent=61 // pred_fallthru
            _
          // Predicated region
          $region67: #{custom-call.22} parent=61 // pred_check
            _
          $region68: #{custom-call.22} parent=61 // pred_check_branch
            %392 = sbr.rel (0) target = $region70
          $region69: #{custom-call.22} parent=61 // pred_region
            %s394 = ssub.s32 16, 1
            loop: start=0, step=1, limit=1
            $region71: #{custom-call.22} parent=69 // loop_pre_header
              _
            $region72: #{custom-call.22} parent=69 // loop_header
              %s396 = sphi 0, %s400
              %p397 = scmp.ge.s32.totalorder %s396, 1
              %s401 = sphi %s373, %s373
              %s402 = sphi %s386, %s386
            $region73: #{custom-call.22} parent=69 // loop_header_branch
              %399 = sbr.rel (%p397) target = $region77
            $region74: #{custom-call.22} parent=69 // loop_body
              %v403 = vld [vmem:[%s401] sm:%s394]
              %404 = vst [vmem:[%s402] sm:%s394] %v403
            $region75: #{custom-call.22} parent=69 // loop_footer
              %s400 = sadd.s32 1, %s396
            $region76: #{custom-call.22} parent=69 // loop_footer_branch
              %395 = sbr.rel target = $region72
            $region77: #{custom-call.22} parent=69 // loop_exit
              _
          $region70: #{custom-call.22} parent=61 // pred_fallthru
            _
        $region62: #{custom-call.22} parent=49 // pred_fallthru
          _
        %419 = vnop
        // Predicated region
        $region89: #{custom-call.22} parent=49 // pred_check
          %p420 = pneg %p48
        $region90: #{custom-call.22} parent=49 // pred_check_branch
          %422 = sbr.rel (%p420) target = $region92
        $region91: #{custom-call.22} parent=49 // pred_region
          %s423 = sshrl.u32 %s19, 3
          %s425 = ssub.s32 32, 32
          %426 = vsyncadd %s375, %s425
          %s427 = sadd.s32 %s423, %s18
          %s428 = smul.addr %s427, 32
          %s429 = scalar_lea.hbm %s2, %s428
          %s431 = sshll.u32 %s378, 4
          %s432 = int_to_ptr.vmem [resolvable:$true] %s431
          %434 = dma.vmem_to_hbm [thread:$0]  %s432, 32, %s429, %s375
        $region92: #{custom-call.22} parent=49 // pred_fallthru
          _
        // Predicated region
        $region93: #{custom-call.22} parent=49 // pred_check
          %p435 = pneg %p78
        $region94: #{custom-call.22} parent=49 // pred_check_branch
          %437 = sbr.rel (%p435) target = $region96
        $region95: #{custom-call.22} parent=49 // pred_region
          %s438 = sshrl.u32 %s19, 3
          %s439 = sadd.s32 %s438, %s18
          %s440 = smul.addr %s439, 2
          %s441 = scalar_lea.vmem %s3, %s440
          // Predicated region
          $region97: #{custom-call.22} parent=95 // pred_check
            _
          $region98: #{custom-call.22} parent=95 // pred_check_branch
            %443 = sbr.rel (0) target = $region100
          $region99: #{custom-call.22} parent=95 // pred_region
            // Predicated region
            $region101: #{custom-call.22} parent=99 // pred_check
              _
            $region102: #{custom-call.22} parent=99 // pred_check_branch
              %445 = sbr.rel target = $region104
            $region103: #{custom-call.22} parent=99 // pred_region
              // Predicated region
              $region116: #{custom-call.22} parent=103 // pred_check
                _
              $region117: #{custom-call.22} parent=103 // pred_check_branch
                %461 = sbr.rel (0) target = $region119
              $region118: #{custom-call.22} parent=103 // pred_region
                %s463 = ssub.s32 4, 1
                loop: start=0, step=1, limit=1
                $region120: #{custom-call.22} parent=118 // loop_pre_header
                  _
                $region121: #{custom-call.22} parent=118 // loop_header
                  %s465 = sphi 0, %s469
                  %p466 = scmp.ge.s32.totalorder %s465, 1
                  %s470 = sphi %s382, %s382
                  %s471 = sphi %s441, %s441
                $region122: #{custom-call.22} parent=118 // loop_header_branch
                  %468 = sbr.rel (%p466) target = $region126
                $region123: #{custom-call.22} parent=118 // loop_body
                  %v472 = vld [vmem:[%s470] sm:%s463]
                  %473 = vst [vmem:[%s471] sm:%s463] %v472
                $region124: #{custom-call.22} parent=118 // loop_footer
                  %s469 = sadd.s32 1, %s465
                $region125: #{custom-call.22} parent=118 // loop_footer_branch
                  %464 = sbr.rel target = $region121
                $region126: #{custom-call.22} parent=118 // loop_exit
                  _
              $region119: #{custom-call.22} parent=103 // pred_fallthru
                _
            $region104: #{custom-call.22} parent=99 // pred_fallthru
              _
            // Predicated region
            $region105: #{custom-call.22} parent=99 // pred_check
              _
            $region106: #{custom-call.22} parent=99 // pred_check_branch
              %447 = sbr.rel (0) target = $region108
            $region107: #{custom-call.22} parent=99 // pred_region
              %s449 = ssub.s32 4, 1
              loop: start=0, step=1, limit=1
              $region109: #{custom-call.22} parent=107 // loop_pre_header
                _
              $region110: #{custom-call.22} parent=107 // loop_header
                %s451 = sphi 0, %s455
                %p452 = scmp.ge.s32.totalorder %s451, 1
                %s456 = sphi %s382, %s382
                %s457 = sphi %s441, %s441
              $region111: #{custom-call.22} parent=107 // loop_header_branch
                %454 = sbr.rel (%p452) target = $region115
              $region112: #{custom-call.22} parent=107 // loop_body
                %v458 = vld [vmem:[%s456] sm:%s449]
                %459 = vst [vmem:[%s457] sm:%s449] %v458
              $region113: #{custom-call.22} parent=107 // loop_footer
                %s455 = sadd.s32 1, %s451
              $region114: #{custom-call.22} parent=107 // loop_footer_branch
                %450 = sbr.rel target = $region110
              $region115: #{custom-call.22} parent=107 // loop_exit
                _
            $region108: #{custom-call.22} parent=99 // pred_fallthru
              _
          $region100: #{custom-call.22} parent=95 // pred_fallthru
            _
          %474 = vnop
        $region96: #{custom-call.22} parent=49 // pred_fallthru
          _
      $region50: #{custom-call.22} parent=5 // pred_fallthru
        _
      %p475 = scmp.le.s32.totalorder 2, %s9
      // Predicated region
      $region127: #{custom-call.22} parent=5 // pred_check
        %p476 = pneg %p475
      $region128: #{custom-call.22} parent=5 // pred_check_branch
        %478 = sbr.rel (%p476) target = $region130
      $region129: #{custom-call.22} parent=5 // pred_region
        %s479 = ssub.s32 %s9, 2
        %s480 = sand.u32 %s15, 1
        %s481 = sand.u32 %s15, 1
        %s482 = smul.addr %s481, 4
        %s483 = scalar_lea.vmem [#allocation3], %s482
        // Predicated region
        $region131: #{custom-call.22} parent=129 // pred_check
          %p484 = pneg %p54
        $region132: #{custom-call.22} parent=129 // pred_check_branch
          %486 = sbr.rel (%p484) target = $region134
        $region133: #{custom-call.22} parent=129 // pred_region
          %s487 = sand.u32 %s39, 1
          %s488 = scalar_lea.sflag [#allocation6], %s487
          %s489 = sand.u32 %s39, 1
          %s490 = smul.addr %s489, 2
          %s491 = scalar_lea.vmem [#allocation5], %s490
          %492 = dma.done %s488, 32
        $region134: #{custom-call.22} parent=129 // pred_fallthru
          _
        // Predicated region
        $region135: #{custom-call.22} parent=129 // pred_check
          %p493 = pneg %p84
        $region136: #{custom-call.22} parent=129 // pred_check_branch
          %495 = sbr.rel (%p493) target = $region138
        $region137: #{custom-call.22} parent=129 // pred_region
          %s496 = sand.u32 %s69, 1
          %s497 = sand.u32 %s69, 1
          %s498 = smul.addr %s497, 2
          %s499 = scalar_lea.vmem [#allocation8], %s498
        $region138: #{custom-call.22} parent=129 // pred_fallthru
          _
      $region130: #{custom-call.22} parent=5 // pred_fallthru
        _
    $region6: #{custom-call.22} parent=1 // loop_footer
      %s13 = sadd.s32 1, %s9
    $region7: #{custom-call.22} parent=1 // loop_footer_branch
      %8 = sbr.rel target = $region3
    $region8: #{custom-call.22} parent=1 // loop_exit
      _
    %500 = vsyncpa [#allocation6], 1
    %s501 = scalar_lea.sflag [#allocation6], 1
    %502 = vsyncpa %s501, 1

// kernel: custom-call.23
$region0: #{custom-call.23}
  %s0 = inlined_call_operand.vmem [shape: f32[2,2,1,3,3], index: 0, kind: input, shape index: {}]
  %s1 = inlined_call_operand.vmem [shape: f32[2,2,1,3,3], index: 1, kind: output, shape index: {}]
  $region1: #{custom-call.23} parent=0
    #allocation0 [shape = 'u8[4096]{0}', space=vmem, size = 0x1000, scoped, tag = 'operand span for operand 0']
    #allocation1 [shape = 'u8[4096]{0}', space=vmem, size = 0x1000, scoped, tag = 'packed  for operand 0']
    #allocation2 [shape = 'u8[4096]{0}', space=vmem, size = 0x1000, scoped, tag = 'operand span for operand 1']
    #allocation3 [shape = 'u8[4096]{0}', space=vmem, size = 0x1000, scoped, tag = 'packed  for operand 1']
    loop: start=0, step=1, limit=6
    $region2: #{custom-call.23} parent=1 // loop_pre_header
      _
    $region3: #{custom-call.23} parent=1 // loop_header
      %s3 = sphi 0, %s7
      %p4 = scmp.ge.s32.totalorder %s3, 6
      %s10 = sphi 0, %s43
      %s11 = sphi 0, %s39
      %s12 = sphi 0, %s35
      %s13 = sphi 0, %s31
      %s14 = sphi 0, %s27
      %s15 = sphi 0, %s10
      %s16 = sphi 0, %s11
      %s17 = sphi 0, %s12
      %s18 = sphi 0, %s13
      %s19 = sphi 0, %s14
      %s20 = sphi 0, %s15
      %s21 = sphi 0, %s16
      %s22 = sphi 0, %s17
      %s23 = sphi 0, %s18
      %s24 = sphi 0, %s19
    $region4: #{custom-call.23} parent=1 // loop_header_branch
      %6 = sbr.rel (%p4) target = $region8
    $region5: #{custom-call.23} parent=1 // loop_body
      %s8 = ssub.s32 %s3, 1
      %s9 = ssub.s32 %s3, 2
      %s25 = sadd.s32 1, %s14
      %p26 = scmp.ge.s32.totalorder %s25, 1
      %s27 = scalar_select %p26, 0, %s25
      %s28 = sadd.s32 1, %s13
      %s29 = scalar_select %p26, %s28, %s13
      %p30 = scmp.ge.s32.totalorder %s29, 1
      %s31 = scalar_select %p30, 0, %s29
      %s32 = sadd.s32 1, %s12
      %s33 = scalar_select %p30, %s32, %s12
      %p34 = scmp.ge.s32.totalorder %s33, 1
      %s35 = scalar_select %p34, 0, %s33
      %s36 = sadd.s32 1, %s11
      %s37 = scalar_select %p34, %s36, %s11
      %p38 = scmp.ge.s32.totalorder %s37, 2
      %s39 = scalar_select %p38, 0, %s37
      %s40 = sadd.s32 1, %s10
      %s41 = scalar_select %p38, %s40, %s10
      %p42 = scmp.ge.s32.totalorder %s41, 2
      %s43 = scalar_select %p42, 0, %s41
      %p44 = scmp.le.s32.totalorder 1, %s3
      %p45 = scmp.lt.s32.totalorder %s3, 5
      %p46 = pnand %p44, %p45
      %p47 = pneg %p46
      // Predicated region
      $region9: #{custom-call.23} parent=5 // pred_check
        _
      $region10: #{custom-call.23} parent=5 // pred_check_branch
        %49 = sbr.rel (%p46) target = $region12
      $region11: #{custom-call.23} parent=5 // pred_region
        %s50 = ssub.s32 %s3, 1
      $region12: #{custom-call.23} parent=5 // pred_fallthru
        _
      %p51 = scmp.lt.s32.totalorder %s3, 4
      // Predicated region
      $region13: #{custom-call.23} parent=5 // pred_check
        %p52 = pneg %p51
      $region14: #{custom-call.23} parent=5 // pred_check_branch
        %54 = sbr.rel (%p52) target = $region16
      $region15: #{custom-call.23} parent=5 // pred_region
        %s55 = sand.u32 %s3, 1
        %s56 = sand.u32 %s3, 1
        %s57 = smul.addr %s56, 4
        %s58 = scalar_lea.vmem [#allocation1], %s57
        %s59 = sadd.s32 %s14, %s13
        %s60 = sadd.s32 %s59, %s12
        %s61 = sadd.s32 %s60, %s11
        %s62 = smul.addr %s10, 2
        %s63 = sadd.s32 %s61, %s62
        %s64 = smul.addr %s63, 4
        %s65 = scalar_lea.vmem %s0, %s64
        // Predicated region
        $region17: #{custom-call.23} parent=15 // pred_check
          _
        $region18: #{custom-call.23} parent=15 // pred_check_branch
          %67 = sbr.rel (0) target = $region20
        $region19: #{custom-call.23} parent=15 // pred_region
          // Predicated region
          $region21: #{custom-call.23} parent=19 // pred_check
            _
          $region22: #{custom-call.23} parent=19 // pred_check_branch
            %69 = sbr.rel target = $region24
          $region23: #{custom-call.23} parent=19 // pred_region
            // Predicated region
            $region36: #{custom-call.23} parent=23 // pred_check
              _
            $region37: #{custom-call.23} parent=23 // pred_check_branch
              %85 = sbr.rel (0) target = $region39
            $region38: #{custom-call.23} parent=23 // pred_region
              %s87 = ssub.s32 16, 1
              loop: start=0, step=1, limit=1
              $region40: #{custom-call.23} parent=38 // loop_pre_header
                _
              $region41: #{custom-call.23} parent=38 // loop_header
                %s89 = sphi 0, %s93
                %p90 = scmp.ge.s32.totalorder %s89, 1
                %s94 = sphi %s65, %s65
                %s95 = sphi %s58, %s58
              $region42: #{custom-call.23} parent=38 // loop_header_branch
                %92 = sbr.rel (%p90) target = $region46
              $region43: #{custom-call.23} parent=38 // loop_body
                %v96 = vld [vmem:[%s94] sm:%s87]
                %97 = vst [vmem:[%s95] sm:%s87] %v96
              $region44: #{custom-call.23} parent=38 // loop_footer
                %s93 = sadd.s32 1, %s89
              $region45: #{custom-call.23} parent=38 // loop_footer_branch
                %88 = sbr.rel target = $region41
              $region46: #{custom-call.23} parent=38 // loop_exit
                _
            $region39: #{custom-call.23} parent=23 // pred_fallthru
              _
          $region24: #{custom-call.23} parent=19 // pred_fallthru
            _
          // Predicated region
          $region25: #{custom-call.23} parent=19 // pred_check
            _
          $region26: #{custom-call.23} parent=19 // pred_check_branch
            %71 = sbr.rel (0) target = $region28
          $region27: #{custom-call.23} parent=19 // pred_region
            %s73 = ssub.s32 16, 1
            loop: start=0, step=1, limit=1
            $region29: #{custom-call.23} parent=27 // loop_pre_header
              _
            $region30: #{custom-call.23} parent=27 // loop_header
              %s75 = sphi 0, %s79
              %p76 = scmp.ge.s32.totalorder %s75, 1
              %s80 = sphi %s65, %s65
              %s81 = sphi %s58, %s58
            $region31: #{custom-call.23} parent=27 // loop_header_branch
              %78 = sbr.rel (%p76) target = $region35
            $region32: #{custom-call.23} parent=27 // loop_body
              %v82 = vld [vmem:[%s80] sm:%s73]
              %83 = vst [vmem:[%s81] sm:%s73] %v82
            $region33: #{custom-call.23} parent=27 // loop_footer
              %s79 = sadd.s32 1, %s75
            $region34: #{custom-call.23} parent=27 // loop_footer_branch
              %74 = sbr.rel target = $region30
            $region35: #{custom-call.23} parent=27 // loop_exit
              _
          $region28: #{custom-call.23} parent=19 // pred_fallthru
            _
        $region20: #{custom-call.23} parent=15 // pred_fallthru
          _
        %98 = vnop
      $region16: #{custom-call.23} parent=5 // pred_fallthru
        _
      %p99 = scmp.le.s32.totalorder 1, %s3
      %p100 = scmp.lt.s32.totalorder %s3, 5
      %p101 = pnand %p99, %p100
      %p102 = pneg %p101
      // Predicated region
      $region47: #{custom-call.23} parent=5 // pred_check
        _
      $region48: #{custom-call.23} parent=5 // pred_check_branch
        %104 = sbr.rel (%p101) target = $region50
      $region49: #{custom-call.23} parent=5 // pred_region
        #allocation4 [shape = 'f32[3,3]{1,0}', space=vmem, size = 0x1000, scoped, tag = 'rescaled input a']
        %s105 = ssub.s32 %s3, 1
        %s106 = sand.u32 %s8, 1
        %s107 = sand.u32 %s8, 1
        %s108 = smul.addr %s107, 4
        %s109 = scalar_lea.vmem [#allocation1], %s108
        %s110 = sand.u32 %s8, 1
        %s111 = sand.u32 %s8, 1
        %s112 = smul.addr %s111, 4
        %s113 = scalar_lea.vmem [#allocation1], %s112
        %s114 = sand.u32 %s8, 1
        %s115 = sand.u32 %s8, 1
        %s116 = smul.addr %s115, 4
        %s117 = scalar_lea.vmem [#allocation3], %s116
        %s119 = sshll.u32 1, 4
        %s120 = ssub.s32 %s119, 1
        %v121 = vld [vmem:[%s113] sm:%s120]
        %122 = vst [vmem:[#allocation0] sm:%s120] %v121
        %v123 = vlaneseq
        %v124 = vand.u32 %v123, 127
        %vm125 = vcmp.lt.s32.totalorder %v124, 3
        %v126 = vlaneseq
        %v127 = vshrl.u32 %v126, 7
        %vm129 = vcmp.eq.s32.totalorder %v127, %v124
        %v130 = vld [vmem:[#allocation0] sm:$0xff]
        %v131 = vsel %vm129, %v130, 0.0
        %132 = vadd.xlane.f32.xlu0 %v131
        %v133 = vpop.xlane.xlu0 %132
        %vm134 = vcmp.le.s32.totalorder %v127, %v124
        %vm135 = vmand %vm134, %vm125
        %v136 = vsel %vm135, %v130, 0.0
        %v137 = vrcp.pop %v133
        %v138 = vmul.f32 %v136, %v137
        %139 = vst [vmem:[#allocation4] sm:$0xff] %v138
        %v140 = vlaneseq
        %v141 = vand.u32 %v140, 127
        %v142 = vlaneseq
        %v143 = vshrl.u32 %v142, 7
        %vm145 = vcmp.eq.s32.totalorder %v141, %v143
        %v146 = vlaneseq
        %v147 = vand.u32 %v146, 127
        %vm148 = vcmp.eq.s32.totalorder %v147, 2
        %v149 = vsel %vm148, 1.0, -1.0
        %v150 = vsel %vm145, %v149, 0.0
        %s151 = scalar_lea.vmem [#allocation4], 1
        %v152 = vld [vmem:[%s151] ss:$0 sm:$0xff]
        %v153 = vxor.u32 %v152, 2147483648
        %v154 = vlaneseq
        %v155 = vand.u32 %v154, 127
        %vm156 = vcmp.eq.s32.totalorder %v155, 1
        %v157 = vmul.f32 %v153, %v150
        %158 = vadd.xlane.f32.xlu0 %v157
        %v159 = vpop.xlane.xlu0 %158
        %v160 = vsel %vm156, %v159, %v150
        %v161 = vld [vmem:[#allocation4] ss:$0 sm:$0xff]
        %v162 = vxor.u32 %v161, 2147483648
        %v163 = vlaneseq
        %v164 = vand.u32 %v163, 127
        %vm165 = vcmp.eq.s32.totalorder %v164, 0
        %v166 = vmul.f32 %v162, %v160
        %167 = vadd.xlane.f32.xlu0 %v166
        %v168 = vpop.xlane.xlu0 %167
        %v169 = vsel %vm165, %v168, %v160
        %v170 = vrcp.pop %v133
        %v171 = vmul.f32 %v169, %v170
        %vm172 = vweird.f32 %v133
        %v173 = vsel %vm172, %v169, %v171
        %174 = vst [vmem:[#allocation2] sm:$0xff] %v173
        %s176 = sshll.u32 1, 4
        %s177 = ssub.s32 %s176, 1
        %v179 = vld [vmem:[#allocation2] sm:%s177]
        %s180 = sshll.u32 1, 4
        %s181 = ssub.s32 %s180, 1
        %182 = vst [vmem:[%s117] sm:%s181] %v179
        %s183 = sand.u32 %s8, 1
        %s184 = sand.u32 %s8, 1
        %s185 = smul.addr %s184, 4
        %s186 = scalar_lea.vmem [#allocation3], %s185
        %s187 = sadd.s32 %s19, %s18
        %s188 = sadd.s32 %s187, %s17
        %s189 = sadd.s32 %s188, %s16
        %s190 = smul.addr %s15, 2
        %s191 = sadd.s32 %s189, %s190
        %s192 = smul.addr %s191, 4
        %s193 = scalar_lea.vmem %s1, %s192
        // Predicated region
        $region51: #{custom-call.23} parent=49 // pred_check
          _
        $region52: #{custom-call.23} parent=49 // pred_check_branch
          %195 = sbr.rel (0) target = $region54
        $region53: #{custom-call.23} parent=49 // pred_region
          // Predicated region
          $region55: #{custom-call.23} parent=53 // pred_check
            _
          $region56: #{custom-call.23} parent=53 // pred_check_branch
            %197 = sbr.rel target = $region58
          $region57: #{custom-call.23} parent=53 // pred_region
            // Predicated region
            $region70: #{custom-call.23} parent=57 // pred_check
              _
            $region71: #{custom-call.23} parent=57 // pred_check_branch
              %213 = sbr.rel (0) target = $region73
            $region72: #{custom-call.23} parent=57 // pred_region
              %s215 = ssub.s32 16, 1
              loop: start=0, step=1, limit=1
              $region74: #{custom-call.23} parent=72 // loop_pre_header
                _
              $region75: #{custom-call.23} parent=72 // loop_header
                %s217 = sphi 0, %s221
                %p218 = scmp.ge.s32.totalorder %s217, 1
                %s222 = sphi %s186, %s186
                %s223 = sphi %s193, %s193
              $region76: #{custom-call.23} parent=72 // loop_header_branch
                %220 = sbr.rel (%p218) target = $region80
              $region77: #{custom-call.23} parent=72 // loop_body
                %v224 = vld [vmem:[%s222] sm:%s215]
                %225 = vst [vmem:[%s223] sm:%s215] %v224
              $region78: #{custom-call.23} parent=72 // loop_footer
                %s221 = sadd.s32 1, %s217
              $region79: #{custom-call.23} parent=72 // loop_footer_branch
                %216 = sbr.rel target = $region75
              $region80: #{custom-call.23} parent=72 // loop_exit
                _
            $region73: #{custom-call.23} parent=57 // pred_fallthru
              _
          $region58: #{custom-call.23} parent=53 // pred_fallthru
            _
          // Predicated region
          $region59: #{custom-call.23} parent=53 // pred_check
            _
          $region60: #{custom-call.23} parent=53 // pred_check_branch
            %199 = sbr.rel (0) target = $region62
          $region61: #{custom-call.23} parent=53 // pred_region
            %s201 = ssub.s32 16, 1
            loop: start=0, step=1, limit=1
            $region63: #{custom-call.23} parent=61 // loop_pre_header
              _
            $region64: #{custom-call.23} parent=61 // loop_header
              %s203 = sphi 0, %s207
              %p204 = scmp.ge.s32.totalorder %s203, 1
              %s208 = sphi %s186, %s186
              %s209 = sphi %s193, %s193
            $region65: #{custom-call.23} parent=61 // loop_header_branch
              %206 = sbr.rel (%p204) target = $region69
            $region66: #{custom-call.23} parent=61 // loop_body
              %v210 = vld [vmem:[%s208] sm:%s201]
              %211 = vst [vmem:[%s209] sm:%s201] %v210
            $region67: #{custom-call.23} parent=61 // loop_footer
              %s207 = sadd.s32 1, %s203
            $region68: #{custom-call.23} parent=61 // loop_footer_branch
              %202 = sbr.rel target = $region64
            $region69: #{custom-call.23} parent=61 // loop_exit
              _
          $region62: #{custom-call.23} parent=53 // pred_fallthru
            _
        $region54: #{custom-call.23} parent=49 // pred_fallthru
          _
        %226 = vnop
      $region50: #{custom-call.23} parent=5 // pred_fallthru
        _
      %p227 = scmp.le.s32.totalorder 2, %s3
      // Predicated region
      $region81: #{custom-call.23} parent=5 // pred_check
        %p228 = pneg %p227
      $region82: #{custom-call.23} parent=5 // pred_check_branch
        %230 = sbr.rel (%p228) target = $region84
      $region83: #{custom-call.23} parent=5 // pred_region
        %s231 = ssub.s32 %s3, 2
        %s232 = sand.u32 %s9, 1
        %s233 = sand.u32 %s9, 1
        %s234 = smul.addr %s233, 4
        %s235 = scalar_lea.vmem [#allocation3], %s234
      $region84: #{custom-call.23} parent=5 // pred_fallthru
        _
    $region6: #{custom-call.23} parent=1 // loop_footer
      %s7 = sadd.s32 1, %s3
    $region7: #{custom-call.23} parent=1 // loop_footer_branch
      %2 = sbr.rel target = $region3
    $region8: #{custom-call.23} parent=1 // loop_exit
      _

// kernel: custom-call.24
$region0: #{custom-call.24}
  %s0 = inlined_call_operand.vmem [shape: f32[2,2,1,3,3], index: 0, kind: input, shape index: {}]
  %s1 = inlined_call_operand.vmem [shape: f32[2,2,1,3,3], index: 1, kind: output, shape index: {}]
  $region1: #{custom-call.24} parent=0
    #allocation0 [shape = 'u8[4096]{0}', space=vmem, size = 0x1000, scoped, tag = 'operand span for operand 0']
    #allocation1 [shape = 'u8[4096]{0}', space=vmem, size = 0x1000, scoped, tag = 'packed  for operand 0']
    #allocation2 [shape = 'u8[4096]{0}', space=vmem, size = 0x1000, scoped, tag = 'operand span for operand 1']
    #allocation3 [shape = 'u8[4096]{0}', space=vmem, size = 0x1000, scoped, tag = 'packed  for operand 1']
    loop: start=0, step=1, limit=6
    $region2: #{custom-call.24} parent=1 // loop_pre_header
      _
    $region3: #{custom-call.24} parent=1 // loop_header
      %s3 = sphi 0, %s7
      %p4 = scmp.ge.s32.totalorder %s3, 6
      %s10 = sphi 0, %s43
      %s11 = sphi 0, %s39
      %s12 = sphi 0, %s35
      %s13 = sphi 0, %s31
      %s14 = sphi 0, %s27
      %s15 = sphi 0, %s10
      %s16 = sphi 0, %s11
      %s17 = sphi 0, %s12
      %s18 = sphi 0, %s13
      %s19 = sphi 0, %s14
      %s20 = sphi 0, %s15
      %s21 = sphi 0, %s16
      %s22 = sphi 0, %s17
      %s23 = sphi 0, %s18
      %s24 = sphi 0, %s19
    $region4: #{custom-call.24} parent=1 // loop_header_branch
      %6 = sbr.rel (%p4) target = $region8
    $region5: #{custom-call.24} parent=1 // loop_body
      %s8 = ssub.s32 %s3, 1
      %s9 = ssub.s32 %s3, 2
      %s25 = sadd.s32 1, %s14
      %p26 = scmp.ge.s32.totalorder %s25, 1
      %s27 = scalar_select %p26, 0, %s25
      %s28 = sadd.s32 1, %s13
      %s29 = scalar_select %p26, %s28, %s13
      %p30 = scmp.ge.s32.totalorder %s29, 1
      %s31 = scalar_select %p30, 0, %s29
      %s32 = sadd.s32 1, %s12
      %s33 = scalar_select %p30, %s32, %s12
      %p34 = scmp.ge.s32.totalorder %s33, 1
      %s35 = scalar_select %p34, 0, %s33
      %s36 = sadd.s32 1, %s11
      %s37 = scalar_select %p34, %s36, %s11
      %p38 = scmp.ge.s32.totalorder %s37, 2
      %s39 = scalar_select %p38, 0, %s37
      %s40 = sadd.s32 1, %s10
      %s41 = scalar_select %p38, %s40, %s10
      %p42 = scmp.ge.s32.totalorder %s41, 2
      %s43 = scalar_select %p42, 0, %s41
      %p44 = scmp.le.s32.totalorder 1, %s3
      %p45 = scmp.lt.s32.totalorder %s3, 5
      %p46 = pnand %p44, %p45
      %p47 = pneg %p46
      // Predicated region
      $region9: #{custom-call.24} parent=5 // pred_check
        _
      $region10: #{custom-call.24} parent=5 // pred_check_branch
        %49 = sbr.rel (%p46) target = $region12
      $region11: #{custom-call.24} parent=5 // pred_region
        %s50 = ssub.s32 %s3, 1
      $region12: #{custom-call.24} parent=5 // pred_fallthru
        _
      %p51 = scmp.lt.s32.totalorder %s3, 4
      // Predicated region
      $region13: #{custom-call.24} parent=5 // pred_check
        %p52 = pneg %p51
      $region14: #{custom-call.24} parent=5 // pred_check_branch
        %54 = sbr.rel (%p52) target = $region16
      $region15: #{custom-call.24} parent=5 // pred_region
        %s55 = sand.u32 %s3, 1
        %s56 = sand.u32 %s3, 1
        %s57 = smul.addr %s56, 4
        %s58 = scalar_lea.vmem [#allocation1], %s57
        %s59 = sadd.s32 %s14, %s13
        %s60 = sadd.s32 %s59, %s12
        %s61 = sadd.s32 %s60, %s11
        %s62 = smul.addr %s10, 2
        %s63 = sadd.s32 %s61, %s62
        %s64 = smul.addr %s63, 4
        %s65 = scalar_lea.vmem %s0, %s64
        // Predicated region
        $region17: #{custom-call.24} parent=15 // pred_check
          _
        $region18: #{custom-call.24} parent=15 // pred_check_branch
          %67 = sbr.rel (0) target = $region20
        $region19: #{custom-call.24} parent=15 // pred_region
          // Predicated region
          $region21: #{custom-call.24} parent=19 // pred_check
            _
          $region22: #{custom-call.24} parent=19 // pred_check_branch
            %69 = sbr.rel target = $region24
          $region23: #{custom-call.24} parent=19 // pred_region
            // Predicated region
            $region36: #{custom-call.24} parent=23 // pred_check
              _
            $region37: #{custom-call.24} parent=23 // pred_check_branch
              %85 = sbr.rel (0) target = $region39
            $region38: #{custom-call.24} parent=23 // pred_region
              %s87 = ssub.s32 16, 1
              loop: start=0, step=1, limit=1
              $region40: #{custom-call.24} parent=38 // loop_pre_header
                _
              $region41: #{custom-call.24} parent=38 // loop_header
                %s89 = sphi 0, %s93
                %p90 = scmp.ge.s32.totalorder %s89, 1
                %s94 = sphi %s65, %s65
                %s95 = sphi %s58, %s58
              $region42: #{custom-call.24} parent=38 // loop_header_branch
                %92 = sbr.rel (%p90) target = $region46
              $region43: #{custom-call.24} parent=38 // loop_body
                %v96 = vld [vmem:[%s94] sm:%s87]
                %97 = vst [vmem:[%s95] sm:%s87] %v96
              $region44: #{custom-call.24} parent=38 // loop_footer
                %s93 = sadd.s32 1, %s89
              $region45: #{custom-call.24} parent=38 // loop_footer_branch
                %88 = sbr.rel target = $region41
              $region46: #{custom-call.24} parent=38 // loop_exit
                _
            $region39: #{custom-call.24} parent=23 // pred_fallthru
              _
          $region24: #{custom-call.24} parent=19 // pred_fallthru
            _
          // Predicated region
          $region25: #{custom-call.24} parent=19 // pred_check
            _
          $region26: #{custom-call.24} parent=19 // pred_check_branch
            %71 = sbr.rel (0) target = $region28
          $region27: #{custom-call.24} parent=19 // pred_region
            %s73 = ssub.s32 16, 1
            loop: start=0, step=1, limit=1
            $region29: #{custom-call.24} parent=27 // loop_pre_header
              _
            $region30: #{custom-call.24} parent=27 // loop_header
              %s75 = sphi 0, %s79
              %p76 = scmp.ge.s32.totalorder %s75, 1
              %s80 = sphi %s65, %s65
              %s81 = sphi %s58, %s58
            $region31: #{custom-call.24} parent=27 // loop_header_branch
              %78 = sbr.rel (%p76) target = $region35
            $region32: #{custom-call.24} parent=27 // loop_body
              %v82 = vld [vmem:[%s80] sm:%s73]
              %83 = vst [vmem:[%s81] sm:%s73] %v82
            $region33: #{custom-call.24} parent=27 // loop_footer
              %s79 = sadd.s32 1, %s75
            $region34: #{custom-call.24} parent=27 // loop_footer_branch
              %74 = sbr.rel target = $region30
            $region35: #{custom-call.24} parent=27 // loop_exit
              _
          $region28: #{custom-call.24} parent=19 // pred_fallthru
            _
        $region20: #{custom-call.24} parent=15 // pred_fallthru
          _
        %98 = vnop
      $region16: #{custom-call.24} parent=5 // pred_fallthru
        _
      %p99 = scmp.le.s32.totalorder 1, %s3
      %p100 = scmp.lt.s32.totalorder %s3, 5
      %p101 = pnand %p99, %p100
      %p102 = pneg %p101
      // Predicated region
      $region47: #{custom-call.24} parent=5 // pred_check
        _
      $region48: #{custom-call.24} parent=5 // pred_check_branch
        %104 = sbr.rel (%p101) target = $region50
      $region49: #{custom-call.24} parent=5 // pred_region
        #allocation4 [shape = 'f32[3,3]{1,0}', space=vmem, size = 0x1000, scoped, tag = 'rescaled input a']
        %s105 = ssub.s32 %s3, 1
        %s106 = sand.u32 %s8, 1
        %s107 = sand.u32 %s8, 1
        %s108 = smul.addr %s107, 4
        %s109 = scalar_lea.vmem [#allocation1], %s108
        %s110 = sand.u32 %s8, 1
        %s111 = sand.u32 %s8, 1
        %s112 = smul.addr %s111, 4
        %s113 = scalar_lea.vmem [#allocation1], %s112
        %s114 = sand.u32 %s8, 1
        %s115 = sand.u32 %s8, 1
        %s116 = smul.addr %s115, 4
        %s117 = scalar_lea.vmem [#allocation3], %s116
        %s119 = sshll.u32 1, 4
        %s120 = ssub.s32 %s119, 1
        %v121 = vld [vmem:[%s113] sm:%s120]
        %122 = vst [vmem:[#allocation0] sm:%s120] %v121
        %v123 = vlaneseq
        %v124 = vand.u32 %v123, 127
        %vm125 = vcmp.lt.s32.totalorder %v124, 3
        %v126 = vlaneseq
        %v127 = vshrl.u32 %v126, 7
        %vm129 = vcmp.eq.s32.totalorder %v127, %v124
        %v130 = vld [vmem:[#allocation0] sm:$0xff]
        %v131 = vsel %vm129, %v130, 0.0
        %132 = vadd.xlane.f32.xlu0 %v131
        %v133 = vpop.xlane.xlu0 %132
        %vm134 = vcmp.ge.s32.totalorder %v127, %v124
        %vm135 = vmand %vm134, %vm125
        %v136 = vsel %vm135, %v130, 0.0
        %v137 = vrcp.pop %v133
        %v138 = vmul.f32 %v136, %v137
        %139 = vst [vmem:[#allocation4] sm:$0xff] %v138
        %v140 = vlaneseq
        %v141 = vand.u32 %v140, 127
        %v142 = vlaneseq
        %v143 = vshrl.u32 %v142, 7
        %vm145 = vcmp.eq.s32.totalorder %v141, %v143
        %v146 = vlaneseq
        %v147 = vand.u32 %v146, 127
        %vm148 = vcmp.eq.s32.totalorder %v147, 0
        %v149 = vsel %vm148, 1.0, -1.0
        %v150 = vsel %vm145, %v149, 0.0
        %s151 = scalar_lea.vmem [#allocation4], 1
        %v152 = vld [vmem:[%s151] ss:$0 sm:$0xff]
        %v153 = vxor.u32 %v152, 2147483648
        %v154 = vlaneseq
        %v155 = vand.u32 %v154, 127
        %vm156 = vcmp.eq.s32.totalorder %v155, 1
        %v157 = vmul.f32 %v153, %v150
        %158 = vadd.xlane.f32.xlu0 %v157
        %v159 = vpop.xlane.xlu0 %158
        %v160 = vsel %vm156, %v159, %v150
        %s161 = scalar_lea.vmem [#allocation4], 2
        %v162 = vld [vmem:[%s161] ss:$0 sm:$0xff]
        %v163 = vxor.u32 %v162, 2147483648
        %v164 = vlaneseq
        %v165 = vand.u32 %v164, 127
        %vm166 = vcmp.eq.s32.totalorder %v165, 2
        %v167 = vmul.f32 %v163, %v160
        %168 = vadd.xlane.f32.xlu0 %v167
        %v169 = vpop.xlane.xlu0 %168
        %v170 = vsel %vm166, %v169, %v160
        %v171 = vrcp.pop %v133
        %v172 = vmul.f32 %v170, %v171
        %vm173 = vweird.f32 %v133
        %v174 = vsel %vm173, %v170, %v172
        %175 = vst [vmem:[#allocation2] sm:$0xff] %v174
        %s177 = sshll.u32 1, 4
        %s178 = ssub.s32 %s177, 1
        %v180 = vld [vmem:[#allocation2] sm:%s178]
        %s181 = sshll.u32 1, 4
        %s182 = ssub.s32 %s181, 1
        %183 = vst [vmem:[%s117] sm:%s182] %v180
        %s184 = sand.u32 %s8, 1
        %s185 = sand.u32 %s8, 1
        %s186 = smul.addr %s185, 4
        %s187 = scalar_lea.vmem [#allocation3], %s186
        %s188 = sadd.s32 %s19, %s18
        %s189 = sadd.s32 %s188, %s17
        %s190 = sadd.s32 %s189, %s16
        %s191 = smul.addr %s15, 2
        %s192 = sadd.s32 %s190, %s191
        %s193 = smul.addr %s192, 4
        %s194 = scalar_lea.vmem %s1, %s193
        // Predicated region
        $region51: #{custom-call.24} parent=49 // pred_check
          _
        $region52: #{custom-call.24} parent=49 // pred_check_branch
          %196 = sbr.rel (0) target = $region54
        $region53: #{custom-call.24} parent=49 // pred_region
          // Predicated region
          $region55: #{custom-call.24} parent=53 // pred_check
            _
          $region56: #{custom-call.24} parent=53 // pred_check_branch
            %198 = sbr.rel target = $region58
          $region57: #{custom-call.24} parent=53 // pred_region
            // Predicated region
            $region70: #{custom-call.24} parent=57 // pred_check
              _
            $region71: #{custom-call.24} parent=57 // pred_check_branch
              %214 = sbr.rel (0) target = $region73
            $region72: #{custom-call.24} parent=57 // pred_region
              %s216 = ssub.s32 16, 1
              loop: start=0, step=1, limit=1
              $region74: #{custom-call.24} parent=72 // loop_pre_header
                _
              $region75: #{custom-call.24} parent=72 // loop_header
                %s218 = sphi 0, %s222
                %p219 = scmp.ge.s32.totalorder %s218, 1
                %s223 = sphi %s187, %s187
                %s224 = sphi %s194, %s194
              $region76: #{custom-call.24} parent=72 // loop_header_branch
                %221 = sbr.rel (%p219) target = $region80
              $region77: #{custom-call.24} parent=72 // loop_body
                %v225 = vld [vmem:[%s223] sm:%s216]
                %226 = vst [vmem:[%s224] sm:%s216] %v225
              $region78: #{custom-call.24} parent=72 // loop_footer
                %s222 = sadd.s32 1, %s218
              $region79: #{custom-call.24} parent=72 // loop_footer_branch
                %217 = sbr.rel target = $region75
              $region80: #{custom-call.24} parent=72 // loop_exit
                _
            $region73: #{custom-call.24} parent=57 // pred_fallthru
              _
          $region58: #{custom-call.24} parent=53 // pred_fallthru
            _
          // Predicated region
          $region59: #{custom-call.24} parent=53 // pred_check
            _
          $region60: #{custom-call.24} parent=53 // pred_check_branch
            %200 = sbr.rel (0) target = $region62
          $region61: #{custom-call.24} parent=53 // pred_region
            %s202 = ssub.s32 16, 1
            loop: start=0, step=1, limit=1
            $region63: #{custom-call.24} parent=61 // loop_pre_header
              _
            $region64: #{custom-call.24} parent=61 // loop_header
              %s204 = sphi 0, %s208
              %p205 = scmp.ge.s32.totalorder %s204, 1
              %s209 = sphi %s187, %s187
              %s210 = sphi %s194, %s194
            $region65: #{custom-call.24} parent=61 // loop_header_branch
              %207 = sbr.rel (%p205) target = $region69
            $region66: #{custom-call.24} parent=61 // loop_body
              %v211 = vld [vmem:[%s209] sm:%s202]
              %212 = vst [vmem:[%s210] sm:%s202] %v211
            $region67: #{custom-call.24} parent=61 // loop_footer
              %s208 = sadd.s32 1, %s204
            $region68: #{custom-call.24} parent=61 // loop_footer_branch
              %203 = sbr.rel target = $region64
            $region69: #{custom-call.24} parent=61 // loop_exit
              _
          $region62: #{custom-call.24} parent=53 // pred_fallthru
            _
        $region54: #{custom-call.24} parent=49 // pred_fallthru
          _
        %227 = vnop
      $region50: #{custom-call.24} parent=5 // pred_fallthru
        _
      %p228 = scmp.le.s32.totalorder 2, %s3
      // Predicated region
      $region81: #{custom-call.24} parent=5 // pred_check
        %p229 = pneg %p228
      $region82: #{custom-call.24} parent=5 // pred_check_branch
        %231 = sbr.rel (%p229) target = $region84
      $region83: #{custom-call.24} parent=5 // pred_region
        %s232 = ssub.s32 %s3, 2
        %s233 = sand.u32 %s9, 1
        %s234 = sand.u32 %s9, 1
        %s235 = smul.addr %s234, 4
        %s236 = scalar_lea.vmem [#allocation3], %s235
      $region84: #{custom-call.24} parent=5 // pred_fallthru
        _
    $region6: #{custom-call.24} parent=1 // loop_footer
      %s7 = sadd.s32 1, %s3
    $region7: #{custom-call.24} parent=1 // loop_footer_branch
      %2 = sbr.rel target = $region3
    $region8: #{custom-call.24} parent=1 // loop_exit
      _

// kernel: base_transform_forward.2
$region0: #{base_transform_forward.2}
  #allocation0 [shape = 'u32[]', space=smem, size = 0x4, offset = 0x4, fixed_abs, tag = 'smem constant byte address 0x4 - core index']
  #allocation1 [shape = 'u32[144,128]{1,0:T(1,128)}', space=vmem, size = 0x12000, scoped, tag = 'internal scratch']
  %s0 = inlined_call_operand.vmem [shape: f32[4,36], index: 0, kind: input, shape index: {}]
  %s1 = inlined_call_operand.vmem [shape: f32[3,4,128], index: 1, kind: input, shape index: {}]
  %s2 = inlined_call_operand.vmem [shape: s32[4,4,128], index: 2, kind: output, shape index: {}]
  %s3 = sld [smem:[#allocation0]]
  $region22: #{base_transform_forward.2} parent=0
    _
  %s5 = ssub.s32 1, %s3
  %s6 = scalar_select 0, %s5, %s3
  $region1: #{base_transform_forward.2} parent=0
    #allocation2 [shape = 'u8[2048]{0}', space=smem, size = 0x800, scoped, tag = 'input window, operand 0, single buffered']
    #allocation3 [shape = 's32[1]{0}', space=sflag, size = 0x4, scoped, tag = 'scoped memory for base_transform_forward.2']
    %7 = vsyncpa [#allocation3], 0
    // Predicated region
    $region2: #{base_transform_forward.2} parent=1 // pred_check
      _
    $region3: #{base_transform_forward.2} parent=1 // pred_check_branch
      %9 = sbr.rel (0) target = $region5
    $region4: #{base_transform_forward.2} parent=1 // pred_region
      %s11 = ssub.s32 64, 64
      %12 = vsyncadd [#allocation3], %s11
      %s14 = sshll.u32 %s0, 4
      %s15 = int_to_ptr.vmem [resolvable:$true] %s14
      %17 = dma.vmem_to_smem %s15, 64, [#allocation2], [#allocation3]
    $region5: #{base_transform_forward.2} parent=1 // pred_fallthru
      _
    // Predicated region
    $region6: #{base_transform_forward.2} parent=1 // pred_check
      _
    $region7: #{base_transform_forward.2} parent=1 // pred_check_branch
      %19 = sbr.rel (0) target = $region9
    $region8: #{base_transform_forward.2} parent=1 // pred_region
      _
    $region9: #{base_transform_forward.2} parent=1 // pred_fallthru
      _
    // Predicated region
    $region10: #{base_transform_forward.2} parent=1 // pred_check
      _
    $region11: #{base_transform_forward.2} parent=1 // pred_check_branch
      %21 = sbr.rel (0) target = $region13
    $region12: #{base_transform_forward.2} parent=1 // pred_region
      %22 = dma.done [#allocation3], 64
    $region13: #{base_transform_forward.2} parent=1 // pred_fallthru
      _
    %23 = sfence
    %v24 = vld [vmem:[%s1] sm:$0xf]
    %s25 = scalar_lea.vmem %s1, 4
    %v26 = vld [vmem:[%s25] sm:$0xf]
    %s27 = scalar_lea.vmem %s1, 8
    %v28 = vld [vmem:[%s27] sm:$0xf]
    %s29 = sld [smem:[#allocation2 + $0x9]]
    %v30 = vstv %s29
    %v31 = vsub.f32 %v24, %v30
    %s32 = sld [smem:[#allocation2 + $0xa]]
    %v33 = vstv %s32
    %v34 = vsub.f32 %v26, %v33
    %s35 = sld [smem:[#allocation2 + $0xb]]
    %v36 = vstv %s35
    %v37 = vsub.f32 %v28, %v36
    %s38 = sld [smem:[#allocation2]]
    %v39 = vstv %s38
    %v40 = vmul.f32 %v39, %v31
    %s41 = sld [smem:[#allocation2 + $0x1]]
    %v42 = vstv %s41
    %v43 = vmul.f32 %v42, %v34
    %v44 = vadd.f32 %v40, %v43
    %s45 = sld [smem:[#allocation2 + $0x2]]
    %v46 = vstv %s45
    %v47 = vmul.f32 %v46, %v37
    %v48 = vadd.f32 %v44, %v47
    %s49 = sld [smem:[#allocation2 + $0x3]]
    %v50 = vstv %s49
    %v51 = vmul.f32 %v50, %v31
    %s52 = sld [smem:[#allocation2 + $0x4]]
    %v53 = vstv %s52
    %v54 = vmul.f32 %v53, %v34
    %v55 = vadd.f32 %v51, %v54
    %s56 = sld [smem:[#allocation2 + $0x5]]
    %v57 = vstv %s56
    %v58 = vmul.f32 %v57, %v37
    %v59 = vadd.f32 %v55, %v58
    %s60 = sld [smem:[#allocation2 + $0x6]]
    %v61 = vstv %s60
    %v62 = vmul.f32 %v61, %v31
    %s63 = sld [smem:[#allocation2 + $0x7]]
    %v64 = vstv %s63
    %v65 = vmul.f32 %v64, %v34
    %v66 = vadd.f32 %v62, %v65
    %s67 = sld [smem:[#allocation2 + $0x8]]
    %v68 = vstv %s67
    %v69 = vmul.f32 %v68, %v37
    %v70 = vadd.f32 %v66, %v69
    %v71 = vmul.f32 %v48, %v70
    %v72 = vmul.f32 %v59, %v70
    %s73 = sld [smem:[#allocation2 + $0xc]]
    %v74 = vstv %s73
    %v75 = vmul.f32 %v74, %v71
    %s76 = sld [smem:[#allocation2 + $0xd]]
    %v77 = vstv %s76
    %v78 = vmul.f32 %v77, %v72
    %v79 = vadd.f32 %v75, %v78
    %s80 = sld [smem:[#allocation2 + $0xe]]
    %v81 = vstv %s80
    %v82 = vmul.f32 %v81, %v70
    %v83 = vadd.f32 %v79, %v82
    %s84 = sld [smem:[#allocation2 + $0x15]]
    %v85 = vstv %s84
    %v86 = vadd.f32 %v83, %v85
    %s87 = sld [smem:[#allocation2 + $0xf]]
    %v88 = vstv %s87
    %v89 = vmul.f32 %v88, %v71
    %s90 = sld [smem:[#allocation2 + $0x10]]
    %v91 = vstv %s90
    %v92 = vmul.f32 %v91, %v72
    %v93 = vadd.f32 %v89, %v92
    %s94 = sld [smem:[#allocation2 + $0x11]]
    %v95 = vstv %s94
    %v96 = vmul.f32 %v95, %v70
    %v97 = vadd.f32 %v93, %v96
    %s98 = sld [smem:[#allocation2 + $0x16]]
    %v99 = vstv %s98
    %v100 = vadd.f32 %v97, %v99
    %s101 = sld [smem:[#allocation2 + $0x12]]
    %v102 = vstv %s101
    %v103 = vmul.f32 %v102, %v71
    %s104 = sld [smem:[#allocation2 + $0x13]]
    %v105 = vstv %s104
    %v106 = vmul.f32 %v105, %v72
    %v107 = vadd.f32 %v103, %v106
    %s108 = sld [smem:[#allocation2 + $0x14]]
    %v109 = vstv %s108
    %v110 = vmul.f32 %v109, %v70
    %v111 = vadd.f32 %v107, %v110
    %s112 = sld [smem:[#allocation2 + $0x17]]
    %v113 = vstv %s112
    %v114 = vadd.f32 %v111, %v113
    %s115 = sld [smem:[#allocation2 + $0x18]]
    %v116 = vstv %s115
    %v117 = vmul.f32 %v116, %v86
    %s118 = sld [smem:[#allocation2 + $0x19]]
    %v119 = vstv %s118
    %v120 = vmul.f32 %v119, %v100
    %v121 = vadd.f32 %v117, %v120
    %s122 = sld [smem:[#allocation2 + $0x1a]]
    %v123 = vstv %s122
    %v124 = vmul.f32 %v123, %v114
    %v125 = vadd.f32 %v121, %v124
    %s126 = sld [smem:[#allocation2 + $0x21]]
    %v127 = vstv %s126
    %v128 = vadd.f32 %v125, %v127
    %s129 = sld [smem:[#allocation2 + $0x1b]]
    %v130 = vstv %s129
    %v131 = vmul.f32 %v130, %v86
    %s132 = sld [smem:[#allocation2 + $0x1c]]
    %v133 = vstv %s132
    %v134 = vmul.f32 %v133, %v100
    %v135 = vadd.f32 %v131, %v134
    %s136 = sld [smem:[#allocation2 + $0x1d]]
    %v137 = vstv %s136
    %v138 = vmul.f32 %v137, %v114
    %v139 = vadd.f32 %v135, %v138
    %s140 = sld [smem:[#allocation2 + $0x22]]
    %v141 = vstv %s140
    %v142 = vadd.f32 %v139, %v141
    %s143 = sld [smem:[#allocation2 + $0x1e]]
    %v144 = vstv %s143
    %v145 = vmul.f32 %v144, %v86
    %s146 = sld [smem:[#allocation2 + $0x1f]]
    %v147 = vstv %s146
    %v148 = vmul.f32 %v147, %v100
    %v149 = vadd.f32 %v145, %v148
    %s150 = sld [smem:[#allocation2 + $0x20]]
    %v151 = vstv %s150
    %v152 = vmul.f32 %v151, %v114
    %v153 = vadd.f32 %v149, %v152
    %s154 = sld [smem:[#allocation2 + $0x23]]
    %v155 = vstv %s154
    %v156 = vadd.f32 %v153, %v155
    %v157 = vsub.f32 %v128, -4.0
    %v158 = vcvt.f32.s32.to.zero.pseudo %v157
    %v159 = vsub.f32 %v142, -4.0
    %v160 = vcvt.f32.s32.to.zero.pseudo %v159
    %v161 = vsub.f32 %v156, -2.0
    %v162 = vrcp.pop 4.0
    %v163 = vmul.f32 %v161, %v162
    %v164 = vcvt.f32.s32.to.zero.pseudo %v163
    %vm165 = vcmp.ge.s32.totalorder %v158, 0
    %vm166 = vcmp.lt.s32.totalorder %v158, 8
    %vm167 = vmand %vm165, %vm166
    %vm168 = vcmp.ge.s32.totalorder %v160, 0
    %vm169 = vmand %vm167, %vm168
    %vm170 = vcmp.lt.s32.totalorder %v160, 8
    %vm171 = vmand %vm169, %vm170
    %vm172 = vcmp.ge.s32.totalorder %v164, 0
    %vm173 = vmand %vm171, %vm172
    %vm174 = vcmp.lt.s32.totalorder %v164, 1
    %vm175 = vmand %vm173, %vm174
    %v176 = vmul.u32 %v164, 8
    %v177 = vadd.s32 %v176, %v158
    %v178 = vmul.u32 %v177, 8
    %v179 = vadd.s32 %v178, %v160
    %v180 = vsel %vm175, %v179, 4294967295
    %181 = vst [vmem:[%s2] sm:$0xf] %v180
    %s182 = sld [smem:[#allocation2 + $0x89]]
    %v183 = vstv %s182
    %v184 = vsub.f32 %v24, %v183
    %s185 = sld [smem:[#allocation2 + $0x8a]]
    %v186 = vstv %s185
    %v187 = vsub.f32 %v26, %v186
    %s188 = sld [smem:[#allocation2 + $0x8b]]
    %v189 = vstv %s188
    %v190 = vsub.f32 %v28, %v189
    %s191 = sld [smem:[#allocation2 + $0x80]]
    %v192 = vstv %s191
    %v193 = vmul.f32 %v192, %v184
    %s194 = sld [smem:[#allocation2 + $0x81]]
    %v195 = vstv %s194
    %v196 = vmul.f32 %v195, %v187
    %v197 = vadd.f32 %v193, %v196
    %s198 = sld [smem:[#allocation2 + $0x82]]
    %v199 = vstv %s198
    %v200 = vmul.f32 %v199, %v190
    %v201 = vadd.f32 %v197, %v200
    %s202 = sld [smem:[#allocation2 + $0x83]]
    %v203 = vstv %s202
    %v204 = vmul.f32 %v203, %v184
    %s205 = sld [smem:[#allocation2 + $0x84]]
    %v206 = vstv %s205
    %v207 = vmul.f32 %v206, %v187
    %v208 = vadd.f32 %v204, %v207
    %s209 = sld [smem:[#allocation2 + $0x85]]
    %v210 = vstv %s209
    %v211 = vmul.f32 %v210, %v190
    %v212 = vadd.f32 %v208, %v211
    %s213 = sld [smem:[#allocation2 + $0x86]]
    %v214 = vstv %s213
    %v215 = vmul.f32 %v214, %v184
    %s216 = sld [smem:[#allocation2 + $0x87]]
    %v217 = vstv %s216
    %v218 = vmul.f32 %v217, %v187
    %v219 = vadd.f32 %v215, %v218
    %s220 = sld [smem:[#allocation2 + $0x88]]
    %v221 = vstv %s220
    %v222 = vmul.f32 %v221, %v190
    %v223 = vadd.f32 %v219, %v222
    %v224 = vmul.f32 %v201, %v223
    %v225 = vmul.f32 %v212, %v223
    %s226 = sld [smem:[#allocation2 + $0x8c]]
    %v227 = vstv %s226
    %v228 = vmul.f32 %v227, %v224
    %s229 = sld [smem:[#allocation2 + $0x8d]]
    %v230 = vstv %s229
    %v231 = vmul.f32 %v230, %v225
    %v232 = vadd.f32 %v228, %v231
    %s233 = sld [smem:[#allocation2 + $0x8e]]
    %v234 = vstv %s233
    %v235 = vmul.f32 %v234, %v223
    %v236 = vadd.f32 %v232, %v235
    %s237 = sld [smem:[#allocation2 + $0x95]]
    %v238 = vstv %s237
    %v239 = vadd.f32 %v236, %v238
    %s240 = sld [smem:[#allocation2 + $0x8f]]
    %v241 = vstv %s240
    %v242 = vmul.f32 %v241, %v224
    %s243 = sld [smem:[#allocation2 + $0x90]]
    %v244 = vstv %s243
    %v245 = vmul.f32 %v244, %v225
    %v246 = vadd.f32 %v242, %v245
    %s247 = sld [smem:[#allocation2 + $0x91]]
    %v248 = vstv %s247
    %v249 = vmul.f32 %v248, %v223
    %v250 = vadd.f32 %v246, %v249
    %s251 = sld [smem:[#allocation2 + $0x96]]
    %v252 = vstv %s251
    %v253 = vadd.f32 %v250, %v252
    %s254 = sld [smem:[#allocation2 + $0x92]]
    %v255 = vstv %s254
    %v256 = vmul.f32 %v255, %v224
    %s257 = sld [smem:[#allocation2 + $0x93]]
    %v258 = vstv %s257
    %v259 = vmul.f32 %v258, %v225
    %v260 = vadd.f32 %v256, %v259
    %s261 = sld [smem:[#allocation2 + $0x94]]
    %v262 = vstv %s261
    %v263 = vmul.f32 %v262, %v223
    %v264 = vadd.f32 %v260, %v263
    %s265 = sld [smem:[#allocation2 + $0x97]]
    %v266 = vstv %s265
    %v267 = vadd.f32 %v264, %v266
    %s268 = sld [smem:[#allocation2 + $0x98]]
    %v269 = vstv %s268
    %v270 = vmul.f32 %v269, %v239
    %s271 = sld [smem:[#allocation2 + $0x99]]
    %v272 = vstv %s271
    %v273 = vmul.f32 %v272, %v253
    %v274 = vadd.f32 %v270, %v273
    %s275 = sld [smem:[#allocation2 + $0x9a]]
    %v276 = vstv %s275
    %v277 = vmul.f32 %v276, %v267
    %v278 = vadd.f32 %v274, %v277
    %s279 = sld [smem:[#allocation2 + $0xa1]]
    %v280 = vstv %s279
    %v281 = vadd.f32 %v278, %v280
    %s282 = sld [smem:[#allocation2 + $0x9b]]
    %v283 = vstv %s282
    %v284 = vmul.f32 %v283, %v239
    %s285 = sld [smem:[#allocation2 + $0x9c]]
    %v286 = vstv %s285
    %v287 = vmul.f32 %v286, %v253
    %v288 = vadd.f32 %v284, %v287
    %s289 = sld [smem:[#allocation2 + $0x9d]]
    %v290 = vstv %s289
    %v291 = vmul.f32 %v290, %v267
    %v292 = vadd.f32 %v288, %v291
    %s293 = sld [smem:[#allocation2 + $0xa2]]
    %v294 = vstv %s293
    %v295 = vadd.f32 %v292, %v294
    %s296 = sld [smem:[#allocation2 + $0x9e]]
    %v297 = vstv %s296
    %v298 = vmul.f32 %v297, %v239
    %s299 = sld [smem:[#allocation2 + $0x9f]]
    %v300 = vstv %s299
    %v301 = vmul.f32 %v300, %v253
    %v302 = vadd.f32 %v298, %v301
    %s303 = sld [smem:[#allocation2 + $0xa0]]
    %v304 = vstv %s303
    %v305 = vmul.f32 %v304, %v267
    %v306 = vadd.f32 %v302, %v305
    %s307 = sld [smem:[#allocation2 + $0xa3]]
    %v308 = vstv %s307
    %v309 = vadd.f32 %v306, %v308
    %v310 = vsub.f32 %v281, -4.0
    %v311 = vcvt.f32.s32.to.zero.pseudo %v310
    %v312 = vsub.f32 %v295, -4.0
    %v313 = vcvt.f32.s32.to.zero.pseudo %v312
    %v314 = vsub.f32 %v309, -2.0
    %v315 = vmul.f32 %v314, %v162
    %v316 = vcvt.f32.s32.to.zero.pseudo %v315
    %vm317 = vcmp.ge.s32.totalorder %v311, 0
    %vm318 = vcmp.lt.s32.totalorder %v311, 8
    %vm319 = vmand %vm317, %vm318
    %vm320 = vcmp.ge.s32.totalorder %v313, 0
    %vm321 = vmand %vm319, %vm320
    %vm322 = vcmp.lt.s32.totalorder %v313, 8
    %vm323 = vmand %vm321, %vm322
    %vm324 = vcmp.ge.s32.totalorder %v316, 0
    %vm325 = vmand %vm323, %vm324
    %vm326 = vcmp.lt.s32.totalorder %v316, 1
    %vm327 = vmand %vm325, %vm326
    %v328 = vmul.u32 %v316, 8
    %v329 = vadd.s32 %v328, %v311
    %v330 = vmul.u32 %v329, 8
    %v331 = vadd.s32 %v330, %v313
    %v332 = vsel %vm327, %v331, 4294967295
    %s333 = scalar_lea.vmem %s2, 4
    %334 = vst [vmem:[%s333] sm:$0xf] %v332
    %s335 = sld [smem:[#allocation2 + $0x109]]
    %v336 = vstv %s335
    %v337 = vsub.f32 %v24, %v336
    %s338 = sld [smem:[#allocation2 + $0x10a]]
    %v339 = vstv %s338
    %v340 = vsub.f32 %v26, %v339
    %s341 = sld [smem:[#allocation2 + $0x10b]]
    %v342 = vstv %s341
    %v343 = vsub.f32 %v28, %v342
    %s344 = sld [smem:[#allocation2 + $0x100]]
    %v345 = vstv %s344
    %v346 = vmul.f32 %v345, %v337
    %s347 = sld [smem:[#allocation2 + $0x101]]
    %v348 = vstv %s347
    %v349 = vmul.f32 %v348, %v340
    %v350 = vadd.f32 %v346, %v349
    %s351 = sld [smem:[#allocation2 + $0x102]]
    %v352 = vstv %s351
    %v353 = vmul.f32 %v352, %v343
    %v354 = vadd.f32 %v350, %v353
    %s355 = sld [smem:[#allocation2 + $0x103]]
    %v356 = vstv %s355
    %v357 = vmul.f32 %v356, %v337
    %s358 = sld [smem:[#allocation2 + $0x104]]
    %v359 = vstv %s358
    %v360 = vmul.f32 %v359, %v340
    %v361 = vadd.f32 %v357, %v360
    %s362 = sld [smem:[#allocation2 + $0x105]]
    %v363 = vstv %s362
    %v364 = vmul.f32 %v363, %v343
    %v365 = vadd.f32 %v361, %v364
    %s366 = sld [smem:[#allocation2 + $0x106]]
    %v367 = vstv %s366
    %v368 = vmul.f32 %v367, %v337
    %s369 = sld [smem:[#allocation2 + $0x107]]
    %v370 = vstv %s369
    %v371 = vmul.f32 %v370, %v340
    %v372 = vadd.f32 %v368, %v371
    %s373 = sld [smem:[#allocation2 + $0x108]]
    %v374 = vstv %s373
    %v375 = vmul.f32 %v374, %v343
    %v376 = vadd.f32 %v372, %v375
    %v377 = vmul.f32 %v354, %v376
    %v378 = vmul.f32 %v365, %v376
    %s379 = sld [smem:[#allocation2 + $0x10c]]
    %v380 = vstv %s379
    %v381 = vmul.f32 %v380, %v377
    %s382 = sld [smem:[#allocation2 + $0x10d]]
    %v383 = vstv %s382
    %v384 = vmul.f32 %v383, %v378
    %v385 = vadd.f32 %v381, %v384
    %s386 = sld [smem:[#allocation2 + $0x10e]]
    %v387 = vstv %s386
    %v388 = vmul.f32 %v387, %v376
    %v389 = vadd.f32 %v385, %v388
    %s390 = sld [smem:[#allocation2 + $0x115]]
    %v391 = vstv %s390
    %v392 = vadd.f32 %v389, %v391
    %s393 = sld [smem:[#allocation2 + $0x10f]]
    %v394 = vstv %s393
    %v395 = vmul.f32 %v394, %v377
    %s396 = sld [smem:[#allocation2 + $0x110]]
    %v397 = vstv %s396
    %v398 = vmul.f32 %v397, %v378
    %v399 = vadd.f32 %v395, %v398
    %s400 = sld [smem:[#allocation2 + $0x111]]
    %v401 = vstv %s400
    %v402 = vmul.f32 %v401, %v376
    %v403 = vadd.f32 %v399, %v402
    %s404 = sld [smem:[#allocation2 + $0x116]]
    %v405 = vstv %s404
    %v406 = vadd.f32 %v403, %v405
    %s407 = sld [smem:[#allocation2 + $0x112]]
    %v408 = vstv %s407
    %v409 = vmul.f32 %v408, %v377
    %s410 = sld [smem:[#allocation2 + $0x113]]
    %v411 = vstv %s410
    %v412 = vmul.f32 %v411, %v378
    %v413 = vadd.f32 %v409, %v412
    %s414 = sld [smem:[#allocation2 + $0x114]]
    %v415 = vstv %s414
    %v416 = vmul.f32 %v415, %v376
    %v417 = vadd.f32 %v413, %v416
    %s418 = sld [smem:[#allocation2 + $0x117]]
    %v419 = vstv %s418
    %v420 = vadd.f32 %v417, %v419
    %s421 = sld [smem:[#allocation2 + $0x118]]
    %v422 = vstv %s421
    %v423 = vmul.f32 %v422, %v392
    %s424 = sld [smem:[#allocation2 + $0x119]]
    %v425 = vstv %s424
    %v426 = vmul.f32 %v425, %v406
    %v427 = vadd.f32 %v423, %v426
    %s428 = sld [smem:[#allocation2 + $0x11a]]
    %v429 = vstv %s428
    %v430 = vmul.f32 %v429, %v420
    %v431 = vadd.f32 %v427, %v430
    %s432 = sld [smem:[#allocation2 + $0x121]]
    %v433 = vstv %s432
    %v434 = vadd.f32 %v431, %v433
    %s435 = sld [smem:[#allocation2 + $0x11b]]
    %v436 = vstv %s435
    %v437 = vmul.f32 %v436, %v392
    %s438 = sld [smem:[#allocation2 + $0x11c]]
    %v439 = vstv %s438
    %v440 = vmul.f32 %v439, %v406
    %v441 = vadd.f32 %v437, %v440
    %s442 = sld [smem:[#allocation2 + $0x11d]]
    %v443 = vstv %s442
    %v444 = vmul.f32 %v443, %v420
    %v445 = vadd.f32 %v441, %v444
    %s446 = sld [smem:[#allocation2 + $0x122]]
    %v447 = vstv %s446
    %v448 = vadd.f32 %v445, %v447
    %s449 = sld [smem:[#allocation2 + $0x11e]]
    %v450 = vstv %s449
    %v451 = vmul.f32 %v450, %v392
    %s452 = sld [smem:[#allocation2 + $0x11f]]
    %v453 = vstv %s452
    %v454 = vmul.f32 %v453, %v406
    %v455 = vadd.f32 %v451, %v454
    %s456 = sld [smem:[#allocation2 + $0x120]]
    %v457 = vstv %s456
    %v458 = vmul.f32 %v457, %v420
    %v459 = vadd.f32 %v455, %v458
    %s460 = sld [smem:[#allocation2 + $0x123]]
    %v461 = vstv %s460
    %v462 = vadd.f32 %v459, %v461
    %v463 = vsub.f32 %v434, -4.0
    %v464 = vcvt.f32.s32.to.zero.pseudo %v463
    %v465 = vsub.f32 %v448, -4.0
    %v466 = vcvt.f32.s32.to.zero.pseudo %v465
    %v467 = vsub.f32 %v462, -2.0
    %v468 = vmul.f32 %v467, %v162
    %v469 = vcvt.f32.s32.to.zero.pseudo %v468
    %vm470 = vcmp.ge.s32.totalorder %v464, 0
    %vm471 = vcmp.lt.s32.totalorder %v464, 8
    %vm472 = vmand %vm470, %vm471
    %vm473 = vcmp.ge.s32.totalorder %v466, 0
    %vm474 = vmand %vm472, %vm473
    %vm475 = vcmp.lt.s32.totalorder %v466, 8
    %vm476 = vmand %vm474, %vm475
    %vm477 = vcmp.ge.s32.totalorder %v469, 0
    %vm478 = vmand %vm476, %vm477
    %vm479 = vcmp.lt.s32.totalorder %v469, 1
    %vm480 = vmand %vm478, %vm479
    %v481 = vadd.s32 %v469, 1
    %v482 = vmul.u32 %v481, 8
    %v483 = vadd.s32 %v482, %v464
    %v484 = vmul.u32 %v483, 8
    %v485 = vadd.s32 %v484, %v466
    %v486 = vsel %vm480, %v485, 4294967295
    %s487 = scalar_lea.vmem %s2, 8
    %488 = vst [vmem:[%s487] sm:$0xf] %v486
    %s489 = sld [smem:[#allocation2 + $0x189]]
    %v490 = vstv %s489
    %v491 = vsub.f32 %v24, %v490
    %s492 = sld [smem:[#allocation2 + $0x18a]]
    %v493 = vstv %s492
    %v494 = vsub.f32 %v26, %v493
    %s495 = sld [smem:[#allocation2 + $0x18b]]
    %v496 = vstv %s495
    %v497 = vsub.f32 %v28, %v496
    %s498 = sld [smem:[#allocation2 + $0x180]]
    %v499 = vstv %s498
    %v500 = vmul.f32 %v499, %v491
    %s501 = sld [smem:[#allocation2 + $0x181]]
    %v502 = vstv %s501
    %v503 = vmul.f32 %v502, %v494
    %v504 = vadd.f32 %v500, %v503
    %s505 = sld [smem:[#allocation2 + $0x182]]
    %v506 = vstv %s505
    %v507 = vmul.f32 %v506, %v497
    %v508 = vadd.f32 %v504, %v507
    %s509 = sld [smem:[#allocation2 + $0x183]]
    %v510 = vstv %s509
    %v511 = vmul.f32 %v510, %v491
    %s512 = sld [smem:[#allocation2 + $0x184]]
    %v513 = vstv %s512
    %v514 = vmul.f32 %v513, %v494
    %v515 = vadd.f32 %v511, %v514
    %s516 = sld [smem:[#allocation2 + $0x185]]
    %v517 = vstv %s516
    %v518 = vmul.f32 %v517, %v497
    %v519 = vadd.f32 %v515, %v518
    %s520 = sld [smem:[#allocation2 + $0x186]]
    %v521 = vstv %s520
    %v522 = vmul.f32 %v521, %v491
    %s523 = sld [smem:[#allocation2 + $0x187]]
    %v524 = vstv %s523
    %v525 = vmul.f32 %v524, %v494
    %v526 = vadd.f32 %v522, %v525
    %s527 = sld [smem:[#allocation2 + $0x188]]
    %v528 = vstv %s527
    %v529 = vmul.f32 %v528, %v497
    %v530 = vadd.f32 %v526, %v529
    %v531 = vmul.f32 %v508, %v530
    %v532 = vmul.f32 %v519, %v530
    %s533 = sld [smem:[#allocation2 + $0x18c]]
    %v534 = vstv %s533
    %v535 = vmul.f32 %v534, %v531
    %s536 = sld [smem:[#allocation2 + $0x18d]]
    %v537 = vstv %s536
    %v538 = vmul.f32 %v537, %v532
    %v539 = vadd.f32 %v535, %v538
    %s540 = sld [smem:[#allocation2 + $0x18e]]
    %v541 = vstv %s540
    %v542 = vmul.f32 %v541, %v530
    %v543 = vadd.f32 %v539, %v542
    %s544 = sld [smem:[#allocation2 + $0x195]]
    %v545 = vstv %s544
    %v546 = vadd.f32 %v543, %v545
    %s547 = sld [smem:[#allocation2 + $0x18f]]
    %v548 = vstv %s547
    %v549 = vmul.f32 %v548, %v531
    %s550 = sld [smem:[#allocation2 + $0x190]]
    %v551 = vstv %s550
    %v552 = vmul.f32 %v551, %v532
    %v553 = vadd.f32 %v549, %v552
    %s554 = sld [smem:[#allocation2 + $0x191]]
    %v555 = vstv %s554
    %v556 = vmul.f32 %v555, %v530
    %v557 = vadd.f32 %v553, %v556
    %s558 = sld [smem:[#allocation2 + $0x196]]
    %v559 = vstv %s558
    %v560 = vadd.f32 %v557, %v559
    %s561 = sld [smem:[#allocation2 + $0x192]]
    %v562 = vstv %s561
    %v563 = vmul.f32 %v562, %v531
    %s564 = sld [smem:[#allocation2 + $0x193]]
    %v565 = vstv %s564
    %v566 = vmul.f32 %v565, %v532
    %v567 = vadd.f32 %v563, %v566
    %s568 = sld [smem:[#allocation2 + $0x194]]
    %v569 = vstv %s568
    %v570 = vmul.f32 %v569, %v530
    %v571 = vadd.f32 %v567, %v570
    %s572 = sld [smem:[#allocation2 + $0x197]]
    %v573 = vstv %s572
    %v574 = vadd.f32 %v571, %v573
    %s575 = sld [smem:[#allocation2 + $0x198]]
    %v576 = vstv %s575
    %v577 = vmul.f32 %v576, %v546
    %s578 = sld [smem:[#allocation2 + $0x199]]
    %v579 = vstv %s578
    %v580 = vmul.f32 %v579, %v560
    %v581 = vadd.f32 %v577, %v580
    %s582 = sld [smem:[#allocation2 + $0x19a]]
    %v583 = vstv %s582
    %v584 = vmul.f32 %v583, %v574
    %v585 = vadd.f32 %v581, %v584
    %s586 = sld [smem:[#allocation2 + $0x1a1]]
    %v587 = vstv %s586
    %v588 = vadd.f32 %v585, %v587
    %s589 = sld [smem:[#allocation2 + $0x19b]]
    %v590 = vstv %s589
    %v591 = vmul.f32 %v590, %v546
    %s592 = sld [smem:[#allocation2 + $0x19c]]
    %v593 = vstv %s592
    %v594 = vmul.f32 %v593, %v560
    %v595 = vadd.f32 %v591, %v594
    %s596 = sld [smem:[#allocation2 + $0x19d]]
    %v597 = vstv %s596
    %v598 = vmul.f32 %v597, %v574
    %v599 = vadd.f32 %v595, %v598
    %s600 = sld [smem:[#allocation2 + $0x1a2]]
    %v601 = vstv %s600
    %v602 = vadd.f32 %v599, %v601
    %s603 = sld [smem:[#allocation2 + $0x19e]]
    %v604 = vstv %s603
    %v605 = vmul.f32 %v604, %v546
    %s606 = sld [smem:[#allocation2 + $0x19f]]
    %v607 = vstv %s606
    %v608 = vmul.f32 %v607, %v560
    %v609 = vadd.f32 %v605, %v608
    %s610 = sld [smem:[#allocation2 + $0x1a0]]
    %v611 = vstv %s610
    %v612 = vmul.f32 %v611, %v574
    %v613 = vadd.f32 %v609, %v612
    %s614 = sld [smem:[#allocation2 + $0x1a3]]
    %v615 = vstv %s614
    %v616 = vadd.f32 %v613, %v615
    %v617 = vsub.f32 %v588, -4.0
    %v618 = vcvt.f32.s32.to.zero.pseudo %v617
    %v619 = vsub.f32 %v602, -4.0
    %v620 = vcvt.f32.s32.to.zero.pseudo %v619
    %v621 = vsub.f32 %v616, -2.0
    %v622 = vmul.f32 %v621, %v162
    %v623 = vcvt.f32.s32.to.zero.pseudo %v622
    %vm624 = vcmp.ge.s32.totalorder %v618, 0
    %vm625 = vcmp.lt.s32.totalorder %v618, 8
    %vm626 = vmand %vm624, %vm625
    %vm627 = vcmp.ge.s32.totalorder %v620, 0
    %vm628 = vmand %vm626, %vm627
    %vm629 = vcmp.lt.s32.totalorder %v620, 8
    %vm630 = vmand %vm628, %vm629
    %vm631 = vcmp.ge.s32.totalorder %v623, 0
    %vm632 = vmand %vm630, %vm631
    %vm633 = vcmp.lt.s32.totalorder %v623, 1
    %vm634 = vmand %vm632, %vm633
    %v635 = vadd.s32 %v623, 1
    %v636 = vmul.u32 %v635, 8
    %v637 = vadd.s32 %v636, %v618
    %v638 = vmul.u32 %v637, 8
    %v639 = vadd.s32 %v638, %v620
    %v640 = vsel %vm634, %v639, 4294967295
    %s641 = scalar_lea.vmem %s2, 12
    %642 = vst [vmem:[%s641] sm:$0xf] %v640
    // Predicated region
    $region14: #{base_transform_forward.2} parent=1 // pred_check
      _
    $region15: #{base_transform_forward.2} parent=1 // pred_check_branch
      %644 = sbr.rel (0) target = $region17
    $region16: #{base_transform_forward.2} parent=1 // pred_region
      _
    $region17: #{base_transform_forward.2} parent=1 // pred_fallthru
      _
    // Predicated region
    $region18: #{base_transform_forward.2} parent=1 // pred_check
      _
    $region19: #{base_transform_forward.2} parent=1 // pred_check_branch
      %646 = sbr.rel (0) target = $region21
    $region20: #{base_transform_forward.2} parent=1 // pred_region
      _
    $region21: #{base_transform_forward.2} parent=1 // pred_fallthru
      _
    %647 = vsyncpa [#allocation3], 1

// kernel: base_transform_forward.3
$region0: #{base_transform_forward.3}
  #allocation0 [shape = 'u32[]', space=smem, size = 0x4, offset = 0x4, fixed_abs, tag = 'smem constant byte address 0x4 - core index']
  #allocation1 [shape = 'u32[144,128]{1,0:T(1,128)}', space=vmem, size = 0x12000, scoped, tag = 'internal scratch']
  %s0 = inlined_call_operand.vmem [shape: s32[8,256,1], index: 0, kind: input, shape index: {}]
  %s1 = inlined_call_operand.vmem [shape: bf16[8,16,256], index: 1, kind: input, shape index: {}]
  %s2 = inlined_call_operand.vmem [shape: f32[16,128], index: 2, kind: output, shape index: {}]
  %s3 = sld [smem:[#allocation0]]
  $region18: #{base_transform_forward.3} parent=0
    _
  %s5 = ssub.s32 1, %s3
  %s6 = scalar_select 0, %s5, %s3
  // Predicated region
  $region2: #{base_transform_forward.3} parent=0 // pred_check
    _
  $region3: #{base_transform_forward.3} parent=0 // pred_check_branch
    %8 = sbr.rel (0) target = $region5
  $region4: #{base_transform_forward.3} parent=0 // pred_region
    _
  $region5: #{base_transform_forward.3} parent=0 // pred_fallthru
    _
  // Predicated region
  $region6: #{base_transform_forward.3} parent=0 // pred_check
    _
  $region7: #{base_transform_forward.3} parent=0 // pred_check_branch
    %10 = sbr.rel (0) target = $region9
  $region8: #{base_transform_forward.3} parent=0 // pred_region
    _
  $region9: #{base_transform_forward.3} parent=0 // pred_fallthru
    _
  %s12 = smul.u32 0, 128
  %v13 = vlaneseq
  %v14 = vand.u32 %v13, 127
  %v15 = vstv %s12
  %v16 = vadd.s32 %v15, %v14
  %v17 = vld [vmem:[%s0] sm:$0xff]
  %v18 = vld [vmem:[%s0 + $0x8] sm:$0xff]
  %v19 = vld [vmem:[%s0 + $0x10] sm:$0xff]
  %v20 = vld [vmem:[%s0 + $0x18] sm:$0xff]
  %v21 = vld [vmem:[%s0 + $0x20] sm:$0xff]
  %v22 = vld [vmem:[%s0 + $0x28] sm:$0xff]
  %v23 = vld [vmem:[%s0 + $0x30] sm:$0xff]
  %v24 = vld [vmem:[%s0 + $0x38] sm:$0xff]
  %v25 = vld [vmem:[%s0 + $0x40] sm:$0xff]
  %v26 = vld [vmem:[%s0 + $0x48] sm:$0xff]
  %v27 = vld [vmem:[%s0 + $0x50] sm:$0xff]
  %v28 = vld [vmem:[%s0 + $0x58] sm:$0xff]
  %v29 = vld [vmem:[%s0 + $0x60] sm:$0xff]
  %v30 = vld [vmem:[%s0 + $0x68] sm:$0xff]
  %v31 = vld [vmem:[%s0 + $0x70] sm:$0xff]
  %v32 = vld [vmem:[%s0 + $0x78] sm:$0xff]
  %v33 = vld [vmem:[%s0 + $0x80] sm:$0xff]
  %v34 = vld [vmem:[%s0 + $0x88] sm:$0xff]
  %v35 = vld [vmem:[%s0 + $0x90] sm:$0xff]
  %v36 = vld [vmem:[%s0 + $0x98] sm:$0xff]
  %v37 = vld [vmem:[%s0 + $0xa0] sm:$0xff]
  %v38 = vld [vmem:[%s0 + $0xa8] sm:$0xff]
  %v39 = vld [vmem:[%s0 + $0xb0] sm:$0xff]
  %v40 = vld [vmem:[%s0 + $0xb8] sm:$0xff]
  %v41 = vld [vmem:[%s0 + $0xc0] sm:$0xff]
  %v42 = vld [vmem:[%s0 + $0xc8] sm:$0xff]
  %v43 = vld [vmem:[%s0 + $0xd0] sm:$0xff]
  %v44 = vld [vmem:[%s0 + $0xd8] sm:$0xff]
  %v45 = vld [vmem:[%s0 + $0xe0] sm:$0xff]
  %v46 = vld [vmem:[%s0 + $0xe8] sm:$0xff]
  %v47 = vld [vmem:[%s0 + $0xf0] sm:$0xff]
  %v48 = vld [vmem:[%s0 + $0xf8] sm:$0xff]
  %49 = vset.pattern.permute.xlu0 0
  %50 = vperm.xlu0 %49, %v17
  %v51 = vpop.permute.xlu0 %50
  %52 = vset.pattern.permute.xlu0 0
  %53 = vperm.xlu0 %52, %v18
  %v54 = vpop.permute.xlu0 %53
  %55 = vset.pattern.permute.xlu0 0
  %56 = vperm.xlu0 %55, %v19
  %v57 = vpop.permute.xlu0 %56
  %58 = vset.pattern.permute.xlu0 0
  %59 = vperm.xlu0 %58, %v20
  %v60 = vpop.permute.xlu0 %59
  %61 = vset.pattern.permute.xlu0 0
  %62 = vperm.xlu0 %61, %v21
  %v63 = vpop.permute.xlu0 %62
  %64 = vset.pattern.permute.xlu0 0
  %65 = vperm.xlu0 %64, %v22
  %v66 = vpop.permute.xlu0 %65
  %67 = vset.pattern.permute.xlu0 0
  %68 = vperm.xlu0 %67, %v23
  %v69 = vpop.permute.xlu0 %68
  %70 = vset.pattern.permute.xlu0 0
  %71 = vperm.xlu0 %70, %v24
  %v72 = vpop.permute.xlu0 %71
  %73 = vset.pattern.permute.xlu0 0
  %74 = vperm.xlu0 %73, %v25
  %v75 = vpop.permute.xlu0 %74
  %76 = vset.pattern.permute.xlu0 0
  %77 = vperm.xlu0 %76, %v26
  %v78 = vpop.permute.xlu0 %77
  %79 = vset.pattern.permute.xlu0 0
  %80 = vperm.xlu0 %79, %v27
  %v81 = vpop.permute.xlu0 %80
  %82 = vset.pattern.permute.xlu0 0
  %83 = vperm.xlu0 %82, %v28
  %v84 = vpop.permute.xlu0 %83
  %85 = vset.pattern.permute.xlu0 0
  %86 = vperm.xlu0 %85, %v29
  %v87 = vpop.permute.xlu0 %86
  %88 = vset.pattern.permute.xlu0 0
  %89 = vperm.xlu0 %88, %v30
  %v90 = vpop.permute.xlu0 %89
  %91 = vset.pattern.permute.xlu0 0
  %92 = vperm.xlu0 %91, %v31
  %v93 = vpop.permute.xlu0 %92
  %94 = vset.pattern.permute.xlu0 0
  %95 = vperm.xlu0 %94, %v32
  %v96 = vpop.permute.xlu0 %95
  %97 = vset.pattern.permute.xlu0 0
  %98 = vperm.xlu0 %97, %v33
  %v99 = vpop.permute.xlu0 %98
  %100 = vset.pattern.permute.xlu0 0
  %101 = vperm.xlu0 %100, %v34
  %v102 = vpop.permute.xlu0 %101
  %103 = vset.pattern.permute.xlu0 0
  %104 = vperm.xlu0 %103, %v35
  %v105 = vpop.permute.xlu0 %104
  %106 = vset.pattern.permute.xlu0 0
  %107 = vperm.xlu0 %106, %v36
  %v108 = vpop.permute.xlu0 %107
  %109 = vset.pattern.permute.xlu0 0
  %110 = vperm.xlu0 %109, %v37
  %v111 = vpop.permute.xlu0 %110
  %112 = vset.pattern.permute.xlu0 0
  %113 = vperm.xlu0 %112, %v38
  %v114 = vpop.permute.xlu0 %113
  %115 = vset.pattern.permute.xlu0 0
  %116 = vperm.xlu0 %115, %v39
  %v117 = vpop.permute.xlu0 %116
  %118 = vset.pattern.permute.xlu0 0
  %119 = vperm.xlu0 %118, %v40
  %v120 = vpop.permute.xlu0 %119
  %121 = vset.pattern.permute.xlu0 0
  %122 = vperm.xlu0 %121, %v41
  %v123 = vpop.permute.xlu0 %122
  %124 = vset.pattern.permute.xlu0 0
  %125 = vperm.xlu0 %124, %v42
  %v126 = vpop.permute.xlu0 %125
  %127 = vset.pattern.permute.xlu0 0
  %128 = vperm.xlu0 %127, %v43
  %v129 = vpop.permute.xlu0 %128
  %130 = vset.pattern.permute.xlu0 0
  %131 = vperm.xlu0 %130, %v44
  %v132 = vpop.permute.xlu0 %131
  %133 = vset.pattern.permute.xlu0 0
  %134 = vperm.xlu0 %133, %v45
  %v135 = vpop.permute.xlu0 %134
  %136 = vset.pattern.permute.xlu0 0
  %137 = vperm.xlu0 %136, %v46
  %v138 = vpop.permute.xlu0 %137
  %139 = vset.pattern.permute.xlu0 0
  %140 = vperm.xlu0 %139, %v47
  %v141 = vpop.permute.xlu0 %140
  %142 = vset.pattern.permute.xlu0 0
  %143 = vperm.xlu0 %142, %v48
  %v144 = vpop.permute.xlu0 %143
  %vm145 = vcmp.eq.s32.totalorder %v51, %v16
  %vm146 = vcmp.eq.s32.totalorder %v54, %v16
  %vm147 = vcmp.eq.s32.totalorder %v57, %v16
  %vm148 = vcmp.eq.s32.totalorder %v60, %v16
  %vm149 = vcmp.eq.s32.totalorder %v63, %v16
  %vm150 = vcmp.eq.s32.totalorder %v66, %v16
  %vm151 = vcmp.eq.s32.totalorder %v69, %v16
  %vm152 = vcmp.eq.s32.totalorder %v72, %v16
  %vm153 = vcmp.eq.s32.totalorder %v75, %v16
  %vm154 = vcmp.eq.s32.totalorder %v78, %v16
  %vm155 = vcmp.eq.s32.totalorder %v81, %v16
  %vm156 = vcmp.eq.s32.totalorder %v84, %v16
  %vm157 = vcmp.eq.s32.totalorder %v87, %v16
  %vm158 = vcmp.eq.s32.totalorder %v90, %v16
  %vm159 = vcmp.eq.s32.totalorder %v93, %v16
  %vm160 = vcmp.eq.s32.totalorder %v96, %v16
  %vm161 = vcmp.eq.s32.totalorder %v99, %v16
  %vm162 = vcmp.eq.s32.totalorder %v102, %v16
  %vm163 = vcmp.eq.s32.totalorder %v105, %v16
  %vm164 = vcmp.eq.s32.totalorder %v108, %v16
  %vm165 = vcmp.eq.s32.totalorder %v111, %v16
  %vm166 = vcmp.eq.s32.totalorder %v114, %v16
  %vm167 = vcmp.eq.s32.totalorder %v117, %v16
  %vm168 = vcmp.eq.s32.totalorder %v120, %v16
  %vm169 = vcmp.eq.s32.totalorder %v123, %v16
  %vm170 = vcmp.eq.s32.totalorder %v126, %v16
  %vm171 = vcmp.eq.s32.totalorder %v129, %v16
  %vm172 = vcmp.eq.s32.totalorder %v132, %v16
  %vm173 = vcmp.eq.s32.totalorder %v135, %v16
  %vm174 = vcmp.eq.s32.totalorder %v138, %v16
  %vm175 = vcmp.eq.s32.totalorder %v141, %v16
  %vm176 = vcmp.eq.s32.totalorder %v144, %v16
  %v177 = vsel %vm145, 1, 0
  %v178 = vsel %vm146, 1, 0
  %v179 = vsel %vm147, 1, 0
  %v180 = vsel %vm148, 1, 0
  %v181 = vsel %vm149, 1, 0
  %v182 = vsel %vm150, 1, 0
  %v183 = vsel %vm151, 1, 0
  %v184 = vsel %vm152, 1, 0
  %v185 = vsel %vm153, 1, 0
  %v186 = vsel %vm154, 1, 0
  %v187 = vsel %vm155, 1, 0
  %v188 = vsel %vm156, 1, 0
  %v189 = vsel %vm157, 1, 0
  %v190 = vsel %vm158, 1, 0
  %v191 = vsel %vm159, 1, 0
  %v192 = vsel %vm160, 1, 0
  %v193 = vsel %vm161, 1, 0
  %v194 = vsel %vm162, 1, 0
  %v195 = vsel %vm163, 1, 0
  %v196 = vsel %vm164, 1, 0
  %v197 = vsel %vm165, 1, 0
  %v198 = vsel %vm166, 1, 0
  %v199 = vsel %vm167, 1, 0
  %v200 = vsel %vm168, 1, 0
  %v201 = vsel %vm169, 1, 0
  %v202 = vsel %vm170, 1, 0
  %v203 = vsel %vm171, 1, 0
  %v204 = vsel %vm172, 1, 0
  %v205 = vsel %vm173, 1, 0
  %v206 = vsel %vm174, 1, 0
  %v207 = vsel %vm175, 1, 0
  %v208 = vsel %vm176, 1, 0
  %v209 = vcvt.s32.f32 %v177
  %v210 = vcvt.s32.f32 %v178
  %v211 = vcvt.s32.f32 %v179
  %v212 = vcvt.s32.f32 %v180
  %v213 = vcvt.s32.f32 %v181
  %v214 = vcvt.s32.f32 %v182
  %v215 = vcvt.s32.f32 %v183
  %v216 = vcvt.s32.f32 %v184
  %v217 = vcvt.s32.f32 %v185
  %v218 = vcvt.s32.f32 %v186
  %v219 = vcvt.s32.f32 %v187
  %v220 = vcvt.s32.f32 %v188
  %v221 = vcvt.s32.f32 %v189
  %v222 = vcvt.s32.f32 %v190
  %v223 = vcvt.s32.f32 %v191
  %v224 = vcvt.s32.f32 %v192
  %v225 = vcvt.s32.f32 %v193
  %v226 = vcvt.s32.f32 %v194
  %v227 = vcvt.s32.f32 %v195
  %v228 = vcvt.s32.f32 %v196
  %v229 = vcvt.s32.f32 %v197
  %v230 = vcvt.s32.f32 %v198
  %v231 = vcvt.s32.f32 %v199
  %v232 = vcvt.s32.f32 %v200
  %v233 = vcvt.s32.f32 %v201
  %v234 = vcvt.s32.f32 %v202
  %v235 = vcvt.s32.f32 %v203
  %v236 = vcvt.s32.f32 %v204
  %v237 = vcvt.s32.f32 %v205
  %v238 = vcvt.s32.f32 %v206
  %v239 = vcvt.s32.f32 %v207
  %v240 = vcvt.s32.f32 %v208
  %v241 = vpack.c.bf16 %v210, %v209
  %v242 = vpack.c.bf16 %v212, %v211
  %v243 = vpack.c.bf16 %v214, %v213
  %v244 = vpack.c.bf16 %v216, %v215
  %v245 = vpack.c.bf16 %v218, %v217
  %v246 = vpack.c.bf16 %v220, %v219
  %v247 = vpack.c.bf16 %v222, %v221
  %v248 = vpack.c.bf16 %v224, %v223
  %v249 = vpack.c.bf16 %v226, %v225
  %v250 = vpack.c.bf16 %v228, %v227
  %v251 = vpack.c.bf16 %v230, %v229
  %v252 = vpack.c.bf16 %v232, %v231
  %v253 = vpack.c.bf16 %v234, %v233
  %v254 = vpack.c.bf16 %v236, %v235
  %v255 = vpack.c.bf16 %v238, %v237
  %v256 = vpack.c.bf16 %v240, %v239
  %v257 = vld [vmem:[%s1] sm:$0xff]
  %v258 = vld [vmem:[%s1 + $0x8] sm:$0xff]
  %s259 = scalar_lea.vmem %s0, 256
  %v260 = vld [vmem:[%s259] sm:$0xff]
  %v261 = vld [vmem:[%s259 + $0x8] sm:$0xff]
  %v262 = vld [vmem:[%s259 + $0x10] sm:$0xff]
  %v263 = vld [vmem:[%s259 + $0x18] sm:$0xff]
  %v264 = vld [vmem:[%s259 + $0x20] sm:$0xff]
  %v265 = vld [vmem:[%s259 + $0x28] sm:$0xff]
  %v266 = vld [vmem:[%s259 + $0x30] sm:$0xff]
  %v267 = vld [vmem:[%s259 + $0x38] sm:$0xff]
  %v268 = vld [vmem:[%s259 + $0x40] sm:$0xff]
  %v269 = vld [vmem:[%s259 + $0x48] sm:$0xff]
  %v270 = vld [vmem:[%s259 + $0x50] sm:$0xff]
  %v271 = vld [vmem:[%s259 + $0x58] sm:$0xff]
  %v272 = vld [vmem:[%s259 + $0x60] sm:$0xff]
  %v273 = vld [vmem:[%s259 + $0x68] sm:$0xff]
  %v274 = vld [vmem:[%s259 + $0x70] sm:$0xff]
  %v275 = vld [vmem:[%s259 + $0x78] sm:$0xff]
  %v276 = vld [vmem:[%s259 + $0x80] sm:$0xff]
  %v277 = vld [vmem:[%s259 + $0x88] sm:$0xff]
  %v278 = vld [vmem:[%s259 + $0x90] sm:$0xff]
  %v279 = vld [vmem:[%s259 + $0x98] sm:$0xff]
  %v280 = vld [vmem:[%s259 + $0xa0] sm:$0xff]
  %v281 = vld [vmem:[%s259 + $0xa8] sm:$0xff]
  %v282 = vld [vmem:[%s259 + $0xb0] sm:$0xff]
  %v283 = vld [vmem:[%s259 + $0xb8] sm:$0xff]
  %v284 = vld [vmem:[%s259 + $0xc0] sm:$0xff]
  %v285 = vld [vmem:[%s259 + $0xc8] sm:$0xff]
  %v286 = vld [vmem:[%s259 + $0xd0] sm:$0xff]
  %v287 = vld [vmem:[%s259 + $0xd8] sm:$0xff]
  %v288 = vld [vmem:[%s259 + $0xe0] sm:$0xff]
  %v289 = vld [vmem:[%s259 + $0xe8] sm:$0xff]
  %v290 = vld [vmem:[%s259 + $0xf0] sm:$0xff]
  %v291 = vld [vmem:[%s259 + $0xf8] sm:$0xff]
  %292 = vset.pattern.permute.xlu0 0
  %293 = vperm.xlu0 %292, %v260
  %v294 = vpop.permute.xlu0 %293
  %295 = vset.pattern.permute.xlu0 0
  %296 = vperm.xlu0 %295, %v261
  %v297 = vpop.permute.xlu0 %296
  %298 = vset.pattern.permute.xlu0 0
  %299 = vperm.xlu0 %298, %v262
  %v300 = vpop.permute.xlu0 %299
  %301 = vset.pattern.permute.xlu0 0
  %302 = vperm.xlu0 %301, %v263
  %v303 = vpop.permute.xlu0 %302
  %304 = vset.pattern.permute.xlu0 0
  %305 = vperm.xlu0 %304, %v264
  %v306 = vpop.permute.xlu0 %305
  %307 = vset.pattern.permute.xlu0 0
  %308 = vperm.xlu0 %307, %v265
  %v309 = vpop.permute.xlu0 %308
  %310 = vset.pattern.permute.xlu0 0
  %311 = vperm.xlu0 %310, %v266
  %v312 = vpop.permute.xlu0 %311
  %313 = vset.pattern.permute.xlu0 0
  %314 = vperm.xlu0 %313, %v267
  %v315 = vpop.permute.xlu0 %314
  %316 = vset.pattern.permute.xlu0 0
  %317 = vperm.xlu0 %316, %v268
  %v318 = vpop.permute.xlu0 %317
  %319 = vset.pattern.permute.xlu0 0
  %320 = vperm.xlu0 %319, %v269
  %v321 = vpop.permute.xlu0 %320
  %322 = vset.pattern.permute.xlu0 0
  %323 = vperm.xlu0 %322, %v270
  %v324 = vpop.permute.xlu0 %323
  %325 = vset.pattern.permute.xlu0 0
  %326 = vperm.xlu0 %325, %v271
  %v327 = vpop.permute.xlu0 %326
  %328 = vset.pattern.permute.xlu0 0
  %329 = vperm.xlu0 %328, %v272
  %v330 = vpop.permute.xlu0 %329
  %331 = vset.pattern.permute.xlu0 0
  %332 = vperm.xlu0 %331, %v273
  %v333 = vpop.permute.xlu0 %332
  %334 = vset.pattern.permute.xlu0 0
  %335 = vperm.xlu0 %334, %v274
  %v336 = vpop.permute.xlu0 %335
  %337 = vset.pattern.permute.xlu0 0
  %338 = vperm.xlu0 %337, %v275
  %v339 = vpop.permute.xlu0 %338
  %340 = vset.pattern.permute.xlu0 0
  %341 = vperm.xlu0 %340, %v276
  %v342 = vpop.permute.xlu0 %341
  %343 = vset.pattern.permute.xlu0 0
  %344 = vperm.xlu0 %343, %v277
  %v345 = vpop.permute.xlu0 %344
  %346 = vset.pattern.permute.xlu0 0
  %347 = vperm.xlu0 %346, %v278
  %v348 = vpop.permute.xlu0 %347
  %349 = vset.pattern.permute.xlu0 0
  %350 = vperm.xlu0 %349, %v279
  %v351 = vpop.permute.xlu0 %350
  %352 = vset.pattern.permute.xlu0 0
  %353 = vperm.xlu0 %352, %v280
  %v354 = vpop.permute.xlu0 %353
  %355 = vset.pattern.permute.xlu0 0
  %356 = vperm.xlu0 %355, %v281
  %v357 = vpop.permute.xlu0 %356
  %358 = vset.pattern.permute.xlu0 0
  %359 = vperm.xlu0 %358, %v282
  %v360 = vpop.permute.xlu0 %359
  %361 = vset.pattern.permute.xlu0 0
  %362 = vperm.xlu0 %361, %v283
  %v363 = vpop.permute.xlu0 %362
  %364 = vset.pattern.permute.xlu0 0
  %365 = vperm.xlu0 %364, %v284
  %v366 = vpop.permute.xlu0 %365
  %367 = vset.pattern.permute.xlu0 0
  %368 = vperm.xlu0 %367, %v285
  %v369 = vpop.permute.xlu0 %368
  %370 = vset.pattern.permute.xlu0 0
  %371 = vperm.xlu0 %370, %v286
  %v372 = vpop.permute.xlu0 %371
  %373 = vset.pattern.permute.xlu0 0
  %374 = vperm.xlu0 %373, %v287
  %v375 = vpop.permute.xlu0 %374
  %376 = vset.pattern.permute.xlu0 0
  %377 = vperm.xlu0 %376, %v288
  %v378 = vpop.permute.xlu0 %377
  %379 = vset.pattern.permute.xlu0 0
  %380 = vperm.xlu0 %379, %v289
  %v381 = vpop.permute.xlu0 %380
  %382 = vset.pattern.permute.xlu0 0
  %383 = vperm.xlu0 %382, %v290
  %v384 = vpop.permute.xlu0 %383
  %385 = vset.pattern.permute.xlu0 0
  %386 = vperm.xlu0 %385, %v291
  %v387 = vpop.permute.xlu0 %386
  %vm388 = vcmp.eq.s32.totalorder %v294, %v16
  %vm389 = vcmp.eq.s32.totalorder %v297, %v16
  %vm390 = vcmp.eq.s32.totalorder %v300, %v16
  %vm391 = vcmp.eq.s32.totalorder %v303, %v16
  %vm392 = vcmp.eq.s32.totalorder %v306, %v16
  %vm393 = vcmp.eq.s32.totalorder %v309, %v16
  %vm394 = vcmp.eq.s32.totalorder %v312, %v16
  %vm395 = vcmp.eq.s32.totalorder %v315, %v16
  %vm396 = vcmp.eq.s32.totalorder %v318, %v16
  %vm397 = vcmp.eq.s32.totalorder %v321, %v16
  %vm398 = vcmp.eq.s32.totalorder %v324, %v16
  %vm399 = vcmp.eq.s32.totalorder %v327, %v16
  %vm400 = vcmp.eq.s32.totalorder %v330, %v16
  %vm401 = vcmp.eq.s32.totalorder %v333, %v16
  %vm402 = vcmp.eq.s32.totalorder %v336, %v16
  %vm403 = vcmp.eq.s32.totalorder %v339, %v16
  %vm404 = vcmp.eq.s32.totalorder %v342, %v16
  %vm405 = vcmp.eq.s32.totalorder %v345, %v16
  %vm406 = vcmp.eq.s32.totalorder %v348, %v16
  %vm407 = vcmp.eq.s32.totalorder %v351, %v16
  %vm408 = vcmp.eq.s32.totalorder %v354, %v16
  %vm409 = vcmp.eq.s32.totalorder %v357, %v16
  %vm410 = vcmp.eq.s32.totalorder %v360, %v16
  %vm411 = vcmp.eq.s32.totalorder %v363, %v16
  %vm412 = vcmp.eq.s32.totalorder %v366, %v16
  %vm413 = vcmp.eq.s32.totalorder %v369, %v16
  %vm414 = vcmp.eq.s32.totalorder %v372, %v16
  %vm415 = vcmp.eq.s32.totalorder %v375, %v16
  %vm416 = vcmp.eq.s32.totalorder %v378, %v16
  %vm417 = vcmp.eq.s32.totalorder %v381, %v16
  %vm418 = vcmp.eq.s32.totalorder %v384, %v16
  %vm419 = vcmp.eq.s32.totalorder %v387, %v16
  %v420 = vsel %vm388, 1, 0
  %v421 = vsel %vm389, 1, 0
  %v422 = vsel %vm390, 1, 0
  %v423 = vsel %vm391, 1, 0
  %v424 = vsel %vm392, 1, 0
  %v425 = vsel %vm393, 1, 0
  %v426 = vsel %vm394, 1, 0
  %v427 = vsel %vm395, 1, 0
  %v428 = vsel %vm396, 1, 0
  %v429 = vsel %vm397, 1, 0
  %v430 = vsel %vm398, 1, 0
  %v431 = vsel %vm399, 1, 0
  %v432 = vsel %vm400, 1, 0
  %v433 = vsel %vm401, 1, 0
  %v434 = vsel %vm402, 1, 0
  %v435 = vsel %vm403, 1, 0
  %v436 = vsel %vm404, 1, 0
  %v437 = vsel %vm405, 1, 0
  %v438 = vsel %vm406, 1, 0
  %v439 = vsel %vm407, 1, 0
  %v440 = vsel %vm408, 1, 0
  %v441 = vsel %vm409, 1, 0
  %v442 = vsel %vm410, 1, 0
  %v443 = vsel %vm411, 1, 0
  %v444 = vsel %vm412, 1, 0
  %v445 = vsel %vm413, 1, 0
  %v446 = vsel %vm414, 1, 0
  %v447 = vsel %vm415, 1, 0
  %v448 = vsel %vm416, 1, 0
  %v449 = vsel %vm417, 1, 0
  %v450 = vsel %vm418, 1, 0
  %v451 = vsel %vm419, 1, 0
  %v452 = vcvt.s32.f32 %v420
  %v453 = vcvt.s32.f32 %v421
  %v454 = vcvt.s32.f32 %v422
  %v455 = vcvt.s32.f32 %v423
  %v456 = vcvt.s32.f32 %v424
  %v457 = vcvt.s32.f32 %v425
  %v458 = vcvt.s32.f32 %v426
  %v459 = vcvt.s32.f32 %v427
  %v460 = vcvt.s32.f32 %v428
  %v461 = vcvt.s32.f32 %v429
  %v462 = vcvt.s32.f32 %v430
  %v463 = vcvt.s32.f32 %v431
  %v464 = vcvt.s32.f32 %v432
  %v465 = vcvt.s32.f32 %v433
  %v466 = vcvt.s32.f32 %v434
  %v467 = vcvt.s32.f32 %v435
  %v468 = vcvt.s32.f32 %v436
  %v469 = vcvt.s32.f32 %v437
  %v470 = vcvt.s32.f32 %v438
  %v471 = vcvt.s32.f32 %v439
  %v472 = vcvt.s32.f32 %v440
  %v473 = vcvt.s32.f32 %v441
  %v474 = vcvt.s32.f32 %v442
  %v475 = vcvt.s32.f32 %v443
  %v476 = vcvt.s32.f32 %v444
  %v477 = vcvt.s32.f32 %v445
  %v478 = vcvt.s32.f32 %v446
  %v479 = vcvt.s32.f32 %v447
  %v480 = vcvt.s32.f32 %v448
  %v481 = vcvt.s32.f32 %v449
  %v482 = vcvt.s32.f32 %v450
  %v483 = vcvt.s32.f32 %v451
  %v484 = vpack.c.bf16 %v453, %v452
  %v485 = vpack.c.bf16 %v455, %v454
  %v486 = vpack.c.bf16 %v457, %v456
  %v487 = vpack.c.bf16 %v459, %v458
  %v488 = vpack.c.bf16 %v461, %v460
  %v489 = vpack.c.bf16 %v463, %v462
  %v490 = vpack.c.bf16 %v465, %v464
  %v491 = vpack.c.bf16 %v467, %v466
  %v492 = vpack.c.bf16 %v469, %v468
  %v493 = vpack.c.bf16 %v471, %v470
  %v494 = vpack.c.bf16 %v473, %v472
  %v495 = vpack.c.bf16 %v475, %v474
  %v496 = vpack.c.bf16 %v477, %v476
  %v497 = vpack.c.bf16 %v479, %v478
  %v498 = vpack.c.bf16 %v481, %v480
  %v499 = vpack.c.bf16 %v483, %v482
  %s500 = scalar_lea.vmem %s1, 16
  %v501 = vld [vmem:[%s500] sm:$0xff]
  %v502 = vld [vmem:[%s500 + $0x8] sm:$0xff]
  %v505 = vunpack.c.l.b16 %v501
  %v506 = vunpack.c.h.b16 %v501
  %v507 = vunpack.c.l.b16 %v502
  %v508 = vunpack.c.h.b16 %v502
  %v509 = vpack.c.b16 %v507, %v505
  %v510 = vpack.c.b16 %v508, %v506
  %513 = vmatprep.subr.bf16.mxu0 0
  %514 = vmatpush1.bf16.msra.mxu0 %v491
  %515 = vmatprep.subr.bf16.mxu0 0
  %516 = vmatpush1.bf16.msra.mxu0 %v490
  %517 = vmatprep.subr.bf16.mxu0 0
  %518 = vmatpush1.bf16.msra.mxu0 %v489
  %519 = vmatprep.subr.bf16.mxu0 0
  %520 = vmatpush1.bf16.msra.mxu0 %v488
  %521 = vmatprep.subr.bf16.mxu0 0
  %522 = vmatpush1.bf16.msra.mxu0 %v487
  %523 = vmatprep.subr.bf16.mxu0 0
  %524 = vmatpush1.bf16.msra.mxu0 %v486
  %525 = vmatprep.subr.bf16.mxu0 0
  %526 = vmatpush1.bf16.msra.mxu0 %v485
  %527 = vmatprep.subr.bf16.mxu0 0
  %528 = vmatpush1.bf16.msra.mxu0 %v484
  %529 = vmatprep.subr.bf16.mxu0 0
  %530 = vmatpush2.bf16.msra.mxu0 %v499
  %531 = vmatprep.subr.bf16.mxu0 0
  %532 = vmatpush2.bf16.msra.mxu0 %v498
  %533 = vmatprep.subr.bf16.mxu0 0
  %534 = vmatpush2.bf16.msra.mxu0 %v497
  %535 = vmatprep.subr.bf16.mxu0 0
  %536 = vmatpush2.bf16.msra.mxu0 %v496
  %537 = vmatprep.subr.bf16.mxu0 0
  %538 = vmatpush2.bf16.msra.mxu0 %v495
  %539 = vmatprep.subr.bf16.mxu0 0
  %540 = vmatpush2.bf16.msra.mxu0 %v494
  %541 = vmatprep.subr.bf16.mxu0 0
  %542 = vmatpush2.bf16.msra.mxu0 %v493
  %543 = vmatprep.subr.bf16.mxu0 0
  %544 = vmatpush2.bf16.msra.mxu0 %v492
  %545 = vmatprep.mubr.bf16.mxu0 %v510
  %546 = vmatmul.mubr.bf16.gmra.mxu0 %v509
  %v547 = vpop.f32.mrf.mxu0
  %v548 = vadd.f32 0.0, %v547
  %v549 = vpop.f32.mrf.mxu0
  %v550 = vpop.f32.mrf.mxu0
  %v551 = vadd.f32 0.0, %v550
  %v552 = vpop.f32.mrf.mxu0
  %553 = vdwg.mxu0
  %v556 = vunpack.c.l.b16 %v257
  %v557 = vunpack.c.h.b16 %v257
  %v558 = vunpack.c.l.b16 %v258
  %v559 = vunpack.c.h.b16 %v258
  %v560 = vpack.c.b16 %v558, %v556
  %v561 = vpack.c.b16 %v559, %v557
  %564 = vmatprep.subr.bf16.mxu0 0
  %565 = vmatpush1.bf16.msra.mxu0 %v248
  %566 = vmatprep.subr.bf16.mxu0 0
  %567 = vmatpush1.bf16.msra.mxu0 %v247
  %568 = vmatprep.subr.bf16.mxu0 0
  %569 = vmatpush1.bf16.msra.mxu0 %v246
  %570 = vmatprep.subr.bf16.mxu0 0
  %571 = vmatpush1.bf16.msra.mxu0 %v245
  %572 = vmatprep.subr.bf16.mxu0 0
  %573 = vmatpush1.bf16.msra.mxu0 %v244
  %574 = vmatprep.subr.bf16.mxu0 0
  %575 = vmatpush1.bf16.msra.mxu0 %v243
  %576 = vmatprep.subr.bf16.mxu0 0
  %577 = vmatpush1.bf16.msra.mxu0 %v242
  %578 = vmatprep.subr.bf16.mxu0 0
  %579 = vmatpush1.bf16.msra.mxu0 %v241
  %580 = vmatprep.subr.bf16.mxu0 0
  %581 = vmatpush2.bf16.msra.mxu0 %v256
  %582 = vmatprep.subr.bf16.mxu0 0
  %583 = vmatpush2.bf16.msra.mxu0 %v255
  %584 = vmatprep.subr.bf16.mxu0 0
  %585 = vmatpush2.bf16.msra.mxu0 %v254
  %586 = vmatprep.subr.bf16.mxu0 0
  %587 = vmatpush2.bf16.msra.mxu0 %v253
  %588 = vmatprep.subr.bf16.mxu0 0
  %589 = vmatpush2.bf16.msra.mxu0 %v252
  %590 = vmatprep.subr.bf16.mxu0 0
  %591 = vmatpush2.bf16.msra.mxu0 %v251
  %592 = vmatprep.subr.bf16.mxu0 0
  %593 = vmatpush2.bf16.msra.mxu0 %v250
  %594 = vmatprep.subr.bf16.mxu0 0
  %595 = vmatpush2.bf16.msra.mxu0 %v249
  %596 = vmatprep.mubr.bf16.mxu0 %v561
  %597 = vmatmul.mubr.bf16.gmra.mxu0 %v560
  %v598 = vpop.f32.mrf.mxu0
  %v599 = vadd.f32 %v548, %v598
  %v600 = vpop.f32.mrf.mxu0
  %v601 = vpop.f32.mrf.mxu0
  %v602 = vadd.f32 %v551, %v601
  %v603 = vpop.f32.mrf.mxu0
  %604 = vdwg.mxu0
  %s605 = scalar_lea.vmem %s0, 512
  %v606 = vld [vmem:[%s605] sm:$0xff]
  %v607 = vld [vmem:[%s605 + $0x8] sm:$0xff]
  %v608 = vld [vmem:[%s605 + $0x10] sm:$0xff]
  %v609 = vld [vmem:[%s605 + $0x18] sm:$0xff]
  %v610 = vld [vmem:[%s605 + $0x20] sm:$0xff]
  %v611 = vld [vmem:[%s605 + $0x28] sm:$0xff]
  %v612 = vld [vmem:[%s605 + $0x30] sm:$0xff]
  %v613 = vld [vmem:[%s605 + $0x38] sm:$0xff]
  %v614 = vld [vmem:[%s605 + $0x40] sm:$0xff]
  %v615 = vld [vmem:[%s605 + $0x48] sm:$0xff]
  %v616 = vld [vmem:[%s605 + $0x50] sm:$0xff]
  %v617 = vld [vmem:[%s605 + $0x58] sm:$0xff]
  %v618 = vld [vmem:[%s605 + $0x60] sm:$0xff]
  %v619 = vld [vmem:[%s605 + $0x68] sm:$0xff]
  %v620 = vld [vmem:[%s605 + $0x70] sm:$0xff]
  %v621 = vld [vmem:[%s605 + $0x78] sm:$0xff]
  %v622 = vld [vmem:[%s605 + $0x80] sm:$0xff]
  %v623 = vld [vmem:[%s605 + $0x88] sm:$0xff]
  %v624 = vld [vmem:[%s605 + $0x90] sm:$0xff]
  %v625 = vld [vmem:[%s605 + $0x98] sm:$0xff]
  %v626 = vld [vmem:[%s605 + $0xa0] sm:$0xff]
  %v627 = vld [vmem:[%s605 + $0xa8] sm:$0xff]
  %v628 = vld [vmem:[%s605 + $0xb0] sm:$0xff]
  %v629 = vld [vmem:[%s605 + $0xb8] sm:$0xff]
  %v630 = vld [vmem:[%s605 + $0xc0] sm:$0xff]
  %v631 = vld [vmem:[%s605 + $0xc8] sm:$0xff]
  %v632 = vld [vmem:[%s605 + $0xd0] sm:$0xff]
  %v633 = vld [vmem:[%s605 + $0xd8] sm:$0xff]
  %v634 = vld [vmem:[%s605 + $0xe0] sm:$0xff]
  %v635 = vld [vmem:[%s605 + $0xe8] sm:$0xff]
  %v636 = vld [vmem:[%s605 + $0xf0] sm:$0xff]
  %v637 = vld [vmem:[%s605 + $0xf8] sm:$0xff]
  %638 = vset.pattern.permute.xlu0 0
  %639 = vperm.xlu0 %638, %v606
  %v640 = vpop.permute.xlu0 %639
  %641 = vset.pattern.permute.xlu0 0
  %642 = vperm.xlu0 %641, %v607
  %v643 = vpop.permute.xlu0 %642
  %644 = vset.pattern.permute.xlu0 0
  %645 = vperm.xlu0 %644, %v608
  %v646 = vpop.permute.xlu0 %645
  %647 = vset.pattern.permute.xlu0 0
  %648 = vperm.xlu0 %647, %v609
  %v649 = vpop.permute.xlu0 %648
  %650 = vset.pattern.permute.xlu0 0
  %651 = vperm.xlu0 %650, %v610
  %v652 = vpop.permute.xlu0 %651
  %653 = vset.pattern.permute.xlu0 0
  %654 = vperm.xlu0 %653, %v611
  %v655 = vpop.permute.xlu0 %654
  %656 = vset.pattern.permute.xlu0 0
  %657 = vperm.xlu0 %656, %v612
  %v658 = vpop.permute.xlu0 %657
  %659 = vset.pattern.permute.xlu0 0
  %660 = vperm.xlu0 %659, %v613
  %v661 = vpop.permute.xlu0 %660
  %662 = vset.pattern.permute.xlu0 0
  %663 = vperm.xlu0 %662, %v614
  %v664 = vpop.permute.xlu0 %663
  %665 = vset.pattern.permute.xlu0 0
  %666 = vperm.xlu0 %665, %v615
  %v667 = vpop.permute.xlu0 %666
  %668 = vset.pattern.permute.xlu0 0
  %669 = vperm.xlu0 %668, %v616
  %v670 = vpop.permute.xlu0 %669
  %671 = vset.pattern.permute.xlu0 0
  %672 = vperm.xlu0 %671, %v617
  %v673 = vpop.permute.xlu0 %672
  %674 = vset.pattern.permute.xlu0 0
  %675 = vperm.xlu0 %674, %v618
  %v676 = vpop.permute.xlu0 %675
  %677 = vset.pattern.permute.xlu0 0
  %678 = vperm.xlu0 %677, %v619
  %v679 = vpop.permute.xlu0 %678
  %680 = vset.pattern.permute.xlu0 0
  %681 = vperm.xlu0 %680, %v620
  %v682 = vpop.permute.xlu0 %681
  %683 = vset.pattern.permute.xlu0 0
  %684 = vperm.xlu0 %683, %v621
  %v685 = vpop.permute.xlu0 %684
  %686 = vset.pattern.permute.xlu0 0
  %687 = vperm.xlu0 %686, %v622
  %v688 = vpop.permute.xlu0 %687
  %689 = vset.pattern.permute.xlu0 0
  %690 = vperm.xlu0 %689, %v623
  %v691 = vpop.permute.xlu0 %690
  %692 = vset.pattern.permute.xlu0 0
  %693 = vperm.xlu0 %692, %v624
  %v694 = vpop.permute.xlu0 %693
  %695 = vset.pattern.permute.xlu0 0
  %696 = vperm.xlu0 %695, %v625
  %v697 = vpop.permute.xlu0 %696
  %698 = vset.pattern.permute.xlu0 0
  %699 = vperm.xlu0 %698, %v626
  %v700 = vpop.permute.xlu0 %699
  %701 = vset.pattern.permute.xlu0 0
  %702 = vperm.xlu0 %701, %v627
  %v703 = vpop.permute.xlu0 %702
  %704 = vset.pattern.permute.xlu0 0
  %705 = vperm.xlu0 %704, %v628
  %v706 = vpop.permute.xlu0 %705
  %707 = vset.pattern.permute.xlu0 0
  %708 = vperm.xlu0 %707, %v629
  %v709 = vpop.permute.xlu0 %708
  %710 = vset.pattern.permute.xlu0 0
  %711 = vperm.xlu0 %710, %v630
  %v712 = vpop.permute.xlu0 %711
  %713 = vset.pattern.permute.xlu0 0
  %714 = vperm.xlu0 %713, %v631
  %v715 = vpop.permute.xlu0 %714
  %716 = vset.pattern.permute.xlu0 0
  %717 = vperm.xlu0 %716, %v632
  %v718 = vpop.permute.xlu0 %717
  %719 = vset.pattern.permute.xlu0 0
  %720 = vperm.xlu0 %719, %v633
  %v721 = vpop.permute.xlu0 %720
  %722 = vset.pattern.permute.xlu0 0
  %723 = vperm.xlu0 %722, %v634
  %v724 = vpop.permute.xlu0 %723
  %725 = vset.pattern.permute.xlu0 0
  %726 = vperm.xlu0 %725, %v635
  %v727 = vpop.permute.xlu0 %726
  %728 = vset.pattern.permute.xlu0 0
  %729 = vperm.xlu0 %728, %v636
  %v730 = vpop.permute.xlu0 %729
  %731 = vset.pattern.permute.xlu0 0
  %732 = vperm.xlu0 %731, %v637
  %v733 = vpop.permute.xlu0 %732
  %vm734 = vcmp.eq.s32.totalorder %v640, %v16
  %vm735 = vcmp.eq.s32.totalorder %v643, %v16
  %vm736 = vcmp.eq.s32.totalorder %v646, %v16
  %vm737 = vcmp.eq.s32.totalorder %v649, %v16
  %vm738 = vcmp.eq.s32.totalorder %v652, %v16
  %vm739 = vcmp.eq.s32.totalorder %v655, %v16
  %vm740 = vcmp.eq.s32.totalorder %v658, %v16
  %vm741 = vcmp.eq.s32.totalorder %v661, %v16
  %vm742 = vcmp.eq.s32.totalorder %v664, %v16
  %vm743 = vcmp.eq.s32.totalorder %v667, %v16
  %vm744 = vcmp.eq.s32.totalorder %v670, %v16
  %vm745 = vcmp.eq.s32.totalorder %v673, %v16
  %vm746 = vcmp.eq.s32.totalorder %v676, %v16
  %vm747 = vcmp.eq.s32.totalorder %v679, %v16
  %vm748 = vcmp.eq.s32.totalorder %v682, %v16
  %vm749 = vcmp.eq.s32.totalorder %v685, %v16
  %vm750 = vcmp.eq.s32.totalorder %v688, %v16
  %vm751 = vcmp.eq.s32.totalorder %v691, %v16
  %vm752 = vcmp.eq.s32.totalorder %v694, %v16
  %vm753 = vcmp.eq.s32.totalorder %v697, %v16
  %vm754 = vcmp.eq.s32.totalorder %v700, %v16
  %vm755 = vcmp.eq.s32.totalorder %v703, %v16
  %vm756 = vcmp.eq.s32.totalorder %v706, %v16
  %vm757 = vcmp.eq.s32.totalorder %v709, %v16
  %vm758 = vcmp.eq.s32.totalorder %v712, %v16
  %vm759 = vcmp.eq.s32.totalorder %v715, %v16
  %vm760 = vcmp.eq.s32.totalorder %v718, %v16
  %vm761 = vcmp.eq.s32.totalorder %v721, %v16
  %vm762 = vcmp.eq.s32.totalorder %v724, %v16
  %vm763 = vcmp.eq.s32.totalorder %v727, %v16
  %vm764 = vcmp.eq.s32.totalorder %v730, %v16
  %vm765 = vcmp.eq.s32.totalorder %v733, %v16
  %v766 = vsel %vm734, 1, 0
  %v767 = vsel %vm735, 1, 0
  %v768 = vsel %vm736, 1, 0
  %v769 = vsel %vm737, 1, 0
  %v770 = vsel %vm738, 1, 0
  %v771 = vsel %vm739, 1, 0
  %v772 = vsel %vm740, 1, 0
  %v773 = vsel %vm741, 1, 0
  %v774 = vsel %vm742, 1, 0
  %v775 = vsel %vm743, 1, 0
  %v776 = vsel %vm744, 1, 0
  %v777 = vsel %vm745, 1, 0
  %v778 = vsel %vm746, 1, 0
  %v779 = vsel %vm747, 1, 0
  %v780 = vsel %vm748, 1, 0
  %v781 = vsel %vm749, 1, 0
  %v782 = vsel %vm750, 1, 0
  %v783 = vsel %vm751, 1, 0
  %v784 = vsel %vm752, 1, 0
  %v785 = vsel %vm753, 1, 0
  %v786 = vsel %vm754, 1, 0
  %v787 = vsel %vm755, 1, 0
  %v788 = vsel %vm756, 1, 0
  %v789 = vsel %vm757, 1, 0
  %v790 = vsel %vm758, 1, 0
  %v791 = vsel %vm759, 1, 0
  %v792 = vsel %vm760, 1, 0
  %v793 = vsel %vm761, 1, 0
  %v794 = vsel %vm762, 1, 0
  %v795 = vsel %vm763, 1, 0
  %v796 = vsel %vm764, 1, 0
  %v797 = vsel %vm765, 1, 0
  %v798 = vcvt.s32.f32 %v766
  %v799 = vcvt.s32.f32 %v767
  %v800 = vcvt.s32.f32 %v768
  %v801 = vcvt.s32.f32 %v769
  %v802 = vcvt.s32.f32 %v770
  %v803 = vcvt.s32.f32 %v771
  %v804 = vcvt.s32.f32 %v772
  %v805 = vcvt.s32.f32 %v773
  %v806 = vcvt.s32.f32 %v774
  %v807 = vcvt.s32.f32 %v775
  %v808 = vcvt.s32.f32 %v776
  %v809 = vcvt.s32.f32 %v777
  %v810 = vcvt.s32.f32 %v778
  %v811 = vcvt.s32.f32 %v779
  %v812 = vcvt.s32.f32 %v780
  %v813 = vcvt.s32.f32 %v781
  %v814 = vcvt.s32.f32 %v782
  %v815 = vcvt.s32.f32 %v783
  %v816 = vcvt.s32.f32 %v784
  %v817 = vcvt.s32.f32 %v785
  %v818 = vcvt.s32.f32 %v786
  %v819 = vcvt.s32.f32 %v787
  %v820 = vcvt.s32.f32 %v788
  %v821 = vcvt.s32.f32 %v789
  %v822 = vcvt.s32.f32 %v790
  %v823 = vcvt.s32.f32 %v791
  %v824 = vcvt.s32.f32 %v792
  %v825 = vcvt.s32.f32 %v793
  %v826 = vcvt.s32.f32 %v794
  %v827 = vcvt.s32.f32 %v795
  %v828 = vcvt.s32.f32 %v796
  %v829 = vcvt.s32.f32 %v797
  %v830 = vpack.c.bf16 %v799, %v798
  %v831 = vpack.c.bf16 %v801, %v800
  %v832 = vpack.c.bf16 %v803, %v802
  %v833 = vpack.c.bf16 %v805, %v804
  %v834 = vpack.c.bf16 %v807, %v806
  %v835 = vpack.c.bf16 %v809, %v808
  %v836 = vpack.c.bf16 %v811, %v810
  %v837 = vpack.c.bf16 %v813, %v812
  %v838 = vpack.c.bf16 %v815, %v814
  %v839 = vpack.c.bf16 %v817, %v816
  %v840 = vpack.c.bf16 %v819, %v818
  %v841 = vpack.c.bf16 %v821, %v820
  %v842 = vpack.c.bf16 %v823, %v822
  %v843 = vpack.c.bf16 %v825, %v824
  %v844 = vpack.c.bf16 %v827, %v826
  %v845 = vpack.c.bf16 %v829, %v828
  %s846 = scalar_lea.vmem %s1, 32
  %v847 = vld [vmem:[%s846] sm:$0xff]
  %v848 = vld [vmem:[%s846 + $0x8] sm:$0xff]
  %v851 = vunpack.c.l.b16 %v847
  %v852 = vunpack.c.h.b16 %v847
  %v853 = vunpack.c.l.b16 %v848
  %v854 = vunpack.c.h.b16 %v848
  %v855 = vpack.c.b16 %v853, %v851
  %v856 = vpack.c.b16 %v854, %v852
  %859 = vmatprep.subr.bf16.mxu0 0
  %860 = vmatpush1.bf16.msra.mxu0 %v837
  %861 = vmatprep.subr.bf16.mxu0 0
  %862 = vmatpush1.bf16.msra.mxu0 %v836
  %863 = vmatprep.subr.bf16.mxu0 0
  %864 = vmatpush1.bf16.msra.mxu0 %v835
  %865 = vmatprep.subr.bf16.mxu0 0
  %866 = vmatpush1.bf16.msra.mxu0 %v834
  %867 = vmatprep.subr.bf16.mxu0 0
  %868 = vmatpush1.bf16.msra.mxu0 %v833
  %869 = vmatprep.subr.bf16.mxu0 0
  %870 = vmatpush1.bf16.msra.mxu0 %v832
  %871 = vmatprep.subr.bf16.mxu0 0
  %872 = vmatpush1.bf16.msra.mxu0 %v831
  %873 = vmatprep.subr.bf16.mxu0 0
  %874 = vmatpush1.bf16.msra.mxu0 %v830
  %875 = vmatprep.subr.bf16.mxu0 0
  %876 = vmatpush2.bf16.msra.mxu0 %v845
  %877 = vmatprep.subr.bf16.mxu0 0
  %878 = vmatpush2.bf16.msra.mxu0 %v844
  %879 = vmatprep.subr.bf16.mxu0 0
  %880 = vmatpush2.bf16.msra.mxu0 %v843
  %881 = vmatprep.subr.bf16.mxu0 0
  %882 = vmatpush2.bf16.msra.mxu0 %v842
  %883 = vmatprep.subr.bf16.mxu0 0
  %884 = vmatpush2.bf16.msra.mxu0 %v841
  %885 = vmatprep.subr.bf16.mxu0 0
  %886 = vmatpush2.bf16.msra.mxu0 %v840
  %887 = vmatprep.subr.bf16.mxu0 0
  %888 = vmatpush2.bf16.msra.mxu0 %v839
  %889 = vmatprep.subr.bf16.mxu0 0
  %890 = vmatpush2.bf16.msra.mxu0 %v838
  %891 = vmatprep.mubr.bf16.mxu0 %v856
  %892 = vmatmul.mubr.bf16.gmra.mxu0 %v855
  %v893 = vpop.f32.mrf.mxu0
  %v894 = vadd.f32 0.0, %v893
  %v895 = vpop.f32.mrf.mxu0
  %v896 = vpop.f32.mrf.mxu0
  %v897 = vadd.f32 0.0, %v896
  %v898 = vpop.f32.mrf.mxu0
  %899 = vdwg.mxu0
  %v900 = vadd.f32 %v599, %v894
  %v901 = vadd.f32 %v602, %v897
  %s902 = scalar_lea.vmem %s0, 768
  %v903 = vld [vmem:[%s902] sm:$0xff]
  %v904 = vld [vmem:[%s902 + $0x8] sm:$0xff]
  %v905 = vld [vmem:[%s902 + $0x10] sm:$0xff]
  %v906 = vld [vmem:[%s902 + $0x18] sm:$0xff]
  %v907 = vld [vmem:[%s902 + $0x20] sm:$0xff]
  %v908 = vld [vmem:[%s902 + $0x28] sm:$0xff]
  %v909 = vld [vmem:[%s902 + $0x30] sm:$0xff]
  %v910 = vld [vmem:[%s902 + $0x38] sm:$0xff]
  %v911 = vld [vmem:[%s902 + $0x40] sm:$0xff]
  %v912 = vld [vmem:[%s902 + $0x48] sm:$0xff]
  %v913 = vld [vmem:[%s902 + $0x50] sm:$0xff]
  %v914 = vld [vmem:[%s902 + $0x58] sm:$0xff]
  %v915 = vld [vmem:[%s902 + $0x60] sm:$0xff]
  %v916 = vld [vmem:[%s902 + $0x68] sm:$0xff]
  %v917 = vld [vmem:[%s902 + $0x70] sm:$0xff]
  %v918 = vld [vmem:[%s902 + $0x78] sm:$0xff]
  %v919 = vld [vmem:[%s902 + $0x80] sm:$0xff]
  %v920 = vld [vmem:[%s902 + $0x88] sm:$0xff]
  %v921 = vld [vmem:[%s902 + $0x90] sm:$0xff]
  %v922 = vld [vmem:[%s902 + $0x98] sm:$0xff]
  %v923 = vld [vmem:[%s902 + $0xa0] sm:$0xff]
  %v924 = vld [vmem:[%s902 + $0xa8] sm:$0xff]
  %v925 = vld [vmem:[%s902 + $0xb0] sm:$0xff]
  %v926 = vld [vmem:[%s902 + $0xb8] sm:$0xff]
  %v927 = vld [vmem:[%s902 + $0xc0] sm:$0xff]
  %v928 = vld [vmem:[%s902 + $0xc8] sm:$0xff]
  %v929 = vld [vmem:[%s902 + $0xd0] sm:$0xff]
  %v930 = vld [vmem:[%s902 + $0xd8] sm:$0xff]
  %v931 = vld [vmem:[%s902 + $0xe0] sm:$0xff]
  %v932 = vld [vmem:[%s902 + $0xe8] sm:$0xff]
  %v933 = vld [vmem:[%s902 + $0xf0] sm:$0xff]
  %v934 = vld [vmem:[%s902 + $0xf8] sm:$0xff]
  %935 = vset.pattern.permute.xlu0 0
  %936 = vperm.xlu0 %935, %v903
  %v937 = vpop.permute.xlu0 %936
  %938 = vset.pattern.permute.xlu0 0
  %939 = vperm.xlu0 %938, %v904
  %v940 = vpop.permute.xlu0 %939
  %941 = vset.pattern.permute.xlu0 0
  %942 = vperm.xlu0 %941, %v905
  %v943 = vpop.permute.xlu0 %942
  %944 = vset.pattern.permute.xlu0 0
  %945 = vperm.xlu0 %944, %v906
  %v946 = vpop.permute.xlu0 %945
  %947 = vset.pattern.permute.xlu0 0
  %948 = vperm.xlu0 %947, %v907
  %v949 = vpop.permute.xlu0 %948
  %950 = vset.pattern.permute.xlu0 0
  %951 = vperm.xlu0 %950, %v908
  %v952 = vpop.permute.xlu0 %951
  %953 = vset.pattern.permute.xlu0 0
  %954 = vperm.xlu0 %953, %v909
  %v955 = vpop.permute.xlu0 %954
  %956 = vset.pattern.permute.xlu0 0
  %957 = vperm.xlu0 %956, %v910
  %v958 = vpop.permute.xlu0 %957
  %959 = vset.pattern.permute.xlu0 0
  %960 = vperm.xlu0 %959, %v911
  %v961 = vpop.permute.xlu0 %960
  %962 = vset.pattern.permute.xlu0 0
  %963 = vperm.xlu0 %962, %v912
  %v964 = vpop.permute.xlu0 %963
  %965 = vset.pattern.permute.xlu0 0
  %966 = vperm.xlu0 %965, %v913
  %v967 = vpop.permute.xlu0 %966
  %968 = vset.pattern.permute.xlu0 0
  %969 = vperm.xlu0 %968, %v914
  %v970 = vpop.permute.xlu0 %969
  %971 = vset.pattern.permute.xlu0 0
  %972 = vperm.xlu0 %971, %v915
  %v973 = vpop.permute.xlu0 %972
  %974 = vset.pattern.permute.xlu0 0
  %975 = vperm.xlu0 %974, %v916
  %v976 = vpop.permute.xlu0 %975
  %977 = vset.pattern.permute.xlu0 0
  %978 = vperm.xlu0 %977, %v917
  %v979 = vpop.permute.xlu0 %978
  %980 = vset.pattern.permute.xlu0 0
  %981 = vperm.xlu0 %980, %v918
  %v982 = vpop.permute.xlu0 %981
  %983 = vset.pattern.permute.xlu0 0
  %984 = vperm.xlu0 %983, %v919
  %v985 = vpop.permute.xlu0 %984
  %986 = vset.pattern.permute.xlu0 0
  %987 = vperm.xlu0 %986, %v920
  %v988 = vpop.permute.xlu0 %987
  %989 = vset.pattern.permute.xlu0 0
  %990 = vperm.xlu0 %989, %v921
  %v991 = vpop.permute.xlu0 %990
  %992 = vset.pattern.permute.xlu0 0
  %993 = vperm.xlu0 %992, %v922
  %v994 = vpop.permute.xlu0 %993
  %995 = vset.pattern.permute.xlu0 0
  %996 = vperm.xlu0 %995, %v923
  %v997 = vpop.permute.xlu0 %996
  %998 = vset.pattern.permute.xlu0 0
  %999 = vperm.xlu0 %998, %v924
  %v1000 = vpop.permute.xlu0 %999
  %1001 = vset.pattern.permute.xlu0 0
  %1002 = vperm.xlu0 %1001, %v925
  %v1003 = vpop.permute.xlu0 %1002
  %1004 = vset.pattern.permute.xlu0 0
  %1005 = vperm.xlu0 %1004, %v926
  %v1006 = vpop.permute.xlu0 %1005
  %1007 = vset.pattern.permute.xlu0 0
  %1008 = vperm.xlu0 %1007, %v927
  %v1009 = vpop.permute.xlu0 %1008
  %1010 = vset.pattern.permute.xlu0 0
  %1011 = vperm.xlu0 %1010, %v928
  %v1012 = vpop.permute.xlu0 %1011
  %1013 = vset.pattern.permute.xlu0 0
  %1014 = vperm.xlu0 %1013, %v929
  %v1015 = vpop.permute.xlu0 %1014
  %1016 = vset.pattern.permute.xlu0 0
  %1017 = vperm.xlu0 %1016, %v930
  %v1018 = vpop.permute.xlu0 %1017
  %1019 = vset.pattern.permute.xlu0 0
  %1020 = vperm.xlu0 %1019, %v931
  %v1021 = vpop.permute.xlu0 %1020
  %1022 = vset.pattern.permute.xlu0 0
  %1023 = vperm.xlu0 %1022, %v932
  %v1024 = vpop.permute.xlu0 %1023
  %1025 = vset.pattern.permute.xlu0 0
  %1026 = vperm.xlu0 %1025, %v933
  %v1027 = vpop.permute.xlu0 %1026
  %1028 = vset.pattern.permute.xlu0 0
  %1029 = vperm.xlu0 %1028, %v934
  %v1030 = vpop.permute.xlu0 %1029
  %vm1031 = vcmp.eq.s32.totalorder %v937, %v16
  %vm1032 = vcmp.eq.s32.totalorder %v940, %v16
  %vm1033 = vcmp.eq.s32.totalorder %v943, %v16
  %vm1034 = vcmp.eq.s32.totalorder %v946, %v16
  %vm1035 = vcmp.eq.s32.totalorder %v949, %v16
  %vm1036 = vcmp.eq.s32.totalorder %v952, %v16
  %vm1037 = vcmp.eq.s32.totalorder %v955, %v16
  %vm1038 = vcmp.eq.s32.totalorder %v958, %v16
  %vm1039 = vcmp.eq.s32.totalorder %v961, %v16
  %vm1040 = vcmp.eq.s32.totalorder %v964, %v16
  %vm1041 = vcmp.eq.s32.totalorder %v967, %v16
  %vm1042 = vcmp.eq.s32.totalorder %v970, %v16
  %vm1043 = vcmp.eq.s32.totalorder %v973, %v16
  %vm1044 = vcmp.eq.s32.totalorder %v976, %v16
  %vm1045 = vcmp.eq.s32.totalorder %v979, %v16
  %vm1046 = vcmp.eq.s32.totalorder %v982, %v16
  %vm1047 = vcmp.eq.s32.totalorder %v985, %v16
  %vm1048 = vcmp.eq.s32.totalorder %v988, %v16
  %vm1049 = vcmp.eq.s32.totalorder %v991, %v16
  %vm1050 = vcmp.eq.s32.totalorder %v994, %v16
  %vm1051 = vcmp.eq.s32.totalorder %v997, %v16
  %vm1052 = vcmp.eq.s32.totalorder %v1000, %v16
  %vm1053 = vcmp.eq.s32.totalorder %v1003, %v16
  %vm1054 = vcmp.eq.s32.totalorder %v1006, %v16
  %vm1055 = vcmp.eq.s32.totalorder %v1009, %v16
  %vm1056 = vcmp.eq.s32.totalorder %v1012, %v16
  %vm1057 = vcmp.eq.s32.totalorder %v1015, %v16
  %vm1058 = vcmp.eq.s32.totalorder %v1018, %v16
  %vm1059 = vcmp.eq.s32.totalorder %v1021, %v16
  %vm1060 = vcmp.eq.s32.totalorder %v1024, %v16
  %vm1061 = vcmp.eq.s32.totalorder %v1027, %v16
  %vm1062 = vcmp.eq.s32.totalorder %v1030, %v16
  %v1063 = vsel %vm1031, 1, 0
  %v1064 = vsel %vm1032, 1, 0
  %v1065 = vsel %vm1033, 1, 0
  %v1066 = vsel %vm1034, 1, 0
  %v1067 = vsel %vm1035, 1, 0
  %v1068 = vsel %vm1036, 1, 0
  %v1069 = vsel %vm1037, 1, 0
  %v1070 = vsel %vm1038, 1, 0
  %v1071 = vsel %vm1039, 1, 0
  %v1072 = vsel %vm1040, 1, 0
  %v1073 = vsel %vm1041, 1, 0
  %v1074 = vsel %vm1042, 1, 0
  %v1075 = vsel %vm1043, 1, 0
  %v1076 = vsel %vm1044, 1, 0
  %v1077 = vsel %vm1045, 1, 0
  %v1078 = vsel %vm1046, 1, 0
  %v1079 = vsel %vm1047, 1, 0
  %v1080 = vsel %vm1048, 1, 0
  %v1081 = vsel %vm1049, 1, 0
  %v1082 = vsel %vm1050, 1, 0
  %v1083 = vsel %vm1051, 1, 0
  %v1084 = vsel %vm1052, 1, 0
  %v1085 = vsel %vm1053, 1, 0
  %v1086 = vsel %vm1054, 1, 0
  %v1087 = vsel %vm1055, 1, 0
  %v1088 = vsel %vm1056, 1, 0
  %v1089 = vsel %vm1057, 1, 0
  %v1090 = vsel %vm1058, 1, 0
  %v1091 = vsel %vm1059, 1, 0
  %v1092 = vsel %vm1060, 1, 0
  %v1093 = vsel %vm1061, 1, 0
  %v1094 = vsel %vm1062, 1, 0
  %v1095 = vcvt.s32.f32 %v1063
  %v1096 = vcvt.s32.f32 %v1064
  %v1097 = vcvt.s32.f32 %v1065
  %v1098 = vcvt.s32.f32 %v1066
  %v1099 = vcvt.s32.f32 %v1067
  %v1100 = vcvt.s32.f32 %v1068
  %v1101 = vcvt.s32.f32 %v1069
  %v1102 = vcvt.s32.f32 %v1070
  %v1103 = vcvt.s32.f32 %v1071
  %v1104 = vcvt.s32.f32 %v1072
  %v1105 = vcvt.s32.f32 %v1073
  %v1106 = vcvt.s32.f32 %v1074
  %v1107 = vcvt.s32.f32 %v1075
  %v1108 = vcvt.s32.f32 %v1076
  %v1109 = vcvt.s32.f32 %v1077
  %v1110 = vcvt.s32.f32 %v1078
  %v1111 = vcvt.s32.f32 %v1079
  %v1112 = vcvt.s32.f32 %v1080
  %v1113 = vcvt.s32.f32 %v1081
  %v1114 = vcvt.s32.f32 %v1082
  %v1115 = vcvt.s32.f32 %v1083
  %v1116 = vcvt.s32.f32 %v1084
  %v1117 = vcvt.s32.f32 %v1085
  %v1118 = vcvt.s32.f32 %v1086
  %v1119 = vcvt.s32.f32 %v1087
  %v1120 = vcvt.s32.f32 %v1088
  %v1121 = vcvt.s32.f32 %v1089
  %v1122 = vcvt.s32.f32 %v1090
  %v1123 = vcvt.s32.f32 %v1091
  %v1124 = vcvt.s32.f32 %v1092
  %v1125 = vcvt.s32.f32 %v1093
  %v1126 = vcvt.s32.f32 %v1094
  %v1127 = vpack.c.bf16 %v1096, %v1095
  %v1128 = vpack.c.bf16 %v1098, %v1097
  %v1129 = vpack.c.bf16 %v1100, %v1099
  %v1130 = vpack.c.bf16 %v1102, %v1101
  %v1131 = vpack.c.bf16 %v1104, %v1103
  %v1132 = vpack.c.bf16 %v1106, %v1105
  %v1133 = vpack.c.bf16 %v1108, %v1107
  %v1134 = vpack.c.bf16 %v1110, %v1109
  %v1135 = vpack.c.bf16 %v1112, %v1111
  %v1136 = vpack.c.bf16 %v1114, %v1113
  %v1137 = vpack.c.bf16 %v1116, %v1115
  %v1138 = vpack.c.bf16 %v1118, %v1117
  %v1139 = vpack.c.bf16 %v1120, %v1119
  %v1140 = vpack.c.bf16 %v1122, %v1121
  %v1141 = vpack.c.bf16 %v1124, %v1123
  %v1142 = vpack.c.bf16 %v1126, %v1125
  %s1143 = scalar_lea.vmem %s1, 48
  %v1144 = vld [vmem:[%s1143] sm:$0xff]
  %v1145 = vld [vmem:[%s1143 + $0x8] sm:$0xff]
  %v1148 = vunpack.c.l.b16 %v1144
  %v1149 = vunpack.c.h.b16 %v1144
  %v1150 = vunpack.c.l.b16 %v1145
  %v1151 = vunpack.c.h.b16 %v1145
  %v1152 = vpack.c.b16 %v1150, %v1148
  %v1153 = vpack.c.b16 %v1151, %v1149
  %1156 = vmatprep.subr.bf16.mxu0 0
  %1157 = vmatpush1.bf16.msra.mxu0 %v1134
  %1158 = vmatprep.subr.bf16.mxu0 0
  %1159 = vmatpush1.bf16.msra.mxu0 %v1133
  %1160 = vmatprep.subr.bf16.mxu0 0
  %1161 = vmatpush1.bf16.msra.mxu0 %v1132
  %1162 = vmatprep.subr.bf16.mxu0 0
  %1163 = vmatpush1.bf16.msra.mxu0 %v1131
  %1164 = vmatprep.subr.bf16.mxu0 0
  %1165 = vmatpush1.bf16.msra.mxu0 %v1130
  %1166 = vmatprep.subr.bf16.mxu0 0
  %1167 = vmatpush1.bf16.msra.mxu0 %v1129
  %1168 = vmatprep.subr.bf16.mxu0 0
  %1169 = vmatpush1.bf16.msra.mxu0 %v1128
  %1170 = vmatprep.subr.bf16.mxu0 0
  %1171 = vmatpush1.bf16.msra.mxu0 %v1127
  %1172 = vmatprep.subr.bf16.mxu0 0
  %1173 = vmatpush2.bf16.msra.mxu0 %v1142
  %1174 = vmatprep.subr.bf16.mxu0 0
  %1175 = vmatpush2.bf16.msra.mxu0 %v1141
  %1176 = vmatprep.subr.bf16.mxu0 0
  %1177 = vmatpush2.bf16.msra.mxu0 %v1140
  %1178 = vmatprep.subr.bf16.mxu0 0
  %1179 = vmatpush2.bf16.msra.mxu0 %v1139
  %1180 = vmatprep.subr.bf16.mxu0 0
  %1181 = vmatpush2.bf16.msra.mxu0 %v1138
  %1182 = vmatprep.subr.bf16.mxu0 0
  %1183 = vmatpush2.bf16.msra.mxu0 %v1137
  %1184 = vmatprep.subr.bf16.mxu0 0
  %1185 = vmatpush2.bf16.msra.mxu0 %v1136
  %1186 = vmatprep.subr.bf16.mxu0 0
  %1187 = vmatpush2.bf16.msra.mxu0 %v1135
  %1188 = vmatprep.mubr.bf16.mxu0 %v1153
  %1189 = vmatmul.mubr.bf16.gmra.mxu0 %v1152
  %v1190 = vpop.f32.mrf.mxu0
  %v1191 = vadd.f32 0.0, %v1190
  %v1192 = vpop.f32.mrf.mxu0
  %v1193 = vpop.f32.mrf.mxu0
  %v1194 = vadd.f32 0.0, %v1193
  %v1195 = vpop.f32.mrf.mxu0
  %1196 = vdwg.mxu0
  %v1197 = vadd.f32 %v900, %v1191
  %v1198 = vadd.f32 %v901, %v1194
  %s1199 = scalar_lea.vmem %s0, 1024
  %v1200 = vld [vmem:[%s1199] sm:$0xff]
  %v1201 = vld [vmem:[%s1199 + $0x8] sm:$0xff]
  %v1202 = vld [vmem:[%s1199 + $0x10] sm:$0xff]
  %v1203 = vld [vmem:[%s1199 + $0x18] sm:$0xff]
  %v1204 = vld [vmem:[%s1199 + $0x20] sm:$0xff]
  %v1205 = vld [vmem:[%s1199 + $0x28] sm:$0xff]
  %v1206 = vld [vmem:[%s1199 + $0x30] sm:$0xff]
  %v1207 = vld [vmem:[%s1199 + $0x38] sm:$0xff]
  %v1208 = vld [vmem:[%s1199 + $0x40] sm:$0xff]
  %v1209 = vld [vmem:[%s1199 + $0x48] sm:$0xff]
  %v1210 = vld [vmem:[%s1199 + $0x50] sm:$0xff]
  %v1211 = vld [vmem:[%s1199 + $0x58] sm:$0xff]
  %v1212 = vld [vmem:[%s1199 + $0x60] sm:$0xff]
  %v1213 = vld [vmem:[%s1199 + $0x68] sm:$0xff]
  %v1214 = vld [vmem:[%s1199 + $0x70] sm:$0xff]
  %v1215 = vld [vmem:[%s1199 + $0x78] sm:$0xff]
  %v1216 = vld [vmem:[%s1199 + $0x80] sm:$0xff]
  %v1217 = vld [vmem:[%s1199 + $0x88] sm:$0xff]
  %v1218 = vld [vmem:[%s1199 + $0x90] sm:$0xff]
  %v1219 = vld [vmem:[%s1199 + $0x98] sm:$0xff]
  %v1220 = vld [vmem:[%s1199 + $0xa0] sm:$0xff]
  %v1221 = vld [vmem:[%s1199 + $0xa8] sm:$0xff]
  %v1222 = vld [vmem:[%s1199 + $0xb0] sm:$0xff]
  %v1223 = vld [vmem:[%s1199 + $0xb8] sm:$0xff]
  %v1224 = vld [vmem:[%s1199 + $0xc0] sm:$0xff]
  %v1225 = vld [vmem:[%s1199 + $0xc8] sm:$0xff]
  %v1226 = vld [vmem:[%s1199 + $0xd0] sm:$0xff]
  %v1227 = vld [vmem:[%s1199 + $0xd8] sm:$0xff]
  %v1228 = vld [vmem:[%s1199 + $0xe0] sm:$0xff]
  %v1229 = vld [vmem:[%s1199 + $0xe8] sm:$0xff]
  %v1230 = vld [vmem:[%s1199 + $0xf0] sm:$0xff]
  %v1231 = vld [vmem:[%s1199 + $0xf8] sm:$0xff]
  %1232 = vset.pattern.permute.xlu0 0
  %1233 = vperm.xlu0 %1232, %v1200
  %v1234 = vpop.permute.xlu0 %1233
  %1235 = vset.pattern.permute.xlu0 0
  %1236 = vperm.xlu0 %1235, %v1201
  %v1237 = vpop.permute.xlu0 %1236
  %1238 = vset.pattern.permute.xlu0 0
  %1239 = vperm.xlu0 %1238, %v1202
  %v1240 = vpop.permute.xlu0 %1239
  %1241 = vset.pattern.permute.xlu0 0
  %1242 = vperm.xlu0 %1241, %v1203
  %v1243 = vpop.permute.xlu0 %1242
  %1244 = vset.pattern.permute.xlu0 0
  %1245 = vperm.xlu0 %1244, %v1204
  %v1246 = vpop.permute.xlu0 %1245
  %1247 = vset.pattern.permute.xlu0 0
  %1248 = vperm.xlu0 %1247, %v1205
  %v1249 = vpop.permute.xlu0 %1248
  %1250 = vset.pattern.permute.xlu0 0
  %1251 = vperm.xlu0 %1250, %v1206
  %v1252 = vpop.permute.xlu0 %1251
  %1253 = vset.pattern.permute.xlu0 0
  %1254 = vperm.xlu0 %1253, %v1207
  %v1255 = vpop.permute.xlu0 %1254
  %1256 = vset.pattern.permute.xlu0 0
  %1257 = vperm.xlu0 %1256, %v1208
  %v1258 = vpop.permute.xlu0 %1257
  %1259 = vset.pattern.permute.xlu0 0
  %1260 = vperm.xlu0 %1259, %v1209
  %v1261 = vpop.permute.xlu0 %1260
  %1262 = vset.pattern.permute.xlu0 0
  %1263 = vperm.xlu0 %1262, %v1210
  %v1264 = vpop.permute.xlu0 %1263
  %1265 = vset.pattern.permute.xlu0 0
  %1266 = vperm.xlu0 %1265, %v1211
  %v1267 = vpop.permute.xlu0 %1266
  %1268 = vset.pattern.permute.xlu0 0
  %1269 = vperm.xlu0 %1268, %v1212
  %v1270 = vpop.permute.xlu0 %1269
  %1271 = vset.pattern.permute.xlu0 0
  %1272 = vperm.xlu0 %1271, %v1213
  %v1273 = vpop.permute.xlu0 %1272
  %1274 = vset.pattern.permute.xlu0 0
  %1275 = vperm.xlu0 %1274, %v1214
  %v1276 = vpop.permute.xlu0 %1275
  %1277 = vset.pattern.permute.xlu0 0
  %1278 = vperm.xlu0 %1277, %v1215
  %v1279 = vpop.permute.xlu0 %1278
  %1280 = vset.pattern.permute.xlu0 0
  %1281 = vperm.xlu0 %1280, %v1216
  %v1282 = vpop.permute.xlu0 %1281
  %1283 = vset.pattern.permute.xlu0 0
  %1284 = vperm.xlu0 %1283, %v1217
  %v1285 = vpop.permute.xlu0 %1284
  %1286 = vset.pattern.permute.xlu0 0
  %1287 = vperm.xlu0 %1286, %v1218
  %v1288 = vpop.permute.xlu0 %1287
  %1289 = vset.pattern.permute.xlu0 0
  %1290 = vperm.xlu0 %1289, %v1219
  %v1291 = vpop.permute.xlu0 %1290
  %1292 = vset.pattern.permute.xlu0 0
  %1293 = vperm.xlu0 %1292, %v1220
  %v1294 = vpop.permute.xlu0 %1293
  %1295 = vset.pattern.permute.xlu0 0
  %1296 = vperm.xlu0 %1295, %v1221
  %v1297 = vpop.permute.xlu0 %1296
  %1298 = vset.pattern.permute.xlu0 0
  %1299 = vperm.xlu0 %1298, %v1222
  %v1300 = vpop.permute.xlu0 %1299
  %1301 = vset.pattern.permute.xlu0 0
  %1302 = vperm.xlu0 %1301, %v1223
  %v1303 = vpop.permute.xlu0 %1302
  %1304 = vset.pattern.permute.xlu0 0
  %1305 = vperm.xlu0 %1304, %v1224
  %v1306 = vpop.permute.xlu0 %1305
  %1307 = vset.pattern.permute.xlu0 0
  %1308 = vperm.xlu0 %1307, %v1225
  %v1309 = vpop.permute.xlu0 %1308
  %1310 = vset.pattern.permute.xlu0 0
  %1311 = vperm.xlu0 %1310, %v1226
  %v1312 = vpop.permute.xlu0 %1311
  %1313 = vset.pattern.permute.xlu0 0
  %1314 = vperm.xlu0 %1313, %v1227
  %v1315 = vpop.permute.xlu0 %1314
  %1316 = vset.pattern.permute.xlu0 0
  %1317 = vperm.xlu0 %1316, %v1228
  %v1318 = vpop.permute.xlu0 %1317
  %1319 = vset.pattern.permute.xlu0 0
  %1320 = vperm.xlu0 %1319, %v1229
  %v1321 = vpop.permute.xlu0 %1320
  %1322 = vset.pattern.permute.xlu0 0
  %1323 = vperm.xlu0 %1322, %v1230
  %v1324 = vpop.permute.xlu0 %1323
  %1325 = vset.pattern.permute.xlu0 0
  %1326 = vperm.xlu0 %1325, %v1231
  %v1327 = vpop.permute.xlu0 %1326
  %vm1328 = vcmp.eq.s32.totalorder %v1234, %v16
  %vm1329 = vcmp.eq.s32.totalorder %v1237, %v16
  %vm1330 = vcmp.eq.s32.totalorder %v1240, %v16
  %vm1331 = vcmp.eq.s32.totalorder %v1243, %v16
  %vm1332 = vcmp.eq.s32.totalorder %v1246, %v16
  %vm1333 = vcmp.eq.s32.totalorder %v1249, %v16
  %vm1334 = vcmp.eq.s32.totalorder %v1252, %v16
  %vm1335 = vcmp.eq.s32.totalorder %v1255, %v16
  %vm1336 = vcmp.eq.s32.totalorder %v1258, %v16
  %vm1337 = vcmp.eq.s32.totalorder %v1261, %v16
  %vm1338 = vcmp.eq.s32.totalorder %v1264, %v16
  %vm1339 = vcmp.eq.s32.totalorder %v1267, %v16
  %vm1340 = vcmp.eq.s32.totalorder %v1270, %v16
  %vm1341 = vcmp.eq.s32.totalorder %v1273, %v16
  %vm1342 = vcmp.eq.s32.totalorder %v1276, %v16
  %vm1343 = vcmp.eq.s32.totalorder %v1279, %v16
  %vm1344 = vcmp.eq.s32.totalorder %v1282, %v16
  %vm1345 = vcmp.eq.s32.totalorder %v1285, %v16
  %vm1346 = vcmp.eq.s32.totalorder %v1288, %v16
  %vm1347 = vcmp.eq.s32.totalorder %v1291, %v16
  %vm1348 = vcmp.eq.s32.totalorder %v1294, %v16
  %vm1349 = vcmp.eq.s32.totalorder %v1297, %v16
  %vm1350 = vcmp.eq.s32.totalorder %v1300, %v16
  %vm1351 = vcmp.eq.s32.totalorder %v1303, %v16
  %vm1352 = vcmp.eq.s32.totalorder %v1306, %v16
  %vm1353 = vcmp.eq.s32.totalorder %v1309, %v16
  %vm1354 = vcmp.eq.s32.totalorder %v1312, %v16
  %vm1355 = vcmp.eq.s32.totalorder %v1315, %v16
  %vm1356 = vcmp.eq.s32.totalorder %v1318, %v16
  %vm1357 = vcmp.eq.s32.totalorder %v1321, %v16
  %vm1358 = vcmp.eq.s32.totalorder %v1324, %v16
  %vm1359 = vcmp.eq.s32.totalorder %v1327, %v16
  %v1360 = vsel %vm1328, 1, 0
  %v1361 = vsel %vm1329, 1, 0
  %v1362 = vsel %vm1330, 1, 0
  %v1363 = vsel %vm1331, 1, 0
  %v1364 = vsel %vm1332, 1, 0
  %v1365 = vsel %vm1333, 1, 0
  %v1366 = vsel %vm1334, 1, 0
  %v1367 = vsel %vm1335, 1, 0
  %v1368 = vsel %vm1336, 1, 0
  %v1369 = vsel %vm1337, 1, 0
  %v1370 = vsel %vm1338, 1, 0
  %v1371 = vsel %vm1339, 1, 0
  %v1372 = vsel %vm1340, 1, 0
  %v1373 = vsel %vm1341, 1, 0
  %v1374 = vsel %vm1342, 1, 0
  %v1375 = vsel %vm1343, 1, 0
  %v1376 = vsel %vm1344, 1, 0
  %v1377 = vsel %vm1345, 1, 0
  %v1378 = vsel %vm1346, 1, 0
  %v1379 = vsel %vm1347, 1, 0
  %v1380 = vsel %vm1348, 1, 0
  %v1381 = vsel %vm1349, 1, 0
  %v1382 = vsel %vm1350, 1, 0
  %v1383 = vsel %vm1351, 1, 0
  %v1384 = vsel %vm1352, 1, 0
  %v1385 = vsel %vm1353, 1, 0
  %v1386 = vsel %vm1354, 1, 0
  %v1387 = vsel %vm1355, 1, 0
  %v1388 = vsel %vm1356, 1, 0
  %v1389 = vsel %vm1357, 1, 0
  %v1390 = vsel %vm1358, 1, 0
  %v1391 = vsel %vm1359, 1, 0
  %v1392 = vcvt.s32.f32 %v1360
  %v1393 = vcvt.s32.f32 %v1361
  %v1394 = vcvt.s32.f32 %v1362
  %v1395 = vcvt.s32.f32 %v1363
  %v1396 = vcvt.s32.f32 %v1364
  %v1397 = vcvt.s32.f32 %v1365
  %v1398 = vcvt.s32.f32 %v1366
  %v1399 = vcvt.s32.f32 %v1367
  %v1400 = vcvt.s32.f32 %v1368
  %v1401 = vcvt.s32.f32 %v1369
  %v1402 = vcvt.s32.f32 %v1370
  %v1403 = vcvt.s32.f32 %v1371
  %v1404 = vcvt.s32.f32 %v1372
  %v1405 = vcvt.s32.f32 %v1373
  %v1406 = vcvt.s32.f32 %v1374
  %v1407 = vcvt.s32.f32 %v1375
  %v1408 = vcvt.s32.f32 %v1376
  %v1409 = vcvt.s32.f32 %v1377
  %v1410 = vcvt.s32.f32 %v1378
  %v1411 = vcvt.s32.f32 %v1379
  %v1412 = vcvt.s32.f32 %v1380
  %v1413 = vcvt.s32.f32 %v1381
  %v1414 = vcvt.s32.f32 %v1382
  %v1415 = vcvt.s32.f32 %v1383
  %v1416 = vcvt.s32.f32 %v1384
  %v1417 = vcvt.s32.f32 %v1385
  %v1418 = vcvt.s32.f32 %v1386
  %v1419 = vcvt.s32.f32 %v1387
  %v1420 = vcvt.s32.f32 %v1388
  %v1421 = vcvt.s32.f32 %v1389
  %v1422 = vcvt.s32.f32 %v1390
  %v1423 = vcvt.s32.f32 %v1391
  %v1424 = vpack.c.bf16 %v1393, %v1392
  %v1425 = vpack.c.bf16 %v1395, %v1394
  %v1426 = vpack.c.bf16 %v1397, %v1396
  %v1427 = vpack.c.bf16 %v1399, %v1398
  %v1428 = vpack.c.bf16 %v1401, %v1400
  %v1429 = vpack.c.bf16 %v1403, %v1402
  %v1430 = vpack.c.bf16 %v1405, %v1404
  %v1431 = vpack.c.bf16 %v1407, %v1406
  %v1432 = vpack.c.bf16 %v1409, %v1408
  %v1433 = vpack.c.bf16 %v1411, %v1410
  %v1434 = vpack.c.bf16 %v1413, %v1412
  %v1435 = vpack.c.bf16 %v1415, %v1414
  %v1436 = vpack.c.bf16 %v1417, %v1416
  %v1437 = vpack.c.bf16 %v1419, %v1418
  %v1438 = vpack.c.bf16 %v1421, %v1420
  %v1439 = vpack.c.bf16 %v1423, %v1422
  %s1440 = scalar_lea.vmem %s1, 64
  %v1441 = vld [vmem:[%s1440] sm:$0xff]
  %v1442 = vld [vmem:[%s1440 + $0x8] sm:$0xff]
  %v1445 = vunpack.c.l.b16 %v1441
  %v1446 = vunpack.c.h.b16 %v1441
  %v1447 = vunpack.c.l.b16 %v1442
  %v1448 = vunpack.c.h.b16 %v1442
  %v1449 = vpack.c.b16 %v1447, %v1445
  %v1450 = vpack.c.b16 %v1448, %v1446
  %1453 = vmatprep.subr.bf16.mxu0 0
  %1454 = vmatpush1.bf16.msra.mxu0 %v1431
  %1455 = vmatprep.subr.bf16.mxu0 0
  %1456 = vmatpush1.bf16.msra.mxu0 %v1430
  %1457 = vmatprep.subr.bf16.mxu0 0
  %1458 = vmatpush1.bf16.msra.mxu0 %v1429
  %1459 = vmatprep.subr.bf16.mxu0 0
  %1460 = vmatpush1.bf16.msra.mxu0 %v1428
  %1461 = vmatprep.subr.bf16.mxu0 0
  %1462 = vmatpush1.bf16.msra.mxu0 %v1427
  %1463 = vmatprep.subr.bf16.mxu0 0
  %1464 = vmatpush1.bf16.msra.mxu0 %v1426
  %1465 = vmatprep.subr.bf16.mxu0 0
  %1466 = vmatpush1.bf16.msra.mxu0 %v1425
  %1467 = vmatprep.subr.bf16.mxu0 0
  %1468 = vmatpush1.bf16.msra.mxu0 %v1424
  %1469 = vmatprep.subr.bf16.mxu0 0
  %1470 = vmatpush2.bf16.msra.mxu0 %v1439
  %1471 = vmatprep.subr.bf16.mxu0 0
  %1472 = vmatpush2.bf16.msra.mxu0 %v1438
  %1473 = vmatprep.subr.bf16.mxu0 0
  %1474 = vmatpush2.bf16.msra.mxu0 %v1437
  %1475 = vmatprep.subr.bf16.mxu0 0
  %1476 = vmatpush2.bf16.msra.mxu0 %v1436
  %1477 = vmatprep.subr.bf16.mxu0 0
  %1478 = vmatpush2.bf16.msra.mxu0 %v1435
  %1479 = vmatprep.subr.bf16.mxu0 0
  %1480 = vmatpush2.bf16.msra.mxu0 %v1434
  %1481 = vmatprep.subr.bf16.mxu0 0
  %1482 = vmatpush2.bf16.msra.mxu0 %v1433
  %1483 = vmatprep.subr.bf16.mxu0 0
  %1484 = vmatpush2.bf16.msra.mxu0 %v1432
  %1485 = vmatprep.mubr.bf16.mxu0 %v1450
  %1486 = vmatmul.mubr.bf16.gmra.mxu0 %v1449
  %v1487 = vpop.f32.mrf.mxu0
  %v1488 = vadd.f32 0.0, %v1487
  %v1489 = vpop.f32.mrf.mxu0
  %v1490 = vpop.f32.mrf.mxu0
  %v1491 = vadd.f32 0.0, %v1490
  %v1492 = vpop.f32.mrf.mxu0
  %1493 = vdwg.mxu0
  %v1494 = vadd.f32 %v1197, %v1488
  %v1495 = vadd.f32 %v1198, %v1491
  %s1496 = scalar_lea.vmem %s0, 1280
  %v1497 = vld [vmem:[%s1496] sm:$0xff]
  %v1498 = vld [vmem:[%s1496 + $0x8] sm:$0xff]
  %v1499 = vld [vmem:[%s1496 + $0x10] sm:$0xff]
  %v1500 = vld [vmem:[%s1496 + $0x18] sm:$0xff]
  %v1501 = vld [vmem:[%s1496 + $0x20] sm:$0xff]
  %v1502 = vld [vmem:[%s1496 + $0x28] sm:$0xff]
  %v1503 = vld [vmem:[%s1496 + $0x30] sm:$0xff]
  %v1504 = vld [vmem:[%s1496 + $0x38] sm:$0xff]
  %v1505 = vld [vmem:[%s1496 + $0x40] sm:$0xff]
  %v1506 = vld [vmem:[%s1496 + $0x48] sm:$0xff]
  %v1507 = vld [vmem:[%s1496 + $0x50] sm:$0xff]
  %v1508 = vld [vmem:[%s1496 + $0x58] sm:$0xff]
  %v1509 = vld [vmem:[%s1496 + $0x60] sm:$0xff]
  %v1510 = vld [vmem:[%s1496 + $0x68] sm:$0xff]
  %v1511 = vld [vmem:[%s1496 + $0x70] sm:$0xff]
  %v1512 = vld [vmem:[%s1496 + $0x78] sm:$0xff]
  %v1513 = vld [vmem:[%s1496 + $0x80] sm:$0xff]
  %v1514 = vld [vmem:[%s1496 + $0x88] sm:$0xff]
  %v1515 = vld [vmem:[%s1496 + $0x90] sm:$0xff]
  %v1516 = vld [vmem:[%s1496 + $0x98] sm:$0xff]
  %v1517 = vld [vmem:[%s1496 + $0xa0] sm:$0xff]
  %v1518 = vld [vmem:[%s1496 + $0xa8] sm:$0xff]
  %v1519 = vld [vmem:[%s1496 + $0xb0] sm:$0xff]
  %v1520 = vld [vmem:[%s1496 + $0xb8] sm:$0xff]
  %v1521 = vld [vmem:[%s1496 + $0xc0] sm:$0xff]
  %v1522 = vld [vmem:[%s1496 + $0xc8] sm:$0xff]
  %v1523 = vld [vmem:[%s1496 + $0xd0] sm:$0xff]
  %v1524 = vld [vmem:[%s1496 + $0xd8] sm:$0xff]
  %v1525 = vld [vmem:[%s1496 + $0xe0] sm:$0xff]
  %v1526 = vld [vmem:[%s1496 + $0xe8] sm:$0xff]
  %v1527 = vld [vmem:[%s1496 + $0xf0] sm:$0xff]
  %v1528 = vld [vmem:[%s1496 + $0xf8] sm:$0xff]
  %1529 = vset.pattern.permute.xlu0 0
  %1530 = vperm.xlu0 %1529, %v1497
  %v1531 = vpop.permute.xlu0 %1530
  %1532 = vset.pattern.permute.xlu0 0
  %1533 = vperm.xlu0 %1532, %v1498
  %v1534 = vpop.permute.xlu0 %1533
  %1535 = vset.pattern.permute.xlu0 0
  %1536 = vperm.xlu0 %1535, %v1499
  %v1537 = vpop.permute.xlu0 %1536
  %1538 = vset.pattern.permute.xlu0 0
  %1539 = vperm.xlu0 %1538, %v1500
  %v1540 = vpop.permute.xlu0 %1539
  %1541 = vset.pattern.permute.xlu0 0
  %1542 = vperm.xlu0 %1541, %v1501
  %v1543 = vpop.permute.xlu0 %1542
  %1544 = vset.pattern.permute.xlu0 0
  %1545 = vperm.xlu0 %1544, %v1502
  %v1546 = vpop.permute.xlu0 %1545
  %1547 = vset.pattern.permute.xlu0 0
  %1548 = vperm.xlu0 %1547, %v1503
  %v1549 = vpop.permute.xlu0 %1548
  %1550 = vset.pattern.permute.xlu0 0
  %1551 = vperm.xlu0 %1550, %v1504
  %v1552 = vpop.permute.xlu0 %1551
  %1553 = vset.pattern.permute.xlu0 0
  %1554 = vperm.xlu0 %1553, %v1505
  %v1555 = vpop.permute.xlu0 %1554
  %1556 = vset.pattern.permute.xlu0 0
  %1557 = vperm.xlu0 %1556, %v1506
  %v1558 = vpop.permute.xlu0 %1557
  %1559 = vset.pattern.permute.xlu0 0
  %1560 = vperm.xlu0 %1559, %v1507
  %v1561 = vpop.permute.xlu0 %1560
  %1562 = vset.pattern.permute.xlu0 0
  %1563 = vperm.xlu0 %1562, %v1508
  %v1564 = vpop.permute.xlu0 %1563
  %1565 = vset.pattern.permute.xlu0 0
  %1566 = vperm.xlu0 %1565, %v1509
  %v1567 = vpop.permute.xlu0 %1566
  %1568 = vset.pattern.permute.xlu0 0
  %1569 = vperm.xlu0 %1568, %v1510
  %v1570 = vpop.permute.xlu0 %1569
  %1571 = vset.pattern.permute.xlu0 0
  %1572 = vperm.xlu0 %1571, %v1511
  %v1573 = vpop.permute.xlu0 %1572
  %1574 = vset.pattern.permute.xlu0 0
  %1575 = vperm.xlu0 %1574, %v1512
  %v1576 = vpop.permute.xlu0 %1575
  %1577 = vset.pattern.permute.xlu0 0
  %1578 = vperm.xlu0 %1577, %v1513
  %v1579 = vpop.permute.xlu0 %1578
  %1580 = vset.pattern.permute.xlu0 0
  %1581 = vperm.xlu0 %1580, %v1514
  %v1582 = vpop.permute.xlu0 %1581
  %1583 = vset.pattern.permute.xlu0 0
  %1584 = vperm.xlu0 %1583, %v1515
  %v1585 = vpop.permute.xlu0 %1584
  %1586 = vset.pattern.permute.xlu0 0
  %1587 = vperm.xlu0 %1586, %v1516
  %v1588 = vpop.permute.xlu0 %1587
  %1589 = vset.pattern.permute.xlu0 0
  %1590 = vperm.xlu0 %1589, %v1517
  %v1591 = vpop.permute.xlu0 %1590
  %1592 = vset.pattern.permute.xlu0 0
  %1593 = vperm.xlu0 %1592, %v1518
  %v1594 = vpop.permute.xlu0 %1593
  %1595 = vset.pattern.permute.xlu0 0
  %1596 = vperm.xlu0 %1595, %v1519
  %v1597 = vpop.permute.xlu0 %1596
  %1598 = vset.pattern.permute.xlu0 0
  %1599 = vperm.xlu0 %1598, %v1520
  %v1600 = vpop.permute.xlu0 %1599
  %1601 = vset.pattern.permute.xlu0 0
  %1602 = vperm.xlu0 %1601, %v1521
  %v1603 = vpop.permute.xlu0 %1602
  %1604 = vset.pattern.permute.xlu0 0
  %1605 = vperm.xlu0 %1604, %v1522
  %v1606 = vpop.permute.xlu0 %1605
  %1607 = vset.pattern.permute.xlu0 0
  %1608 = vperm.xlu0 %1607, %v1523
  %v1609 = vpop.permute.xlu0 %1608
  %1610 = vset.pattern.permute.xlu0 0
  %1611 = vperm.xlu0 %1610, %v1524
  %v1612 = vpop.permute.xlu0 %1611
  %1613 = vset.pattern.permute.xlu0 0
  %1614 = vperm.xlu0 %1613, %v1525
  %v1615 = vpop.permute.xlu0 %1614
  %1616 = vset.pattern.permute.xlu0 0
  %1617 = vperm.xlu0 %1616, %v1526
  %v1618 = vpop.permute.xlu0 %1617
  %1619 = vset.pattern.permute.xlu0 0
  %1620 = vperm.xlu0 %1619, %v1527
  %v1621 = vpop.permute.xlu0 %1620
  %1622 = vset.pattern.permute.xlu0 0
  %1623 = vperm.xlu0 %1622, %v1528
  %v1624 = vpop.permute.xlu0 %1623
  %vm1625 = vcmp.eq.s32.totalorder %v1531, %v16
  %vm1626 = vcmp.eq.s32.totalorder %v1534, %v16
  %vm1627 = vcmp.eq.s32.totalorder %v1537, %v16
  %vm1628 = vcmp.eq.s32.totalorder %v1540, %v16
  %vm1629 = vcmp.eq.s32.totalorder %v1543, %v16
  %vm1630 = vcmp.eq.s32.totalorder %v1546, %v16
  %vm1631 = vcmp.eq.s32.totalorder %v1549, %v16
  %vm1632 = vcmp.eq.s32.totalorder %v1552, %v16
  %vm1633 = vcmp.eq.s32.totalorder %v1555, %v16
  %vm1634 = vcmp.eq.s32.totalorder %v1558, %v16
  %vm1635 = vcmp.eq.s32.totalorder %v1561, %v16
  %vm1636 = vcmp.eq.s32.totalorder %v1564, %v16
  %vm1637 = vcmp.eq.s32.totalorder %v1567, %v16
  %vm1638 = vcmp.eq.s32.totalorder %v1570, %v16
  %vm1639 = vcmp.eq.s32.totalorder %v1573, %v16
  %vm1640 = vcmp.eq.s32.totalorder %v1576, %v16
  %vm1641 = vcmp.eq.s32.totalorder %v1579, %v16
  %vm1642 = vcmp.eq.s32.totalorder %v1582, %v16
  %vm1643 = vcmp.eq.s32.totalorder %v1585, %v16
  %vm1644 = vcmp.eq.s32.totalorder %v1588, %v16
  %vm1645 = vcmp.eq.s32.totalorder %v1591, %v16
  %vm1646 = vcmp.eq.s32.totalorder %v1594, %v16
  %vm1647 = vcmp.eq.s32.totalorder %v1597, %v16
  %vm1648 = vcmp.eq.s32.totalorder %v1600, %v16
  %vm1649 = vcmp.eq.s32.totalorder %v1603, %v16
  %vm1650 = vcmp.eq.s32.totalorder %v1606, %v16
  %vm1651 = vcmp.eq.s32.totalorder %v1609, %v16
  %vm1652 = vcmp.eq.s32.totalorder %v1612, %v16
  %vm1653 = vcmp.eq.s32.totalorder %v1615, %v16
  %vm1654 = vcmp.eq.s32.totalorder %v1618, %v16
  %vm1655 = vcmp.eq.s32.totalorder %v1621, %v16
  %vm1656 = vcmp.eq.s32.totalorder %v1624, %v16
  %v1657 = vsel %vm1625, 1, 0
  %v1658 = vsel %vm1626, 1, 0
  %v1659 = vsel %vm1627, 1, 0
  %v1660 = vsel %vm1628, 1, 0
  %v1661 = vsel %vm1629, 1, 0
  %v1662 = vsel %vm1630, 1, 0
  %v1663 = vsel %vm1631, 1, 0
  %v1664 = vsel %vm1632, 1, 0
  %v1665 = vsel %vm1633, 1, 0
  %v1666 = vsel %vm1634, 1, 0
  %v1667 = vsel %vm1635, 1, 0
  %v1668 = vsel %vm1636, 1, 0
  %v1669 = vsel %vm1637, 1, 0
  %v1670 = vsel %vm1638, 1, 0
  %v1671 = vsel %vm1639, 1, 0
  %v1672 = vsel %vm1640, 1, 0
  %v1673 = vsel %vm1641, 1, 0
  %v1674 = vsel %vm1642, 1, 0
  %v1675 = vsel %vm1643, 1, 0
  %v1676 = vsel %vm1644, 1, 0
  %v1677 = vsel %vm1645, 1, 0
  %v1678 = vsel %vm1646, 1, 0
  %v1679 = vsel %vm1647, 1, 0
  %v1680 = vsel %vm1648, 1, 0
  %v1681 = vsel %vm1649, 1, 0
  %v1682 = vsel %vm1650, 1, 0
  %v1683 = vsel %vm1651, 1, 0
  %v1684 = vsel %vm1652, 1, 0
  %v1685 = vsel %vm1653, 1, 0
  %v1686 = vsel %vm1654, 1, 0
  %v1687 = vsel %vm1655, 1, 0
  %v1688 = vsel %vm1656, 1, 0
  %v1689 = vcvt.s32.f32 %v1657
  %v1690 = vcvt.s32.f32 %v1658
  %v1691 = vcvt.s32.f32 %v1659
  %v1692 = vcvt.s32.f32 %v1660
  %v1693 = vcvt.s32.f32 %v1661
  %v1694 = vcvt.s32.f32 %v1662
  %v1695 = vcvt.s32.f32 %v1663
  %v1696 = vcvt.s32.f32 %v1664
  %v1697 = vcvt.s32.f32 %v1665
  %v1698 = vcvt.s32.f32 %v1666
  %v1699 = vcvt.s32.f32 %v1667
  %v1700 = vcvt.s32.f32 %v1668
  %v1701 = vcvt.s32.f32 %v1669
  %v1702 = vcvt.s32.f32 %v1670
  %v1703 = vcvt.s32.f32 %v1671
  %v1704 = vcvt.s32.f32 %v1672
  %v1705 = vcvt.s32.f32 %v1673
  %v1706 = vcvt.s32.f32 %v1674
  %v1707 = vcvt.s32.f32 %v1675
  %v1708 = vcvt.s32.f32 %v1676
  %v1709 = vcvt.s32.f32 %v1677
  %v1710 = vcvt.s32.f32 %v1678
  %v1711 = vcvt.s32.f32 %v1679
  %v1712 = vcvt.s32.f32 %v1680
  %v1713 = vcvt.s32.f32 %v1681
  %v1714 = vcvt.s32.f32 %v1682
  %v1715 = vcvt.s32.f32 %v1683
  %v1716 = vcvt.s32.f32 %v1684
  %v1717 = vcvt.s32.f32 %v1685
  %v1718 = vcvt.s32.f32 %v1686
  %v1719 = vcvt.s32.f32 %v1687
  %v1720 = vcvt.s32.f32 %v1688
  %v1721 = vpack.c.bf16 %v1690, %v1689
  %v1722 = vpack.c.bf16 %v1692, %v1691
  %v1723 = vpack.c.bf16 %v1694, %v1693
  %v1724 = vpack.c.bf16 %v1696, %v1695
  %v1725 = vpack.c.bf16 %v1698, %v1697
  %v1726 = vpack.c.bf16 %v1700, %v1699
  %v1727 = vpack.c.bf16 %v1702, %v1701
  %v1728 = vpack.c.bf16 %v1704, %v1703
  %v1729 = vpack.c.bf16 %v1706, %v1705
  %v1730 = vpack.c.bf16 %v1708, %v1707
  %v1731 = vpack.c.bf16 %v1710, %v1709
  %v1732 = vpack.c.bf16 %v1712, %v1711
  %v1733 = vpack.c.bf16 %v1714, %v1713
  %v1734 = vpack.c.bf16 %v1716, %v1715
  %v1735 = vpack.c.bf16 %v1718, %v1717
  %v1736 = vpack.c.bf16 %v1720, %v1719
  %s1737 = scalar_lea.vmem %s1, 80
  %v1738 = vld [vmem:[%s1737] sm:$0xff]
  %v1739 = vld [vmem:[%s1737 + $0x8] sm:$0xff]
  %v1742 = vunpack.c.l.b16 %v1738
  %v1743 = vunpack.c.h.b16 %v1738
  %v1744 = vunpack.c.l.b16 %v1739
  %v1745 = vunpack.c.h.b16 %v1739
  %v1746 = vpack.c.b16 %v1744, %v1742
  %v1747 = vpack.c.b16 %v1745, %v1743
  %1750 = vmatprep.subr.bf16.mxu0 0
  %1751 = vmatpush1.bf16.msra.mxu0 %v1728
  %1752 = vmatprep.subr.bf16.mxu0 0
  %1753 = vmatpush1.bf16.msra.mxu0 %v1727
  %1754 = vmatprep.subr.bf16.mxu0 0
  %1755 = vmatpush1.bf16.msra.mxu0 %v1726
  %1756 = vmatprep.subr.bf16.mxu0 0
  %1757 = vmatpush1.bf16.msra.mxu0 %v1725
  %1758 = vmatprep.subr.bf16.mxu0 0
  %1759 = vmatpush1.bf16.msra.mxu0 %v1724
  %1760 = vmatprep.subr.bf16.mxu0 0
  %1761 = vmatpush1.bf16.msra.mxu0 %v1723
  %1762 = vmatprep.subr.bf16.mxu0 0
  %1763 = vmatpush1.bf16.msra.mxu0 %v1722
  %1764 = vmatprep.subr.bf16.mxu0 0
  %1765 = vmatpush1.bf16.msra.mxu0 %v1721
  %1766 = vmatprep.subr.bf16.mxu0 0
  %1767 = vmatpush2.bf16.msra.mxu0 %v1736
  %1768 = vmatprep.subr.bf16.mxu0 0
  %1769 = vmatpush2.bf16.msra.mxu0 %v1735
  %1770 = vmatprep.subr.bf16.mxu0 0
  %1771 = vmatpush2.bf16.msra.mxu0 %v1734
  %1772 = vmatprep.subr.bf16.mxu0 0
  %1773 = vmatpush2.bf16.msra.mxu0 %v1733
  %1774 = vmatprep.subr.bf16.mxu0 0
  %1775 = vmatpush2.bf16.msra.mxu0 %v1732
  %1776 = vmatprep.subr.bf16.mxu0 0
  %1777 = vmatpush2.bf16.msra.mxu0 %v1731
  %1778 = vmatprep.subr.bf16.mxu0 0
  %1779 = vmatpush2.bf16.msra.mxu0 %v1730
  %1780 = vmatprep.subr.bf16.mxu0 0
  %1781 = vmatpush2.bf16.msra.mxu0 %v1729
  %1782 = vmatprep.mubr.bf16.mxu0 %v1747
  %1783 = vmatmul.mubr.bf16.gmra.mxu0 %v1746
  %v1784 = vpop.f32.mrf.mxu0
  %v1785 = vadd.f32 0.0, %v1784
  %v1786 = vpop.f32.mrf.mxu0
  %v1787 = vpop.f32.mrf.mxu0
  %v1788 = vadd.f32 0.0, %v1787
  %v1789 = vpop.f32.mrf.mxu0
  %1790 = vdwg.mxu0
  %v1791 = vadd.f32 %v1494, %v1785
  %v1792 = vadd.f32 %v1495, %v1788
  %s1793 = scalar_lea.vmem %s0, 1536
  %v1794 = vld [vmem:[%s1793] sm:$0xff]
  %v1795 = vld [vmem:[%s1793 + $0x8] sm:$0xff]
  %v1796 = vld [vmem:[%s1793 + $0x10] sm:$0xff]
  %v1797 = vld [vmem:[%s1793 + $0x18] sm:$0xff]
  %v1798 = vld [vmem:[%s1793 + $0x20] sm:$0xff]
  %v1799 = vld [vmem:[%s1793 + $0x28] sm:$0xff]
  %v1800 = vld [vmem:[%s1793 + $0x30] sm:$0xff]
  %v1801 = vld [vmem:[%s1793 + $0x38] sm:$0xff]
  %v1802 = vld [vmem:[%s1793 + $0x40] sm:$0xff]
  %v1803 = vld [vmem:[%s1793 + $0x48] sm:$0xff]
  %v1804 = vld [vmem:[%s1793 + $0x50] sm:$0xff]
  %v1805 = vld [vmem:[%s1793 + $0x58] sm:$0xff]
  %v1806 = vld [vmem:[%s1793 + $0x60] sm:$0xff]
  %v1807 = vld [vmem:[%s1793 + $0x68] sm:$0xff]
  %v1808 = vld [vmem:[%s1793 + $0x70] sm:$0xff]
  %v1809 = vld [vmem:[%s1793 + $0x78] sm:$0xff]
  %v1810 = vld [vmem:[%s1793 + $0x80] sm:$0xff]
  %v1811 = vld [vmem:[%s1793 + $0x88] sm:$0xff]
  %v1812 = vld [vmem:[%s1793 + $0x90] sm:$0xff]
  %v1813 = vld [vmem:[%s1793 + $0x98] sm:$0xff]
  %v1814 = vld [vmem:[%s1793 + $0xa0] sm:$0xff]
  %v1815 = vld [vmem:[%s1793 + $0xa8] sm:$0xff]
  %v1816 = vld [vmem:[%s1793 + $0xb0] sm:$0xff]
  %v1817 = vld [vmem:[%s1793 + $0xb8] sm:$0xff]
  %v1818 = vld [vmem:[%s1793 + $0xc0] sm:$0xff]
  %v1819 = vld [vmem:[%s1793 + $0xc8] sm:$0xff]
  %v1820 = vld [vmem:[%s1793 + $0xd0] sm:$0xff]
  %v1821 = vld [vmem:[%s1793 + $0xd8] sm:$0xff]
  %v1822 = vld [vmem:[%s1793 + $0xe0] sm:$0xff]
  %v1823 = vld [vmem:[%s1793 + $0xe8] sm:$0xff]
  %v1824 = vld [vmem:[%s1793 + $0xf0] sm:$0xff]
  %v1825 = vld [vmem:[%s1793 + $0xf8] sm:$0xff]
  %1826 = vset.pattern.permute.xlu0 0
  %1827 = vperm.xlu0 %1826, %v1794
  %v1828 = vpop.permute.xlu0 %1827
  %1829 = vset.pattern.permute.xlu0 0
  %1830 = vperm.xlu0 %1829, %v1795
  %v1831 = vpop.permute.xlu0 %1830
  %1832 = vset.pattern.permute.xlu0 0
  %1833 = vperm.xlu0 %1832, %v1796
  %v1834 = vpop.permute.xlu0 %1833
  %1835 = vset.pattern.permute.xlu0 0
  %1836 = vperm.xlu0 %1835, %v1797
  %v1837 = vpop.permute.xlu0 %1836
  %1838 = vset.pattern.permute.xlu0 0
  %1839 = vperm.xlu0 %1838, %v1798
  %v1840 = vpop.permute.xlu0 %1839
  %1841 = vset.pattern.permute.xlu0 0
  %1842 = vperm.xlu0 %1841, %v1799
  %v1843 = vpop.permute.xlu0 %1842
  %1844 = vset.pattern.permute.xlu0 0
  %1845 = vperm.xlu0 %1844, %v1800
  %v1846 = vpop.permute.xlu0 %1845
  %1847 = vset.pattern.permute.xlu0 0
  %1848 = vperm.xlu0 %1847, %v1801
  %v1849 = vpop.permute.xlu0 %1848
  %1850 = vset.pattern.permute.xlu0 0
  %1851 = vperm.xlu0 %1850, %v1802
  %v1852 = vpop.permute.xlu0 %1851
  %1853 = vset.pattern.permute.xlu0 0
  %1854 = vperm.xlu0 %1853, %v1803
  %v1855 = vpop.permute.xlu0 %1854
  %1856 = vset.pattern.permute.xlu0 0
  %1857 = vperm.xlu0 %1856, %v1804
  %v1858 = vpop.permute.xlu0 %1857
  %1859 = vset.pattern.permute.xlu0 0
  %1860 = vperm.xlu0 %1859, %v1805
  %v1861 = vpop.permute.xlu0 %1860
  %1862 = vset.pattern.permute.xlu0 0
  %1863 = vperm.xlu0 %1862, %v1806
  %v1864 = vpop.permute.xlu0 %1863
  %1865 = vset.pattern.permute.xlu0 0
  %1866 = vperm.xlu0 %1865, %v1807
  %v1867 = vpop.permute.xlu0 %1866
  %1868 = vset.pattern.permute.xlu0 0
  %1869 = vperm.xlu0 %1868, %v1808
  %v1870 = vpop.permute.xlu0 %1869
  %1871 = vset.pattern.permute.xlu0 0
  %1872 = vperm.xlu0 %1871, %v1809
  %v1873 = vpop.permute.xlu0 %1872
  %1874 = vset.pattern.permute.xlu0 0
  %1875 = vperm.xlu0 %1874, %v1810
  %v1876 = vpop.permute.xlu0 %1875
  %1877 = vset.pattern.permute.xlu0 0
  %1878 = vperm.xlu0 %1877, %v1811
  %v1879 = vpop.permute.xlu0 %1878
  %1880 = vset.pattern.permute.xlu0 0
  %1881 = vperm.xlu0 %1880, %v1812
  %v1882 = vpop.permute.xlu0 %1881
  %1883 = vset.pattern.permute.xlu0 0
  %1884 = vperm.xlu0 %1883, %v1813
  %v1885 = vpop.permute.xlu0 %1884
  %1886 = vset.pattern.permute.xlu0 0
  %1887 = vperm.xlu0 %1886, %v1814
  %v1888 = vpop.permute.xlu0 %1887
  %1889 = vset.pattern.permute.xlu0 0
  %1890 = vperm.xlu0 %1889, %v1815
  %v1891 = vpop.permute.xlu0 %1890
  %1892 = vset.pattern.permute.xlu0 0
  %1893 = vperm.xlu0 %1892, %v1816
  %v1894 = vpop.permute.xlu0 %1893
  %1895 = vset.pattern.permute.xlu0 0
  %1896 = vperm.xlu0 %1895, %v1817
  %v1897 = vpop.permute.xlu0 %1896
  %1898 = vset.pattern.permute.xlu0 0
  %1899 = vperm.xlu0 %1898, %v1818
  %v1900 = vpop.permute.xlu0 %1899
  %1901 = vset.pattern.permute.xlu0 0
  %1902 = vperm.xlu0 %1901, %v1819
  %v1903 = vpop.permute.xlu0 %1902
  %1904 = vset.pattern.permute.xlu0 0
  %1905 = vperm.xlu0 %1904, %v1820
  %v1906 = vpop.permute.xlu0 %1905
  %1907 = vset.pattern.permute.xlu0 0
  %1908 = vperm.xlu0 %1907, %v1821
  %v1909 = vpop.permute.xlu0 %1908
  %1910 = vset.pattern.permute.xlu0 0
  %1911 = vperm.xlu0 %1910, %v1822
  %v1912 = vpop.permute.xlu0 %1911
  %1913 = vset.pattern.permute.xlu0 0
  %1914 = vperm.xlu0 %1913, %v1823
  %v1915 = vpop.permute.xlu0 %1914
  %1916 = vset.pattern.permute.xlu0 0
  %1917 = vperm.xlu0 %1916, %v1824
  %v1918 = vpop.permute.xlu0 %1917
  %1919 = vset.pattern.permute.xlu0 0
  %1920 = vperm.xlu0 %1919, %v1825
  %v1921 = vpop.permute.xlu0 %1920
  %vm1922 = vcmp.eq.s32.totalorder %v1828, %v16
  %vm1923 = vcmp.eq.s32.totalorder %v1831, %v16
  %vm1924 = vcmp.eq.s32.totalorder %v1834, %v16
  %vm1925 = vcmp.eq.s32.totalorder %v1837, %v16
  %vm1926 = vcmp.eq.s32.totalorder %v1840, %v16
  %vm1927 = vcmp.eq.s32.totalorder %v1843, %v16
  %vm1928 = vcmp.eq.s32.totalorder %v1846, %v16
  %vm1929 = vcmp.eq.s32.totalorder %v1849, %v16
  %vm1930 = vcmp.eq.s32.totalorder %v1852, %v16
  %vm1931 = vcmp.eq.s32.totalorder %v1855, %v16
  %vm1932 = vcmp.eq.s32.totalorder %v1858, %v16
  %vm1933 = vcmp.eq.s32.totalorder %v1861, %v16
  %vm1934 = vcmp.eq.s32.totalorder %v1864, %v16
  %vm1935 = vcmp.eq.s32.totalorder %v1867, %v16
  %vm1936 = vcmp.eq.s32.totalorder %v1870, %v16
  %vm1937 = vcmp.eq.s32.totalorder %v1873, %v16
  %vm1938 = vcmp.eq.s32.totalorder %v1876, %v16
  %vm1939 = vcmp.eq.s32.totalorder %v1879, %v16
  %vm1940 = vcmp.eq.s32.totalorder %v1882, %v16
  %vm1941 = vcmp.eq.s32.totalorder %v1885, %v16
  %vm1942 = vcmp.eq.s32.totalorder %v1888, %v16
  %vm1943 = vcmp.eq.s32.totalorder %v1891, %v16
  %vm1944 = vcmp.eq.s32.totalorder %v1894, %v16
  %vm1945 = vcmp.eq.s32.totalorder %v1897, %v16
  %vm1946 = vcmp.eq.s32.totalorder %v1900, %v16
  %vm1947 = vcmp.eq.s32.totalorder %v1903, %v16
  %vm1948 = vcmp.eq.s32.totalorder %v1906, %v16
  %vm1949 = vcmp.eq.s32.totalorder %v1909, %v16
  %vm1950 = vcmp.eq.s32.totalorder %v1912, %v16
  %vm1951 = vcmp.eq.s32.totalorder %v1915, %v16
  %vm1952 = vcmp.eq.s32.totalorder %v1918, %v16
  %vm1953 = vcmp.eq.s32.totalorder %v1921, %v16
  %v1954 = vsel %vm1922, 1, 0
  %v1955 = vsel %vm1923, 1, 0
  %v1956 = vsel %vm1924, 1, 0
  %v1957 = vsel %vm1925, 1, 0
  %v1958 = vsel %vm1926, 1, 0
  %v1959 = vsel %vm1927, 1, 0
  %v1960 = vsel %vm1928, 1, 0
  %v1961 = vsel %vm1929, 1, 0
  %v1962 = vsel %vm1930, 1, 0
  %v1963 = vsel %vm1931, 1, 0
  %v1964 = vsel %vm1932, 1, 0
  %v1965 = vsel %vm1933, 1, 0
  %v1966 = vsel %vm1934, 1, 0
  %v1967 = vsel %vm1935, 1, 0
  %v1968 = vsel %vm1936, 1, 0
  %v1969 = vsel %vm1937, 1, 0
  %v1970 = vsel %vm1938, 1, 0
  %v1971 = vsel %vm1939, 1, 0
  %v1972 = vsel %vm1940, 1, 0
  %v1973 = vsel %vm1941, 1, 0
  %v1974 = vsel %vm1942, 1, 0
  %v1975 = vsel %vm1943, 1, 0
  %v1976 = vsel %vm1944, 1, 0
  %v1977 = vsel %vm1945, 1, 0
  %v1978 = vsel %vm1946, 1, 0
  %v1979 = vsel %vm1947, 1, 0
  %v1980 = vsel %vm1948, 1, 0
  %v1981 = vsel %vm1949, 1, 0
  %v1982 = vsel %vm1950, 1, 0
  %v1983 = vsel %vm1951, 1, 0
  %v1984 = vsel %vm1952, 1, 0
  %v1985 = vsel %vm1953, 1, 0
  %v1986 = vcvt.s32.f32 %v1954
  %v1987 = vcvt.s32.f32 %v1955
  %v1988 = vcvt.s32.f32 %v1956
  %v1989 = vcvt.s32.f32 %v1957
  %v1990 = vcvt.s32.f32 %v1958
  %v1991 = vcvt.s32.f32 %v1959
  %v1992 = vcvt.s32.f32 %v1960
  %v1993 = vcvt.s32.f32 %v1961
  %v1994 = vcvt.s32.f32 %v1962
  %v1995 = vcvt.s32.f32 %v1963
  %v1996 = vcvt.s32.f32 %v1964
  %v1997 = vcvt.s32.f32 %v1965
  %v1998 = vcvt.s32.f32 %v1966
  %v1999 = vcvt.s32.f32 %v1967
  %v2000 = vcvt.s32.f32 %v1968
  %v2001 = vcvt.s32.f32 %v1969
  %v2002 = vcvt.s32.f32 %v1970
  %v2003 = vcvt.s32.f32 %v1971
  %v2004 = vcvt.s32.f32 %v1972
  %v2005 = vcvt.s32.f32 %v1973
  %v2006 = vcvt.s32.f32 %v1974
  %v2007 = vcvt.s32.f32 %v1975
  %v2008 = vcvt.s32.f32 %v1976
  %v2009 = vcvt.s32.f32 %v1977
  %v2010 = vcvt.s32.f32 %v1978
  %v2011 = vcvt.s32.f32 %v1979
  %v2012 = vcvt.s32.f32 %v1980
  %v2013 = vcvt.s32.f32 %v1981
  %v2014 = vcvt.s32.f32 %v1982
  %v2015 = vcvt.s32.f32 %v1983
  %v2016 = vcvt.s32.f32 %v1984
  %v2017 = vcvt.s32.f32 %v1985
  %v2018 = vpack.c.bf16 %v1987, %v1986
  %v2019 = vpack.c.bf16 %v1989, %v1988
  %v2020 = vpack.c.bf16 %v1991, %v1990
  %v2021 = vpack.c.bf16 %v1993, %v1992
  %v2022 = vpack.c.bf16 %v1995, %v1994
  %v2023 = vpack.c.bf16 %v1997, %v1996
  %v2024 = vpack.c.bf16 %v1999, %v1998
  %v2025 = vpack.c.bf16 %v2001, %v2000
  %v2026 = vpack.c.bf16 %v2003, %v2002
  %v2027 = vpack.c.bf16 %v2005, %v2004
  %v2028 = vpack.c.bf16 %v2007, %v2006
  %v2029 = vpack.c.bf16 %v2009, %v2008
  %v2030 = vpack.c.bf16 %v2011, %v2010
  %v2031 = vpack.c.bf16 %v2013, %v2012
  %v2032 = vpack.c.bf16 %v2015, %v2014
  %v2033 = vpack.c.bf16 %v2017, %v2016
  %s2034 = scalar_lea.vmem %s1, 96
  %v2035 = vld [vmem:[%s2034] sm:$0xff]
  %v2036 = vld [vmem:[%s2034 + $0x8] sm:$0xff]
  %v2039 = vunpack.c.l.b16 %v2035
  %v2040 = vunpack.c.h.b16 %v2035
  %v2041 = vunpack.c.l.b16 %v2036
  %v2042 = vunpack.c.h.b16 %v2036
  %v2043 = vpack.c.b16 %v2041, %v2039
  %v2044 = vpack.c.b16 %v2042, %v2040
  %2047 = vmatprep.subr.bf16.mxu0 0
  %2048 = vmatpush1.bf16.msra.mxu0 %v2025
  %2049 = vmatprep.subr.bf16.mxu0 0
  %2050 = vmatpush1.bf16.msra.mxu0 %v2024
  %2051 = vmatprep.subr.bf16.mxu0 0
  %2052 = vmatpush1.bf16.msra.mxu0 %v2023
  %2053 = vmatprep.subr.bf16.mxu0 0
  %2054 = vmatpush1.bf16.msra.mxu0 %v2022
  %2055 = vmatprep.subr.bf16.mxu0 0
  %2056 = vmatpush1.bf16.msra.mxu0 %v2021
  %2057 = vmatprep.subr.bf16.mxu0 0
  %2058 = vmatpush1.bf16.msra.mxu0 %v2020
  %2059 = vmatprep.subr.bf16.mxu0 0
  %2060 = vmatpush1.bf16.msra.mxu0 %v2019
  %2061 = vmatprep.subr.bf16.mxu0 0
  %2062 = vmatpush1.bf16.msra.mxu0 %v2018
  %2063 = vmatprep.subr.bf16.mxu0 0
  %2064 = vmatpush2.bf16.msra.mxu0 %v2033
  %2065 = vmatprep.subr.bf16.mxu0 0
  %2066 = vmatpush2.bf16.msra.mxu0 %v2032
  %2067 = vmatprep.subr.bf16.mxu0 0
  %2068 = vmatpush2.bf16.msra.mxu0 %v2031
  %2069 = vmatprep.subr.bf16.mxu0 0
  %2070 = vmatpush2.bf16.msra.mxu0 %v2030
  %2071 = vmatprep.subr.bf16.mxu0 0
  %2072 = vmatpush2.bf16.msra.mxu0 %v2029
  %2073 = vmatprep.subr.bf16.mxu0 0
  %2074 = vmatpush2.bf16.msra.mxu0 %v2028
  %2075 = vmatprep.subr.bf16.mxu0 0
  %2076 = vmatpush2.bf16.msra.mxu0 %v2027
  %2077 = vmatprep.subr.bf16.mxu0 0
  %2078 = vmatpush2.bf16.msra.mxu0 %v2026
  %2079 = vmatprep.mubr.bf16.mxu0 %v2044
  %2080 = vmatmul.mubr.bf16.gmra.mxu0 %v2043
  %v2081 = vpop.f32.mrf.mxu0
  %v2082 = vadd.f32 0.0, %v2081
  %v2083 = vpop.f32.mrf.mxu0
  %v2084 = vpop.f32.mrf.mxu0
  %v2085 = vadd.f32 0.0, %v2084
  %v2086 = vpop.f32.mrf.mxu0
  %2087 = vdwg.mxu0
  %v2088 = vadd.f32 %v1791, %v2082
  %v2089 = vadd.f32 %v1792, %v2085
  %s2090 = scalar_lea.vmem %s0, 1792
  %v2091 = vld [vmem:[%s2090] sm:$0xff]
  %v2092 = vld [vmem:[%s2090 + $0x8] sm:$0xff]
  %v2093 = vld [vmem:[%s2090 + $0x10] sm:$0xff]
  %v2094 = vld [vmem:[%s2090 + $0x18] sm:$0xff]
  %v2095 = vld [vmem:[%s2090 + $0x20] sm:$0xff]
  %v2096 = vld [vmem:[%s2090 + $0x28] sm:$0xff]
  %v2097 = vld [vmem:[%s2090 + $0x30] sm:$0xff]
  %v2098 = vld [vmem:[%s2090 + $0x38] sm:$0xff]
  %v2099 = vld [vmem:[%s2090 + $0x40] sm:$0xff]
  %v2100 = vld [vmem:[%s2090 + $0x48] sm:$0xff]
  %v2101 = vld [vmem:[%s2090 + $0x50] sm:$0xff]
  %v2102 = vld [vmem:[%s2090 + $0x58] sm:$0xff]
  %v2103 = vld [vmem:[%s2090 + $0x60] sm:$0xff]
  %v2104 = vld [vmem:[%s2090 + $0x68] sm:$0xff]
  %v2105 = vld [vmem:[%s2090 + $0x70] sm:$0xff]
  %v2106 = vld [vmem:[%s2090 + $0x78] sm:$0xff]
  %v2107 = vld [vmem:[%s2090 + $0x80] sm:$0xff]
  %v2108 = vld [vmem:[%s2090 + $0x88] sm:$0xff]
  %v2109 = vld [vmem:[%s2090 + $0x90] sm:$0xff]
  %v2110 = vld [vmem:[%s2090 + $0x98] sm:$0xff]
  %v2111 = vld [vmem:[%s2090 + $0xa0] sm:$0xff]
  %v2112 = vld [vmem:[%s2090 + $0xa8] sm:$0xff]
  %v2113 = vld [vmem:[%s2090 + $0xb0] sm:$0xff]
  %v2114 = vld [vmem:[%s2090 + $0xb8] sm:$0xff]
  %v2115 = vld [vmem:[%s2090 + $0xc0] sm:$0xff]
  %v2116 = vld [vmem:[%s2090 + $0xc8] sm:$0xff]
  %v2117 = vld [vmem:[%s2090 + $0xd0] sm:$0xff]
  %v2118 = vld [vmem:[%s2090 + $0xd8] sm:$0xff]
  %v2119 = vld [vmem:[%s2090 + $0xe0] sm:$0xff]
  %v2120 = vld [vmem:[%s2090 + $0xe8] sm:$0xff]
  %v2121 = vld [vmem:[%s2090 + $0xf0] sm:$0xff]
  %v2122 = vld [vmem:[%s2090 + $0xf8] sm:$0xff]
  %2123 = vset.pattern.permute.xlu0 0
  %2124 = vperm.xlu0 %2123, %v2091
  %v2125 = vpop.permute.xlu0 %2124
  %2126 = vset.pattern.permute.xlu0 0
  %2127 = vperm.xlu0 %2126, %v2092
  %v2128 = vpop.permute.xlu0 %2127
  %2129 = vset.pattern.permute.xlu0 0
  %2130 = vperm.xlu0 %2129, %v2093
  %v2131 = vpop.permute.xlu0 %2130
  %2132 = vset.pattern.permute.xlu0 0
  %2133 = vperm.xlu0 %2132, %v2094
  %v2134 = vpop.permute.xlu0 %2133
  %2135 = vset.pattern.permute.xlu0 0
  %2136 = vperm.xlu0 %2135, %v2095
  %v2137 = vpop.permute.xlu0 %2136
  %2138 = vset.pattern.permute.xlu0 0
  %2139 = vperm.xlu0 %2138, %v2096
  %v2140 = vpop.permute.xlu0 %2139
  %2141 = vset.pattern.permute.xlu0 0
  %2142 = vperm.xlu0 %2141, %v2097
  %v2143 = vpop.permute.xlu0 %2142
  %2144 = vset.pattern.permute.xlu0 0
  %2145 = vperm.xlu0 %2144, %v2098
  %v2146 = vpop.permute.xlu0 %2145
  %2147 = vset.pattern.permute.xlu0 0
  %2148 = vperm.xlu0 %2147, %v2099
  %v2149 = vpop.permute.xlu0 %2148
  %2150 = vset.pattern.permute.xlu0 0
  %2151 = vperm.xlu0 %2150, %v2100
  %v2152 = vpop.permute.xlu0 %2151
  %2153 = vset.pattern.permute.xlu0 0
  %2154 = vperm.xlu0 %2153, %v2101
  %v2155 = vpop.permute.xlu0 %2154
  %2156 = vset.pattern.permute.xlu0 0
  %2157 = vperm.xlu0 %2156, %v2102
  %v2158 = vpop.permute.xlu0 %2157
  %2159 = vset.pattern.permute.xlu0 0
  %2160 = vperm.xlu0 %2159, %v2103
  %v2161 = vpop.permute.xlu0 %2160
  %2162 = vset.pattern.permute.xlu0 0
  %2163 = vperm.xlu0 %2162, %v2104
  %v2164 = vpop.permute.xlu0 %2163
  %2165 = vset.pattern.permute.xlu0 0
  %2166 = vperm.xlu0 %2165, %v2105
  %v2167 = vpop.permute.xlu0 %2166
  %2168 = vset.pattern.permute.xlu0 0
  %2169 = vperm.xlu0 %2168, %v2106
  %v2170 = vpop.permute.xlu0 %2169
  %2171 = vset.pattern.permute.xlu0 0
  %2172 = vperm.xlu0 %2171, %v2107
  %v2173 = vpop.permute.xlu0 %2172
  %2174 = vset.pattern.permute.xlu0 0
  %2175 = vperm.xlu0 %2174, %v2108
  %v2176 = vpop.permute.xlu0 %2175
  %2177 = vset.pattern.permute.xlu0 0
  %2178 = vperm.xlu0 %2177, %v2109
  %v2179 = vpop.permute.xlu0 %2178
  %2180 = vset.pattern.permute.xlu0 0
  %2181 = vperm.xlu0 %2180, %v2110
  %v2182 = vpop.permute.xlu0 %2181
  %2183 = vset.pattern.permute.xlu0 0
  %2184 = vperm.xlu0 %2183, %v2111
  %v2185 = vpop.permute.xlu0 %2184
  %2186 = vset.pattern.permute.xlu0 0
  %2187 = vperm.xlu0 %2186, %v2112
  %v2188 = vpop.permute.xlu0 %2187
  %2189 = vset.pattern.permute.xlu0 0
  %2190 = vperm.xlu0 %2189, %v2113
  %v2191 = vpop.permute.xlu0 %2190
  %2192 = vset.pattern.permute.xlu0 0
  %2193 = vperm.xlu0 %2192, %v2114
  %v2194 = vpop.permute.xlu0 %2193
  %2195 = vset.pattern.permute.xlu0 0
  %2196 = vperm.xlu0 %2195, %v2115
  %v2197 = vpop.permute.xlu0 %2196
  %2198 = vset.pattern.permute.xlu0 0
  %2199 = vperm.xlu0 %2198, %v2116
  %v2200 = vpop.permute.xlu0 %2199
  %2201 = vset.pattern.permute.xlu0 0
  %2202 = vperm.xlu0 %2201, %v2117
  %v2203 = vpop.permute.xlu0 %2202
  %2204 = vset.pattern.permute.xlu0 0
  %2205 = vperm.xlu0 %2204, %v2118
  %v2206 = vpop.permute.xlu0 %2205
  %2207 = vset.pattern.permute.xlu0 0
  %2208 = vperm.xlu0 %2207, %v2119
  %v2209 = vpop.permute.xlu0 %2208
  %2210 = vset.pattern.permute.xlu0 0
  %2211 = vperm.xlu0 %2210, %v2120
  %v2212 = vpop.permute.xlu0 %2211
  %2213 = vset.pattern.permute.xlu0 0
  %2214 = vperm.xlu0 %2213, %v2121
  %v2215 = vpop.permute.xlu0 %2214
  %2216 = vset.pattern.permute.xlu0 0
  %2217 = vperm.xlu0 %2216, %v2122
  %v2218 = vpop.permute.xlu0 %2217
  %vm2219 = vcmp.eq.s32.totalorder %v2125, %v16
  %vm2220 = vcmp.eq.s32.totalorder %v2128, %v16
  %vm2221 = vcmp.eq.s32.totalorder %v2131, %v16
  %vm2222 = vcmp.eq.s32.totalorder %v2134, %v16
  %vm2223 = vcmp.eq.s32.totalorder %v2137, %v16
  %vm2224 = vcmp.eq.s32.totalorder %v2140, %v16
  %vm2225 = vcmp.eq.s32.totalorder %v2143, %v16
  %vm2226 = vcmp.eq.s32.totalorder %v2146, %v16
  %vm2227 = vcmp.eq.s32.totalorder %v2149, %v16
  %vm2228 = vcmp.eq.s32.totalorder %v2152, %v16
  %vm2229 = vcmp.eq.s32.totalorder %v2155, %v16
  %vm2230 = vcmp.eq.s32.totalorder %v2158, %v16
  %vm2231 = vcmp.eq.s32.totalorder %v2161, %v16
  %vm2232 = vcmp.eq.s32.totalorder %v2164, %v16
  %vm2233 = vcmp.eq.s32.totalorder %v2167, %v16
  %vm2234 = vcmp.eq.s32.totalorder %v2170, %v16
  %vm2235 = vcmp.eq.s32.totalorder %v2173, %v16
  %vm2236 = vcmp.eq.s32.totalorder %v2176, %v16
  %vm2237 = vcmp.eq.s32.totalorder %v2179, %v16
  %vm2238 = vcmp.eq.s32.totalorder %v2182, %v16
  %vm2239 = vcmp.eq.s32.totalorder %v2185, %v16
  %vm2240 = vcmp.eq.s32.totalorder %v2188, %v16
  %vm2241 = vcmp.eq.s32.totalorder %v2191, %v16
  %vm2242 = vcmp.eq.s32.totalorder %v2194, %v16
  %vm2243 = vcmp.eq.s32.totalorder %v2197, %v16
  %vm2244 = vcmp.eq.s32.totalorder %v2200, %v16
  %vm2245 = vcmp.eq.s32.totalorder %v2203, %v16
  %vm2246 = vcmp.eq.s32.totalorder %v2206, %v16
  %vm2247 = vcmp.eq.s32.totalorder %v2209, %v16
  %vm2248 = vcmp.eq.s32.totalorder %v2212, %v16
  %vm2249 = vcmp.eq.s32.totalorder %v2215, %v16
  %vm2250 = vcmp.eq.s32.totalorder %v2218, %v16
  %v2251 = vsel %vm2219, 1, 0
  %v2252 = vsel %vm2220, 1, 0
  %v2253 = vsel %vm2221, 1, 0
  %v2254 = vsel %vm2222, 1, 0
  %v2255 = vsel %vm2223, 1, 0
  %v2256 = vsel %vm2224, 1, 0
  %v2257 = vsel %vm2225, 1, 0
  %v2258 = vsel %vm2226, 1, 0
  %v2259 = vsel %vm2227, 1, 0
  %v2260 = vsel %vm2228, 1, 0
  %v2261 = vsel %vm2229, 1, 0
  %v2262 = vsel %vm2230, 1, 0
  %v2263 = vsel %vm2231, 1, 0
  %v2264 = vsel %vm2232, 1, 0
  %v2265 = vsel %vm2233, 1, 0
  %v2266 = vsel %vm2234, 1, 0
  %v2267 = vsel %vm2235, 1, 0
  %v2268 = vsel %vm2236, 1, 0
  %v2269 = vsel %vm2237, 1, 0
  %v2270 = vsel %vm2238, 1, 0
  %v2271 = vsel %vm2239, 1, 0
  %v2272 = vsel %vm2240, 1, 0
  %v2273 = vsel %vm2241, 1, 0
  %v2274 = vsel %vm2242, 1, 0
  %v2275 = vsel %vm2243, 1, 0
  %v2276 = vsel %vm2244, 1, 0
  %v2277 = vsel %vm2245, 1, 0
  %v2278 = vsel %vm2246, 1, 0
  %v2279 = vsel %vm2247, 1, 0
  %v2280 = vsel %vm2248, 1, 0
  %v2281 = vsel %vm2249, 1, 0
  %v2282 = vsel %vm2250, 1, 0
  %v2283 = vcvt.s32.f32 %v2251
  %v2284 = vcvt.s32.f32 %v2252
  %v2285 = vcvt.s32.f32 %v2253
  %v2286 = vcvt.s32.f32 %v2254
  %v2287 = vcvt.s32.f32 %v2255
  %v2288 = vcvt.s32.f32 %v2256
  %v2289 = vcvt.s32.f32 %v2257
  %v2290 = vcvt.s32.f32 %v2258
  %v2291 = vcvt.s32.f32 %v2259
  %v2292 = vcvt.s32.f32 %v2260
  %v2293 = vcvt.s32.f32 %v2261
  %v2294 = vcvt.s32.f32 %v2262
  %v2295 = vcvt.s32.f32 %v2263
  %v2296 = vcvt.s32.f32 %v2264
  %v2297 = vcvt.s32.f32 %v2265
  %v2298 = vcvt.s32.f32 %v2266
  %v2299 = vcvt.s32.f32 %v2267
  %v2300 = vcvt.s32.f32 %v2268
  %v2301 = vcvt.s32.f32 %v2269
  %v2302 = vcvt.s32.f32 %v2270
  %v2303 = vcvt.s32.f32 %v2271
  %v2304 = vcvt.s32.f32 %v2272
  %v2305 = vcvt.s32.f32 %v2273
  %v2306 = vcvt.s32.f32 %v2274
  %v2307 = vcvt.s32.f32 %v2275
  %v2308 = vcvt.s32.f32 %v2276
  %v2309 = vcvt.s32.f32 %v2277
  %v2310 = vcvt.s32.f32 %v2278
  %v2311 = vcvt.s32.f32 %v2279
  %v2312 = vcvt.s32.f32 %v2280
  %v2313 = vcvt.s32.f32 %v2281
  %v2314 = vcvt.s32.f32 %v2282
  %v2315 = vpack.c.bf16 %v2284, %v2283
  %v2316 = vpack.c.bf16 %v2286, %v2285
  %v2317 = vpack.c.bf16 %v2288, %v2287
  %v2318 = vpack.c.bf16 %v2290, %v2289
  %v2319 = vpack.c.bf16 %v2292, %v2291
  %v2320 = vpack.c.bf16 %v2294, %v2293
  %v2321 = vpack.c.bf16 %v2296, %v2295
  %v2322 = vpack.c.bf16 %v2298, %v2297
  %v2323 = vpack.c.bf16 %v2300, %v2299
  %v2324 = vpack.c.bf16 %v2302, %v2301
  %v2325 = vpack.c.bf16 %v2304, %v2303
  %v2326 = vpack.c.bf16 %v2306, %v2305
  %v2327 = vpack.c.bf16 %v2308, %v2307
  %v2328 = vpack.c.bf16 %v2310, %v2309
  %v2329 = vpack.c.bf16 %v2312, %v2311
  %v2330 = vpack.c.bf16 %v2314, %v2313
  %s2331 = scalar_lea.vmem %s1, 112
  %v2332 = vld [vmem:[%s2331] sm:$0xff]
  %v2333 = vld [vmem:[%s2331 + $0x8] sm:$0xff]
  %v2336 = vunpack.c.l.b16 %v2332
  %v2337 = vunpack.c.h.b16 %v2332
  %v2338 = vunpack.c.l.b16 %v2333
  %v2339 = vunpack.c.h.b16 %v2333
  %v2340 = vpack.c.b16 %v2338, %v2336
  %v2341 = vpack.c.b16 %v2339, %v2337
  %2344 = vmatprep.subr.bf16.mxu0 0
  %2345 = vmatpush1.bf16.msra.mxu0 %v2322
  %2346 = vmatprep.subr.bf16.mxu0 0
  %2347 = vmatpush1.bf16.msra.mxu0 %v2321
  %2348 = vmatprep.subr.bf16.mxu0 0
  %2349 = vmatpush1.bf16.msra.mxu0 %v2320
  %2350 = vmatprep.subr.bf16.mxu0 0
  %2351 = vmatpush1.bf16.msra.mxu0 %v2319
  %2352 = vmatprep.subr.bf16.mxu0 0
  %2353 = vmatpush1.bf16.msra.mxu0 %v2318
  %2354 = vmatprep.subr.bf16.mxu0 0
  %2355 = vmatpush1.bf16.msra.mxu0 %v2317
  %2356 = vmatprep.subr.bf16.mxu0 0
  %2357 = vmatpush1.bf16.msra.mxu0 %v2316
  %2358 = vmatprep.subr.bf16.mxu0 0
  %2359 = vmatpush1.bf16.msra.mxu0 %v2315
  %2360 = vmatprep.subr.bf16.mxu0 0
  %2361 = vmatpush2.bf16.msra.mxu0 %v2330
  %2362 = vmatprep.subr.bf16.mxu0 0
  %2363 = vmatpush2.bf16.msra.mxu0 %v2329
  %2364 = vmatprep.subr.bf16.mxu0 0
  %2365 = vmatpush2.bf16.msra.mxu0 %v2328
  %2366 = vmatprep.subr.bf16.mxu0 0
  %2367 = vmatpush2.bf16.msra.mxu0 %v2327
  %2368 = vmatprep.subr.bf16.mxu0 0
  %2369 = vmatpush2.bf16.msra.mxu0 %v2326
  %2370 = vmatprep.subr.bf16.mxu0 0
  %2371 = vmatpush2.bf16.msra.mxu0 %v2325
  %2372 = vmatprep.subr.bf16.mxu0 0
  %2373 = vmatpush2.bf16.msra.mxu0 %v2324
  %2374 = vmatprep.subr.bf16.mxu0 0
  %2375 = vmatpush2.bf16.msra.mxu0 %v2323
  %2376 = vmatprep.mubr.bf16.mxu0 %v2341
  %2377 = vmatmul.mubr.bf16.gmra.mxu0 %v2340
  %v2378 = vpop.f32.mrf.mxu0
  %v2379 = vadd.f32 0.0, %v2378
  %v2380 = vpop.f32.mrf.mxu0
  %v2381 = vpop.f32.mrf.mxu0
  %v2382 = vadd.f32 0.0, %v2381
  %v2383 = vpop.f32.mrf.mxu0
  %2384 = vdwg.mxu0
  %v2385 = vadd.f32 %v2088, %v2379
  %v2386 = vadd.f32 %v2089, %v2382
  %2387 = vst [vmem:[%s2] sm:$0xff] %v2385
  %2388 = vst [vmem:[%s2 + $0x8] sm:$0xff] %v2386
  // Predicated region
  $region10: #{base_transform_forward.3} parent=0 // pred_check
    _
  $region11: #{base_transform_forward.3} parent=0 // pred_check_branch
    %2390 = sbr.rel (0) target = $region13
  $region12: #{base_transform_forward.3} parent=0 // pred_region
    _
  $region13: #{base_transform_forward.3} parent=0 // pred_fallthru
    _
  // Predicated region
  $region14: #{base_transform_forward.3} parent=0 // pred_check
    _
  $region15: #{base_transform_forward.3} parent=0 // pred_check_branch
    %2392 = sbr.rel (0) target = $region17
  $region16: #{base_transform_forward.3} parent=0 // pred_region
    _
  $region17: #{base_transform_forward.3} parent=0 // pred_fallthru
    _

</llo_original>
